<compile_context>
chip_gen: v7x
topology: tpu7x:2x2x1
jax: 0.10.0
libtpu: 0.0.40
codegen_flags: <defaults>
</compile_context>

<pallas_src>
import functools
import math

import numpy as np
import jax
import jax.numpy as jnp
from jax.experimental import pallas as pl
from jax.experimental.pallas import tpu as pltpu

K = 3          # conv kernel size
S = 2          # conv stride
OC1, OC2 = 16, 32
QPAD = 128     # lane-dense width of the q-head output (column 0 is the real q)


def conv_out(n):
    return (n - K) // S + 1


# ----------------------------------------------------------------------------
# Parameter construction (PyTorch layout, deterministic, mirrors the init).
# ----------------------------------------------------------------------------
def xavier_uniform_relu(key, shape):
    oc, c, kh, kw = shape
    fan_in, fan_out = c * kh * kw, oc * kh * kw
    bound = math.sqrt(2.0) * math.sqrt(6.0 / (fan_in + fan_out))
    return jax.random.uniform(key, shape, jnp.float32, -bound, bound)


def make_pt_params(key, input_dims, action_dim, hidden_size):
    C, H, W = input_dims
    OH2, OW2 = conv_out(conv_out(H)), conv_out(conv_out(W))
    fc_in = OC2 * OH2 * OW2 + action_dim
    keys = jax.random.split(key, 10)

    def lin(kw, kb, out_f, in_f):
        b = 1.0 / math.sqrt(in_f)
        return (jax.random.uniform(kw, (out_f, in_f), jnp.float32, -b, b),
                jax.random.uniform(kb, (out_f,), jnp.float32, -b, b))

    p = {}
    p["conv1_w"] = xavier_uniform_relu(keys[0], (OC1, C, K, K))
    p["conv1_b"] = jnp.zeros((OC1,), jnp.float32)
    p["conv2_w"] = xavier_uniform_relu(keys[1], (OC2, OC1, K, K))
    p["conv2_b"] = jnp.zeros((OC2,), jnp.float32)
    p["fc1_w"], p["fc1_b"] = lin(keys[2], keys[3], hidden_size, fc_in)
    p["fc2_w"], p["fc2_b"] = lin(keys[4], keys[5], hidden_size, hidden_size)
    p["fc3_w"], p["fc3_b"] = lin(keys[6], keys[7], hidden_size, hidden_size)
    p["q_w"] = jax.random.uniform(keys[8], (1, hidden_size), jnp.float32, -0.003, 0.003)
    p["q_b"] = jax.random.uniform(keys[9], (1,), jnp.float32,
                                  -1.0 / math.sqrt(hidden_size),
                                  1.0 / math.sqrt(hidden_size))
    return p


# ----------------------------------------------------------------------------
# One-time packing into kernel layout (pre-transposed, flatten-order absorbed).
# ----------------------------------------------------------------------------
def pack_params(pt, input_dims, action_dim, hidden_size):
    C, H, W = input_dims
    OH2, OW2 = conv_out(conv_out(H)), conv_out(conv_out(W))
    P2 = OH2 * OW2
    enc = OC2 * P2

    kp = {}
    # conv1: [OC1,C,K,K] -> matmul matrix [C*K*K, OC1], column order (c, i, j)
    kp["w1m"] = pt["conv1_w"].reshape(OC1, C * K * K).T
    kp["b1"] = pt["conv1_b"].reshape(1, OC1)
    # conv2: per-tap matrices [K*K, OC1, OC2], w2t[i*K+j, c, oc] = w[oc, c, i, j]
    kp["w2t"] = pt["conv2_w"].transpose(2, 3, 1, 0).reshape(K * K, OC1, OC2)
    kp["b2"] = pt["conv2_b"].reshape(1, OC2)
    # fc1: absorb NCHW view(B,-1) ordering (m = c*P2 + p) into per-position blocks
    w1 = pt["fc1_w"]                                      # [Hd, enc + action_dim]
    kp["w1enc"] = w1[:, :enc].reshape(hidden_size, OC2, P2).transpose(2, 1, 0)
    kp["w1act"] = w1[:, enc:].T                           # [action_dim, Hd]
    kp["b1fc"] = pt["fc1_b"].reshape(1, hidden_size)
    kp["w2fc"] = pt["fc2_w"].T
    kp["b2fc"] = pt["fc2_b"].reshape(1, hidden_size)
    kp["w3fc"] = pt["fc3_w"].T
    kp["b3fc"] = pt["fc3_b"].reshape(1, hidden_size)
    # q head zero-padded to 128 lanes (lane-dense final store)
    kp["wq"] = jnp.zeros((hidden_size, QPAD), jnp.float32).at[:, 0].set(pt["q_w"][0])
    kp["bq"] = jnp.zeros((1, QPAD), jnp.float32).at[0, 0].set(pt["q_b"][0])
    return kp


# ----------------------------------------------------------------------------
# Fused whole-forward kernel builder.
# ----------------------------------------------------------------------------
def make_forward(batch, input_dims, action_dim, hidden_size):
    C, H, W = input_dims
    B = batch
    OH1, OW1 = conv_out(H), conv_out(W)
    OH2, OW2 = conv_out(OH1), conv_out(OW1)
    P2 = OH2 * OW2
    n1 = B * OH1 * OW1           # conv1 output rows, ordered (b, oh1, ow1)
    n2 = B * P2                  # conv2 output rows, ordered (b, oh2, ow2)
    taps = K * K

    # Constant 0/1 selection matrices: exact gathers executed as MXU matmuls.
    sel2_np = np.zeros((taps, n2, n1), np.float32)        # in-kernel conv2 im2col
    for t in range(taps):
        i, j = divmod(t, K)
        for b in range(B):
            for oh in range(OH2):
                for ow in range(OW2):
                    r2 = (b * OH2 + oh) * OW2 + ow
                    r1 = (b * OH1 + (S * oh + i)) * OW1 + (S * ow + j)
                    sel2_np[t, r2, r1] = 1.0
    selflat_np = np.zeros((P2, B, n2), np.float32)        # flatten (per spatial pos)
    for p in range(P2):
        for b in range(B):
            selflat_np[p, b, b * P2 + p] = 1.0
    sel2 = jnp.asarray(sel2_np)
    selflat = jnp.asarray(selflat_np)

    def fused_kernel(p1_ref, act_ref, w1m_ref, b1_ref, w2t_ref, b2_ref,
                     sel2_ref, w1enc_ref, w1act_ref, b1fc_ref, selflat_ref,
                     w2fc_ref, b2fc_ref, w3fc_ref, b3fc_ref, wq_ref, bq_ref,
                     out_ref):
        dot = functools.partial(jnp.dot, preferred_element_type=jnp.float32)
        # conv1: im2col-matmul + bias + ReLU                                [n1, OC1]
        h1 = jnp.maximum(dot(p1_ref[...], w1m_ref[...]) + b1_ref[...], 0.0)
        # conv2: in-kernel patch gather per tap, accumulated over 9 taps    [n2, OC2]
        acc2 = jnp.zeros((n2, OC2), jnp.float32) + b2_ref[...]
        for t in range(taps):
            g = dot(sel2_ref[t], h1)                  # tap-t rows of the patch matrix
            acc2 = acc2 + dot(g, w2t_ref[t])
        h2 = jnp.maximum(acc2, 0.0)
        # flatten (NCHW order folded into pre-permuted fc1 weights) + action + fc1
        acc3 = dot(act_ref[...], w1act_ref[...]) + b1fc_ref[...]            # [B, Hd]
        for p in range(P2):
            rows = dot(selflat_ref[p], h2)            # conv2 output at position p
            acc3 = acc3 + dot(rows, w1enc_ref[p])
        h = jnp.maximum(acc3, 0.0)
        # fc2 / fc3 / q (q weight zero-padded to 128 lanes -> lane-dense store)
        h = jnp.maximum(dot(h, w2fc_ref[...]) + b2fc_ref[...], 0.0)
        h = jnp.maximum(dot(h, w3fc_ref[...]) + b3fc_ref[...], 0.0)
        out_ref[...] = dot(h, wq_ref[...]) + bq_ref[...]

    n_inputs = 17
    fused = pl.pallas_call(
        fused_kernel,
        out_shape=jax.ShapeDtypeStruct((B, QPAD), jnp.float32),
        in_specs=[pl.BlockSpec(memory_space=pltpu.MemorySpace.VMEM)
                  for _ in range(n_inputs)],
        out_specs=pl.BlockSpec(memory_space=pltpu.MemorySpace.VMEM),
    )

    def im2col_conv1(state):
        # Layout plumbing on the raw external input only (row order (b,oh,ow),
        # column order (c, ki, kj) to match PyTorch's weight.reshape(OC, -1)).
        cols = []
        for i in range(K):
            for j in range(K):
                cols.append(state[:, :, i:i + S * OH1:S, j:j + S * OW1:S])
        p = jnp.stack(cols, axis=0).reshape(K, K, B, C, OH1, OW1)
        p = p.transpose(2, 4, 5, 3, 0, 1)             # [B, OH1, OW1, C, K, K]
        return p.reshape(n1, C * K * K)

    @jax.jit
    def forward(kp, state, action):
        p1 = im2col_conv1(state)
        out = fused(p1, action,
                    kp["w1m"], kp["b1"], kp["w2t"], kp["b2"], sel2,
                    kp["w1enc"], kp["w1act"], kp["b1fc"], selflat,
                    kp["w2fc"], kp["b2fc"], kp["w3fc"], kp["b3fc"],
                    kp["wq"], kp["bq"])
        return out[:, :1]                              # real q value lives in column 0

    return forward


# ----------------------------------------------------------------------------
# Plain-JAX reference of the PyTorch forward (for an in-script sanity check).
# ----------------------------------------------------------------------------
def reference_forward(pt, state, action):
    hp = jax.lax.Precision.HIGHEST
    dn = ("NCHW", "OIHW", "NCHW")
    x = jax.lax.conv_general_dilated(state, pt["conv1_w"], (S, S), "VALID",
                                     dimension_numbers=dn, precision=hp)
    x = jnp.maximum(x + pt["conv1_b"][None, :, None, None], 0.0)
    x = jax.lax.conv_general_dilated(x, pt["conv2_w"], (S, S), "VALID",
                                     dimension_numbers=dn, precision=hp)
    x = jnp.maximum(x + pt["conv2_b"][None, :, None, None], 0.0)
    x = x.reshape(x.shape[0], -1)                      # PyTorch state.view(B, -1)
    h = jnp.concatenate([x, action], axis=1)
    h = jnp.maximum(jnp.dot(h, pt["fc1_w"].T, precision=hp) + pt["fc1_b"], 0.0)
    h = jnp.maximum(jnp.dot(h, pt["fc2_w"].T, precision=hp) + pt["fc2_b"], 0.0)
    h = jnp.maximum(jnp.dot(h, pt["fc3_w"].T, precision=hp) + pt["fc3_b"], 0.0)
    return jnp.dot(h, pt["q_w"].T, precision=hp) + pt["q_b"]


if __name__ == "__main__":
    B = 2
    input_dims = (4, 16, 16)   # (C, H, W)
    action_dim = 3
    hidden_size = 32

    key = jax.random.PRNGKey(0)
    k_params, k_state, k_action = jax.random.split(key, 3)

    pt_params = make_pt_params(k_params, input_dims, action_dim, hidden_size)
    kparams = pack_params(pt_params, input_dims, action_dim, hidden_size)

    state = jax.random.normal(k_state, (B,) + input_dims, jnp.float32)
    action = jax.random.normal(k_action, (B, action_dim), jnp.float32)

    forward = make_forward(B, input_dims, action_dim, hidden_size)
    q = jax.block_until_ready(forward(kparams, state, action))
    assert q.shape == (B, 1)

    q_ref = reference_forward(pt_params, state, action)
    np.testing.assert_allclose(np.asarray(q), np.asarray(q_ref),
                               rtol=5e-3, atol=5e-3)
    print("KERNEL_OK")
</pallas_src>

<mosaic_0001>
module attributes {stable_mosaic.version = 11 : i64} {
  func.func @fused_kernel(%arg0: memref<98x36xf32, #tpu.memory_space<vmem>>, %arg1: memref<2x3xf32, #tpu.memory_space<vmem>>, %arg2: memref<36x16xf32, #tpu.memory_space<vmem>>, %arg3: memref<1x16xf32, #tpu.memory_space<vmem>>, %arg4: memref<9x16x32xf32, #tpu.memory_space<vmem>>, %arg5: memref<1x32xf32, #tpu.memory_space<vmem>>, %arg6: memref<9x18x98xf32, #tpu.memory_space<vmem>>, %arg7: memref<9x32x32xf32, #tpu.memory_space<vmem>>, %arg8: memref<3x32xf32, #tpu.memory_space<vmem>>, %arg9: memref<1x32xf32, #tpu.memory_space<vmem>>, %arg10: memref<9x2x18xf32, #tpu.memory_space<vmem>>, %arg11: memref<32x32xf32, #tpu.memory_space<vmem>>, %arg12: memref<1x32xf32, #tpu.memory_space<vmem>>, %arg13: memref<32x32xf32, #tpu.memory_space<vmem>>, %arg14: memref<1x32xf32, #tpu.memory_space<vmem>>, %arg15: memref<32x128xf32, #tpu.memory_space<vmem>>, %arg16: memref<1x128xf32, #tpu.memory_space<vmem>>, %arg17: memref<2x128xf32, #tpu.memory_space<vmem>>) attributes {dimension_semantics = [], scalar_prefetch = 0 : i64, scratch_operands = 0 : i64, tpu.core_type = #tpu.core_type<tc>} {
    %c0 = arith.constant 0 : index
    %c0_0 = arith.constant 0 : index
    %0 = vector.load %arg0[%c0, %c0_0] : memref<98x36xf32, #tpu.memory_space<vmem>>, vector<98x36xf32>
    %c0_1 = arith.constant 0 : index
    %c0_2 = arith.constant 0 : index
    %1 = vector.load %arg2[%c0_1, %c0_2] : memref<36x16xf32, #tpu.memory_space<vmem>>, vector<36x16xf32>
    %cst = arith.constant dense<0.000000e+00> : vector<98x16xf32>
    %2 = tpu.matmul %0, %1, %cst {dimension_numbers = #tpu.dot_dimension_numbers<[1], [0], [0], [1], [0, 0, 1, 1], [], []>} : vector<98x36xf32>, vector<36x16xf32>, vector<98x16xf32> -> vector<98x16xf32>
    %c0_3 = arith.constant 0 : index
    %c0_4 = arith.constant 0 : index
    %3 = vector.load %arg3[%c0_3, %c0_4] : memref<1x16xf32, #tpu.memory_space<vmem>>, vector<1x16xf32>
    %4 = vector.broadcast %3 : vector<1x16xf32> to vector<98x16xf32>
    %5 = arith.addf %2, %4 : vector<98x16xf32>
    %cst_5 = arith.constant 0.000000e+00 : f32
    %6 = vector.broadcast %cst_5 : f32 to vector<98x16xf32>
    %7 = arith.maximumf %5, %6 : vector<98x16xf32>
    %cst_6 = arith.constant 0.000000e+00 : f32
    %8 = vector.broadcast %cst_6 : f32 to vector<18x32xf32>
    %c0_7 = arith.constant 0 : index
    %c0_8 = arith.constant 0 : index
    %9 = vector.load %arg5[%c0_7, %c0_8] : memref<1x32xf32, #tpu.memory_space<vmem>>, vector<1x32xf32>
    %10 = vector.broadcast %9 : vector<1x32xf32> to vector<18x32xf32>
    %11 = arith.addf %8, %10 : vector<18x32xf32>
    %c0_9 = arith.constant 0 : index
    %c0_10 = arith.constant 0 : index
    %c0_11 = arith.constant 0 : index
    %12 = vector.load %arg6[%c0_9, %c0_10, %c0_11] : memref<9x18x98xf32, #tpu.memory_space<vmem>>, vector<1x18x98xf32>
    %13 = vector.shape_cast %12 : vector<1x18x98xf32> to vector<18x98xf32>
    %cst_12 = arith.constant dense<0.000000e+00> : vector<18x16xf32>
    %14 = tpu.matmul %13, %7, %cst_12 {dimension_numbers = #tpu.dot_dimension_numbers<[1], [0], [0], [1], [0, 0, 1, 1], [], []>} : vector<18x98xf32>, vector<98x16xf32>, vector<18x16xf32> -> vector<18x16xf32>
    %c0_13 = arith.constant 0 : index
    %c0_14 = arith.constant 0 : index
    %c0_15 = arith.constant 0 : index
    %15 = vector.load %arg4[%c0_13, %c0_14, %c0_15] : memref<9x16x32xf32, #tpu.memory_space<vmem>>, vector<1x16x32xf32>
    %16 = vector.shape_cast %15 : vector<1x16x32xf32> to vector<16x32xf32>
    %cst_16 = arith.constant dense<0.000000e+00> : vector<18x32xf32>
    %17 = tpu.matmul %14, %16, %cst_16 {dimension_numbers = #tpu.dot_dimension_numbers<[1], [0], [0], [1], [0, 0, 1, 1], [], []>} : vector<18x16xf32>, vector<16x32xf32>, vector<18x32xf32> -> vector<18x32xf32>
    %18 = arith.addf %11, %17 : vector<18x32xf32>
    %c1 = arith.constant 1 : index
    %c0_17 = arith.constant 0 : index
    %c0_18 = arith.constant 0 : index
    %19 = vector.load %arg6[%c1, %c0_17, %c0_18] : memref<9x18x98xf32, #tpu.memory_space<vmem>>, vector<1x18x98xf32>
    %20 = vector.shape_cast %19 : vector<1x18x98xf32> to vector<18x98xf32>
    %cst_19 = arith.constant dense<0.000000e+00> : vector<18x16xf32>
    %21 = tpu.matmul %20, %7, %cst_19 {dimension_numbers = #tpu.dot_dimension_numbers<[1], [0], [0], [1], [0, 0, 1, 1], [], []>} : vector<18x98xf32>, vector<98x16xf32>, vector<18x16xf32> -> vector<18x16xf32>
    %c1_20 = arith.constant 1 : index
    %c0_21 = arith.constant 0 : index
    %c0_22 = arith.constant 0 : index
    %22 = vector.load %arg4[%c1_20, %c0_21, %c0_22] : memref<9x16x32xf32, #tpu.memory_space<vmem>>, vector<1x16x32xf32>
    %23 = vector.shape_cast %22 : vector<1x16x32xf32> to vector<16x32xf32>
    %cst_23 = arith.constant dense<0.000000e+00> : vector<18x32xf32>
    %24 = tpu.matmul %21, %23, %cst_23 {dimension_numbers = #tpu.dot_dimension_numbers<[1], [0], [0], [1], [0, 0, 1, 1], [], []>} : vector<18x16xf32>, vector<16x32xf32>, vector<18x32xf32> -> vector<18x32xf32>
    %25 = arith.addf %18, %24 : vector<18x32xf32>
    %c2 = arith.constant 2 : index
    %c0_24 = arith.constant 0 : index
    %c0_25 = arith.constant 0 : index
    %26 = vector.load %arg6[%c2, %c0_24, %c0_25] : memref<9x18x98xf32, #tpu.memory_space<vmem>>, vector<1x18x98xf32>
    %27 = vector.shape_cast %26 : vector<1x18x98xf32> to vector<18x98xf32>
    %cst_26 = arith.constant dense<0.000000e+00> : vector<18x16xf32>
    %28 = tpu.matmul %27, %7, %cst_26 {dimension_numbers = #tpu.dot_dimension_numbers<[1], [0], [0], [1], [0, 0, 1, 1], [], []>} : vector<18x98xf32>, vector<98x16xf32>, vector<18x16xf32> -> vector<18x16xf32>
    %c2_27 = arith.constant 2 : index
    %c0_28 = arith.constant 0 : index
    %c0_29 = arith.constant 0 : index
    %29 = vector.load %arg4[%c2_27, %c0_28, %c0_29] : memref<9x16x32xf32, #tpu.memory_space<vmem>>, vector<1x16x32xf32>
    %30 = vector.shape_cast %29 : vector<1x16x32xf32> to vector<16x32xf32>
    %cst_30 = arith.constant dense<0.000000e+00> : vector<18x32xf32>
    %31 = tpu.matmul %28, %30, %cst_30 {dimension_numbers = #tpu.dot_dimension_numbers<[1], [0], [0], [1], [0, 0, 1, 1], [], []>} : vector<18x16xf32>, vector<16x32xf32>, vector<18x32xf32> -> vector<18x32xf32>
    %32 = arith.addf %25, %31 : vector<18x32xf32>
    %c3 = arith.constant 3 : index
    %c0_31 = arith.constant 0 : index
    %c0_32 = arith.constant 0 : index
    %33 = vector.load %arg6[%c3, %c0_31, %c0_32] : memref<9x18x98xf32, #tpu.memory_space<vmem>>, vector<1x18x98xf32>
    %34 = vector.shape_cast %33 : vector<1x18x98xf32> to vector<18x98xf32>
    %cst_33 = arith.constant dense<0.000000e+00> : vector<18x16xf32>
    %35 = tpu.matmul %34, %7, %cst_33 {dimension_numbers = #tpu.dot_dimension_numbers<[1], [0], [0], [1], [0, 0, 1, 1], [], []>} : vector<18x98xf32>, vector<98x16xf32>, vector<18x16xf32> -> vector<18x16xf32>
    %c3_34 = arith.constant 3 : index
    %c0_35 = arith.constant 0 : index
    %c0_36 = arith.constant 0 : index
    %36 = vector.load %arg4[%c3_34, %c0_35, %c0_36] : memref<9x16x32xf32, #tpu.memory_space<vmem>>, vector<1x16x32xf32>
    %37 = vector.shape_cast %36 : vector<1x16x32xf32> to vector<16x32xf32>
    %cst_37 = arith.constant dense<0.000000e+00> : vector<18x32xf32>
    %38 = tpu.matmul %35, %37, %cst_37 {dimension_numbers = #tpu.dot_dimension_numbers<[1], [0], [0], [1], [0, 0, 1, 1], [], []>} : vector<18x16xf32>, vector<16x32xf32>, vector<18x32xf32> -> vector<18x32xf32>
    %39 = arith.addf %32, %38 : vector<18x32xf32>
    %c4 = arith.constant 4 : index
    %c0_38 = arith.constant 0 : index
    %c0_39 = arith.constant 0 : index
    %40 = vector.load %arg6[%c4, %c0_38, %c0_39] : memref<9x18x98xf32, #tpu.memory_space<vmem>>, vector<1x18x98xf32>
    %41 = vector.shape_cast %40 : vector<1x18x98xf32> to vector<18x98xf32>
    %cst_40 = arith.constant dense<0.000000e+00> : vector<18x16xf32>
    %42 = tpu.matmul %41, %7, %cst_40 {dimension_numbers = #tpu.dot_dimension_numbers<[1], [0], [0], [1], [0, 0, 1, 1], [], []>} : vector<18x98xf32>, vector<98x16xf32>, vector<18x16xf32> -> vector<18x16xf32>
    %c4_41 = arith.constant 4 : index
    %c0_42 = arith.constant 0 : index
    %c0_43 = arith.constant 0 : index
    %43 = vector.load %arg4[%c4_41, %c0_42, %c0_43] : memref<9x16x32xf32, #tpu.memory_space<vmem>>, vector<1x16x32xf32>
    %44 = vector.shape_cast %43 : vector<1x16x32xf32> to vector<16x32xf32>
    %cst_44 = arith.constant dense<0.000000e+00> : vector<18x32xf32>
    %45 = tpu.matmul %42, %44, %cst_44 {dimension_numbers = #tpu.dot_dimension_numbers<[1], [0], [0], [1], [0, 0, 1, 1], [], []>} : vector<18x16xf32>, vector<16x32xf32>, vector<18x32xf32> -> vector<18x32xf32>
    %46 = arith.addf %39, %45 : vector<18x32xf32>
    %c5 = arith.constant 5 : index
    %c0_45 = arith.constant 0 : index
    %c0_46 = arith.constant 0 : index
    %47 = vector.load %arg6[%c5, %c0_45, %c0_46] : memref<9x18x98xf32, #tpu.memory_space<vmem>>, vector<1x18x98xf32>
    %48 = vector.shape_cast %47 : vector<1x18x98xf32> to vector<18x98xf32>
    %cst_47 = arith.constant dense<0.000000e+00> : vector<18x16xf32>
    %49 = tpu.matmul %48, %7, %cst_47 {dimension_numbers = #tpu.dot_dimension_numbers<[1], [0], [0], [1], [0, 0, 1, 1], [], []>} : vector<18x98xf32>, vector<98x16xf32>, vector<18x16xf32> -> vector<18x16xf32>
    %c5_48 = arith.constant 5 : index
    %c0_49 = arith.constant 0 : index
    %c0_50 = arith.constant 0 : index
    %50 = vector.load %arg4[%c5_48, %c0_49, %c0_50] : memref<9x16x32xf32, #tpu.memory_space<vmem>>, vector<1x16x32xf32>
    %51 = vector.shape_cast %50 : vector<1x16x32xf32> to vector<16x32xf32>
    %cst_51 = arith.constant dense<0.000000e+00> : vector<18x32xf32>
    %52 = tpu.matmul %49, %51, %cst_51 {dimension_numbers = #tpu.dot_dimension_numbers<[1], [0], [0], [1], [0, 0, 1, 1], [], []>} : vector<18x16xf32>, vector<16x32xf32>, vector<18x32xf32> -> vector<18x32xf32>
    %53 = arith.addf %46, %52 : vector<18x32xf32>
    %c6 = arith.constant 6 : index
    %c0_52 = arith.constant 0 : index
    %c0_53 = arith.constant 0 : index
    %54 = vector.load %arg6[%c6, %c0_52, %c0_53] : memref<9x18x98xf32, #tpu.memory_space<vmem>>, vector<1x18x98xf32>
    %55 = vector.shape_cast %54 : vector<1x18x98xf32> to vector<18x98xf32>
    %cst_54 = arith.constant dense<0.000000e+00> : vector<18x16xf32>
    %56 = tpu.matmul %55, %7, %cst_54 {dimension_numbers = #tpu.dot_dimension_numbers<[1], [0], [0], [1], [0, 0, 1, 1], [], []>} : vector<18x98xf32>, vector<98x16xf32>, vector<18x16xf32> -> vector<18x16xf32>
    %c6_55 = arith.constant 6 : index
    %c0_56 = arith.constant 0 : index
    %c0_57 = arith.constant 0 : index
    %57 = vector.load %arg4[%c6_55, %c0_56, %c0_57] : memref<9x16x32xf32, #tpu.memory_space<vmem>>, vector<1x16x32xf32>
    %58 = vector.shape_cast %57 : vector<1x16x32xf32> to vector<16x32xf32>
    %cst_58 = arith.constant dense<0.000000e+00> : vector<18x32xf32>
    %59 = tpu.matmul %56, %58, %cst_58 {dimension_numbers = #tpu.dot_dimension_numbers<[1], [0], [0], [1], [0, 0, 1, 1], [], []>} : vector<18x16xf32>, vector<16x32xf32>, vector<18x32xf32> -> vector<18x32xf32>
    %60 = arith.addf %53, %59 : vector<18x32xf32>
    %c7 = arith.constant 7 : index
    %c0_59 = arith.constant 0 : index
    %c0_60 = arith.constant 0 : index
    %61 = vector.load %arg6[%c7, %c0_59, %c0_60] : memref<9x18x98xf32, #tpu.memory_space<vmem>>, vector<1x18x98xf32>
    %62 = vector.shape_cast %61 : vector<1x18x98xf32> to vector<18x98xf32>
    %cst_61 = arith.constant dense<0.000000e+00> : vector<18x16xf32>
    %63 = tpu.matmul %62, %7, %cst_61 {dimension_numbers = #tpu.dot_dimension_numbers<[1], [0], [0], [1], [0, 0, 1, 1], [], []>} : vector<18x98xf32>, vector<98x16xf32>, vector<18x16xf32> -> vector<18x16xf32>
    %c7_62 = arith.constant 7 : index
    %c0_63 = arith.constant 0 : index
    %c0_64 = arith.constant 0 : index
    %64 = vector.load %arg4[%c7_62, %c0_63, %c0_64] : memref<9x16x32xf32, #tpu.memory_space<vmem>>, vector<1x16x32xf32>
    %65 = vector.shape_cast %64 : vector<1x16x32xf32> to vector<16x32xf32>
    %cst_65 = arith.constant dense<0.000000e+00> : vector<18x32xf32>
    %66 = tpu.matmul %63, %65, %cst_65 {dimension_numbers = #tpu.dot_dimension_numbers<[1], [0], [0], [1], [0, 0, 1, 1], [], []>} : vector<18x16xf32>, vector<16x32xf32>, vector<18x32xf32> -> vector<18x32xf32>
    %67 = arith.addf %60, %66 : vector<18x32xf32>
    %c8 = arith.constant 8 : index
    %c0_66 = arith.constant 0 : index
    %c0_67 = arith.constant 0 : index
    %68 = vector.load %arg6[%c8, %c0_66, %c0_67] : memref<9x18x98xf32, #tpu.memory_space<vmem>>, vector<1x18x98xf32>
    %69 = vector.shape_cast %68 : vector<1x18x98xf32> to vector<18x98xf32>
    %cst_68 = arith.constant dense<0.000000e+00> : vector<18x16xf32>
    %70 = tpu.matmul %69, %7, %cst_68 {dimension_numbers = #tpu.dot_dimension_numbers<[1], [0], [0], [1], [0, 0, 1, 1], [], []>} : vector<18x98xf32>, vector<98x16xf32>, vector<18x16xf32> -> vector<18x16xf32>
    %c8_69 = arith.constant 8 : index
    %c0_70 = arith.constant 0 : index
    %c0_71 = arith.constant 0 : index
    %71 = vector.load %arg4[%c8_69, %c0_70, %c0_71] : memref<9x16x32xf32, #tpu.memory_space<vmem>>, vector<1x16x32xf32>
    %72 = vector.shape_cast %71 : vector<1x16x32xf32> to vector<16x32xf32>
    %cst_72 = arith.constant dense<0.000000e+00> : vector<18x32xf32>
    %73 = tpu.matmul %70, %72, %cst_72 {dimension_numbers = #tpu.dot_dimension_numbers<[1], [0], [0], [1], [0, 0, 1, 1], [], []>} : vector<18x16xf32>, vector<16x32xf32>, vector<18x32xf32> -> vector<18x32xf32>
    %74 = arith.addf %67, %73 : vector<18x32xf32>
    %cst_73 = arith.constant 0.000000e+00 : f32
    %75 = vector.broadcast %cst_73 : f32 to vector<18x32xf32>
    %76 = arith.maximumf %74, %75 : vector<18x32xf32>
    %c0_74 = arith.constant 0 : index
    %c0_75 = arith.constant 0 : index
    %77 = vector.load %arg1[%c0_74, %c0_75] : memref<2x3xf32, #tpu.memory_space<vmem>>, vector<2x3xf32>
    %c0_76 = arith.constant 0 : index
    %c0_77 = arith.constant 0 : index
    %78 = vector.load %arg8[%c0_76, %c0_77] : memref<3x32xf32, #tpu.memory_space<vmem>>, vector<3x32xf32>
    %cst_78 = arith.constant dense<0.000000e+00> : vector<2x32xf32>
    %79 = tpu.matmul %77, %78, %cst_78 {dimension_numbers = #tpu.dot_dimension_numbers<[1], [0], [0], [1], [0, 0, 1, 1], [], []>} : vector<2x3xf32>, vector<3x32xf32>, vector<2x32xf32> -> vector<2x32xf32>
    %c0_79 = arith.constant 0 : index
    %c0_80 = arith.constant 0 : index
    %80 = vector.load %arg9[%c0_79, %c0_80] : memref<1x32xf32, #tpu.memory_space<vmem>>, vector<1x32xf32>
    %81 = vector.broadcast %80 : vector<1x32xf32> to vector<2x32xf32>
    %82 = arith.addf %79, %81 : vector<2x32xf32>
    %c0_81 = arith.constant 0 : index
    %c0_82 = arith.constant 0 : index
    %c0_83 = arith.constant 0 : index
    %83 = vector.load %arg10[%c0_81, %c0_82, %c0_83] : memref<9x2x18xf32, #tpu.memory_space<vmem>>, vector<1x2x18xf32>
    %84 = vector.shape_cast %83 : vector<1x2x18xf32> to vector<2x18xf32>
    %cst_84 = arith.constant dense<0.000000e+00> : vector<2x32xf32>
    %85 = tpu.matmul %84, %76, %cst_84 {dimension_numbers = #tpu.dot_dimension_numbers<[1], [0], [0], [1], [0, 0, 1, 1], [], []>} : vector<2x18xf32>, vector<18x32xf32>, vector<2x32xf32> -> vector<2x32xf32>
    %c0_85 = arith.constant 0 : index
    %c0_86 = arith.constant 0 : index
    %c0_87 = arith.constant 0 : index
    %86 = vector.load %arg7[%c0_85, %c0_86, %c0_87] : memref<9x32x32xf32, #tpu.memory_space<vmem>>, vector<1x32x32xf32>
    %87 = vector.shape_cast %86 : vector<1x32x32xf32> to vector<32x32xf32>
    %cst_88 = arith.constant dense<0.000000e+00> : vector<2x32xf32>
    %88 = tpu.matmul %85, %87, %cst_88 {dimension_numbers = #tpu.dot_dimension_numbers<[1], [0], [0], [1], [0, 0, 1, 1], [], []>} : vector<2x32xf32>, vector<32x32xf32>, vector<2x32xf32> -> vector<2x32xf32>
    %89 = arith.addf %82, %88 : vector<2x32xf32>
    %c1_89 = arith.constant 1 : index
    %c0_90 = arith.constant 0 : index
    %c0_91 = arith.constant 0 : index
    %90 = vector.load %arg10[%c1_89, %c0_90, %c0_91] : memref<9x2x18xf32, #tpu.memory_space<vmem>>, vector<1x2x18xf32>
    %91 = vector.shape_cast %90 : vector<1x2x18xf32> to vector<2x18xf32>
    %cst_92 = arith.constant dense<0.000000e+00> : vector<2x32xf32>
    %92 = tpu.matmul %91, %76, %cst_92 {dimension_numbers = #tpu.dot_dimension_numbers<[1], [0], [0], [1], [0, 0, 1, 1], [], []>} : vector<2x18xf32>, vector<18x32xf32>, vector<2x32xf32> -> vector<2x32xf32>
    %c1_93 = arith.constant 1 : index
    %c0_94 = arith.constant 0 : index
    %c0_95 = arith.constant 0 : index
    %93 = vector.load %arg7[%c1_93, %c0_94, %c0_95] : memref<9x32x32xf32, #tpu.memory_space<vmem>>, vector<1x32x32xf32>
    %94 = vector.shape_cast %93 : vector<1x32x32xf32> to vector<32x32xf32>
    %cst_96 = arith.constant dense<0.000000e+00> : vector<2x32xf32>
    %95 = tpu.matmul %92, %94, %cst_96 {dimension_numbers = #tpu.dot_dimension_numbers<[1], [0], [0], [1], [0, 0, 1, 1], [], []>} : vector<2x32xf32>, vector<32x32xf32>, vector<2x32xf32> -> vector<2x32xf32>
    %96 = arith.addf %89, %95 : vector<2x32xf32>
    %c2_97 = arith.constant 2 : index
    %c0_98 = arith.constant 0 : index
    %c0_99 = arith.constant 0 : index
    %97 = vector.load %arg10[%c2_97, %c0_98, %c0_99] : memref<9x2x18xf32, #tpu.memory_space<vmem>>, vector<1x2x18xf32>
    %98 = vector.shape_cast %97 : vector<1x2x18xf32> to vector<2x18xf32>
    %cst_100 = arith.constant dense<0.000000e+00> : vector<2x32xf32>
    %99 = tpu.matmul %98, %76, %cst_100 {dimension_numbers = #tpu.dot_dimension_numbers<[1], [0], [0], [1], [0, 0, 1, 1], [], []>} : vector<2x18xf32>, vector<18x32xf32>, vector<2x32xf32> -> vector<2x32xf32>
    %c2_101 = arith.constant 2 : index
    %c0_102 = arith.constant 0 : index
    %c0_103 = arith.constant 0 : index
    %100 = vector.load %arg7[%c2_101, %c0_102, %c0_103] : memref<9x32x32xf32, #tpu.memory_space<vmem>>, vector<1x32x32xf32>
    %101 = vector.shape_cast %100 : vector<1x32x32xf32> to vector<32x32xf32>
    %cst_104 = arith.constant dense<0.000000e+00> : vector<2x32xf32>
    %102 = tpu.matmul %99, %101, %cst_104 {dimension_numbers = #tpu.dot_dimension_numbers<[1], [0], [0], [1], [0, 0, 1, 1], [], []>} : vector<2x32xf32>, vector<32x32xf32>, vector<2x32xf32> -> vector<2x32xf32>
    %103 = arith.addf %96, %102 : vector<2x32xf32>
    %c3_105 = arith.constant 3 : index
    %c0_106 = arith.constant 0 : index
    %c0_107 = arith.constant 0 : index
    %104 = vector.load %arg10[%c3_105, %c0_106, %c0_107] : memref<9x2x18xf32, #tpu.memory_space<vmem>>, vector<1x2x18xf32>
    %105 = vector.shape_cast %104 : vector<1x2x18xf32> to vector<2x18xf32>
    %cst_108 = arith.constant dense<0.000000e+00> : vector<2x32xf32>
    %106 = tpu.matmul %105, %76, %cst_108 {dimension_numbers = #tpu.dot_dimension_numbers<[1], [0], [0], [1], [0, 0, 1, 1], [], []>} : vector<2x18xf32>, vector<18x32xf32>, vector<2x32xf32> -> vector<2x32xf32>
    %c3_109 = arith.constant 3 : index
    %c0_110 = arith.constant 0 : index
    %c0_111 = arith.constant 0 : index
    %107 = vector.load %arg7[%c3_109, %c0_110, %c0_111] : memref<9x32x32xf32, #tpu.memory_space<vmem>>, vector<1x32x32xf32>
    %108 = vector.shape_cast %107 : vector<1x32x32xf32> to vector<32x32xf32>
    %cst_112 = arith.constant dense<0.000000e+00> : vector<2x32xf32>
    %109 = tpu.matmul %106, %108, %cst_112 {dimension_numbers = #tpu.dot_dimension_numbers<[1], [0], [0], [1], [0, 0, 1, 1], [], []>} : vector<2x32xf32>, vector<32x32xf32>, vector<2x32xf32> -> vector<2x32xf32>
    %110 = arith.addf %103, %109 : vector<2x32xf32>
    %c4_113 = arith.constant 4 : index
    %c0_114 = arith.constant 0 : index
    %c0_115 = arith.constant 0 : index
    %111 = vector.load %arg10[%c4_113, %c0_114, %c0_115] : memref<9x2x18xf32, #tpu.memory_space<vmem>>, vector<1x2x18xf32>
    %112 = vector.shape_cast %111 : vector<1x2x18xf32> to vector<2x18xf32>
    %cst_116 = arith.constant dense<0.000000e+00> : vector<2x32xf32>
    %113 = tpu.matmul %112, %76, %cst_116 {dimension_numbers = #tpu.dot_dimension_numbers<[1], [0], [0], [1], [0, 0, 1, 1], [], []>} : vector<2x18xf32>, vector<18x32xf32>, vector<2x32xf32> -> vector<2x32xf32>
    %c4_117 = arith.constant 4 : index
    %c0_118 = arith.constant 0 : index
    %c0_119 = arith.constant 0 : index
    %114 = vector.load %arg7[%c4_117, %c0_118, %c0_119] : memref<9x32x32xf32, #tpu.memory_space<vmem>>, vector<1x32x32xf32>
    %115 = vector.shape_cast %114 : vector<1x32x32xf32> to vector<32x32xf32>
    %cst_120 = arith.constant dense<0.000000e+00> : vector<2x32xf32>
    %116 = tpu.matmul %113, %115, %cst_120 {dimension_numbers = #tpu.dot_dimension_numbers<[1], [0], [0], [1], [0, 0, 1, 1], [], []>} : vector<2x32xf32>, vector<32x32xf32>, vector<2x32xf32> -> vector<2x32xf32>
    %117 = arith.addf %110, %116 : vector<2x32xf32>
    %c5_121 = arith.constant 5 : index
    %c0_122 = arith.constant 0 : index
    %c0_123 = arith.constant 0 : index
    %118 = vector.load %arg10[%c5_121, %c0_122, %c0_123] : memref<9x2x18xf32, #tpu.memory_space<vmem>>, vector<1x2x18xf32>
    %119 = vector.shape_cast %118 : vector<1x2x18xf32> to vector<2x18xf32>
    %cst_124 = arith.constant dense<0.000000e+00> : vector<2x32xf32>
    %120 = tpu.matmul %119, %76, %cst_124 {dimension_numbers = #tpu.dot_dimension_numbers<[1], [0], [0], [1], [0, 0, 1, 1], [], []>} : vector<2x18xf32>, vector<18x32xf32>, vector<2x32xf32> -> vector<2x32xf32>
    %c5_125 = arith.constant 5 : index
    %c0_126 = arith.constant 0 : index
    %c0_127 = arith.constant 0 : index
    %121 = vector.load %arg7[%c5_125, %c0_126, %c0_127] : memref<9x32x32xf32, #tpu.memory_space<vmem>>, vector<1x32x32xf32>
    %122 = vector.shape_cast %121 : vector<1x32x32xf32> to vector<32x32xf32>
    %cst_128 = arith.constant dense<0.000000e+00> : vector<2x32xf32>
    %123 = tpu.matmul %120, %122, %cst_128 {dimension_numbers = #tpu.dot_dimension_numbers<[1], [0], [0], [1], [0, 0, 1, 1], [], []>} : vector<2x32xf32>, vector<32x32xf32>, vector<2x32xf32> -> vector<2x32xf32>
    %124 = arith.addf %117, %123 : vector<2x32xf32>
    %c6_129 = arith.constant 6 : index
    %c0_130 = arith.constant 0 : index
    %c0_131 = arith.constant 0 : index
    %125 = vector.load %arg10[%c6_129, %c0_130, %c0_131] : memref<9x2x18xf32, #tpu.memory_space<vmem>>, vector<1x2x18xf32>
    %126 = vector.shape_cast %125 : vector<1x2x18xf32> to vector<2x18xf32>
    %cst_132 = arith.constant dense<0.000000e+00> : vector<2x32xf32>
    %127 = tpu.matmul %126, %76, %cst_132 {dimension_numbers = #tpu.dot_dimension_numbers<[1], [0], [0], [1], [0, 0, 1, 1], [], []>} : vector<2x18xf32>, vector<18x32xf32>, vector<2x32xf32> -> vector<2x32xf32>
    %c6_133 = arith.constant 6 : index
    %c0_134 = arith.constant 0 : index
    %c0_135 = arith.constant 0 : index
    %128 = vector.load %arg7[%c6_133, %c0_134, %c0_135] : memref<9x32x32xf32, #tpu.memory_space<vmem>>, vector<1x32x32xf32>
    %129 = vector.shape_cast %128 : vector<1x32x32xf32> to vector<32x32xf32>
    %cst_136 = arith.constant dense<0.000000e+00> : vector<2x32xf32>
    %130 = tpu.matmul %127, %129, %cst_136 {dimension_numbers = #tpu.dot_dimension_numbers<[1], [0], [0], [1], [0, 0, 1, 1], [], []>} : vector<2x32xf32>, vector<32x32xf32>, vector<2x32xf32> -> vector<2x32xf32>
    %131 = arith.addf %124, %130 : vector<2x32xf32>
    %c7_137 = arith.constant 7 : index
    %c0_138 = arith.constant 0 : index
    %c0_139 = arith.constant 0 : index
    %132 = vector.load %arg10[%c7_137, %c0_138, %c0_139] : memref<9x2x18xf32, #tpu.memory_space<vmem>>, vector<1x2x18xf32>
    %133 = vector.shape_cast %132 : vector<1x2x18xf32> to vector<2x18xf32>
    %cst_140 = arith.constant dense<0.000000e+00> : vector<2x32xf32>
    %134 = tpu.matmul %133, %76, %cst_140 {dimension_numbers = #tpu.dot_dimension_numbers<[1], [0], [0], [1], [0, 0, 1, 1], [], []>} : vector<2x18xf32>, vector<18x32xf32>, vector<2x32xf32> -> vector<2x32xf32>
    %c7_141 = arith.constant 7 : index
    %c0_142 = arith.constant 0 : index
    %c0_143 = arith.constant 0 : index
    %135 = vector.load %arg7[%c7_141, %c0_142, %c0_143] : memref<9x32x32xf32, #tpu.memory_space<vmem>>, vector<1x32x32xf32>
    %136 = vector.shape_cast %135 : vector<1x32x32xf32> to vector<32x32xf32>
    %cst_144 = arith.constant dense<0.000000e+00> : vector<2x32xf32>
    %137 = tpu.matmul %134, %136, %cst_144 {dimension_numbers = #tpu.dot_dimension_numbers<[1], [0], [0], [1], [0, 0, 1, 1], [], []>} : vector<2x32xf32>, vector<32x32xf32>, vector<2x32xf32> -> vector<2x32xf32>
    %138 = arith.addf %131, %137 : vector<2x32xf32>
    %c8_145 = arith.constant 8 : index
    %c0_146 = arith.constant 0 : index
    %c0_147 = arith.constant 0 : index
    %139 = vector.load %arg10[%c8_145, %c0_146, %c0_147] : memref<9x2x18xf32, #tpu.memory_space<vmem>>, vector<1x2x18xf32>
    %140 = vector.shape_cast %139 : vector<1x2x18xf32> to vector<2x18xf32>
    %cst_148 = arith.constant dense<0.000000e+00> : vector<2x32xf32>
    %141 = tpu.matmul %140, %76, %cst_148 {dimension_numbers = #tpu.dot_dimension_numbers<[1], [0], [0], [1], [0, 0, 1, 1], [], []>} : vector<2x18xf32>, vector<18x32xf32>, vector<2x32xf32> -> vector<2x32xf32>
    %c8_149 = arith.constant 8 : index
    %c0_150 = arith.constant 0 : index
    %c0_151 = arith.constant 0 : index
    %142 = vector.load %arg7[%c8_149, %c0_150, %c0_151] : memref<9x32x32xf32, #tpu.memory_space<vmem>>, vector<1x32x32xf32>
    %143 = vector.shape_cast %142 : vector<1x32x32xf32> to vector<32x32xf32>
    %cst_152 = arith.constant dense<0.000000e+00> : vector<2x32xf32>
    %144 = tpu.matmul %141, %143, %cst_152 {dimension_numbers = #tpu.dot_dimension_numbers<[1], [0], [0], [1], [0, 0, 1, 1], [], []>} : vector<2x32xf32>, vector<32x32xf32>, vector<2x32xf32> -> vector<2x32xf32>
    %145 = arith.addf %138, %144 : vector<2x32xf32>
    %cst_153 = arith.constant 0.000000e+00 : f32
    %146 = vector.broadcast %cst_153 : f32 to vector<2x32xf32>
    %147 = arith.maximumf %145, %146 : vector<2x32xf32>
    %c0_154 = arith.constant 0 : index
    %c0_155 = arith.constant 0 : index
    %148 = vector.load %arg11[%c0_154, %c0_155] : memref<32x32xf32, #tpu.memory_space<vmem>>, vector<32x32xf32>
    %cst_156 = arith.constant dense<0.000000e+00> : vector<2x32xf32>
    %149 = tpu.matmul %147, %148, %cst_156 {dimension_numbers = #tpu.dot_dimension_numbers<[1], [0], [0], [1], [0, 0, 1, 1], [], []>} : vector<2x32xf32>, vector<32x32xf32>, vector<2x32xf32> -> vector<2x32xf32>
    %c0_157 = arith.constant 0 : index
    %c0_158 = arith.constant 0 : index
    %150 = vector.load %arg12[%c0_157, %c0_158] : memref<1x32xf32, #tpu.memory_space<vmem>>, vector<1x32xf32>
    %151 = vector.broadcast %150 : vector<1x32xf32> to vector<2x32xf32>
    %152 = arith.addf %149, %151 : vector<2x32xf32>
    %cst_159 = arith.constant 0.000000e+00 : f32
    %153 = vector.broadcast %cst_159 : f32 to vector<2x32xf32>
    %154 = arith.maximumf %152, %153 : vector<2x32xf32>
    %c0_160 = arith.constant 0 : index
    %c0_161 = arith.constant 0 : index
    %155 = vector.load %arg13[%c0_160, %c0_161] : memref<32x32xf32, #tpu.memory_space<vmem>>, vector<32x32xf32>
    %cst_162 = arith.constant dense<0.000000e+00> : vector<2x32xf32>
    %156 = tpu.matmul %154, %155, %cst_162 {dimension_numbers = #tpu.dot_dimension_numbers<[1], [0], [0], [1], [0, 0, 1, 1], [], []>} : vector<2x32xf32>, vector<32x32xf32>, vector<2x32xf32> -> vector<2x32xf32>
    %c0_163 = arith.constant 0 : index
    %c0_164 = arith.constant 0 : index
    %157 = vector.load %arg14[%c0_163, %c0_164] : memref<1x32xf32, #tpu.memory_space<vmem>>, vector<1x32xf32>
    %158 = vector.broadcast %157 : vector<1x32xf32> to vector<2x32xf32>
    %159 = arith.addf %156, %158 : vector<2x32xf32>
    %cst_165 = arith.constant 0.000000e+00 : f32
    %160 = vector.broadcast %cst_165 : f32 to vector<2x32xf32>
    %161 = arith.maximumf %159, %160 : vector<2x32xf32>
    %c0_166 = arith.constant 0 : index
    %c0_167 = arith.constant 0 : index
    %162 = vector.load %arg15[%c0_166, %c0_167] : memref<32x128xf32, #tpu.memory_space<vmem>>, vector<32x128xf32>
    %cst_168 = arith.constant dense<0.000000e+00> : vector<2x128xf32>
    %163 = tpu.matmul %161, %162, %cst_168 {dimension_numbers = #tpu.dot_dimension_numbers<[1], [0], [0], [1], [0, 0, 1, 1], [], []>} : vector<2x32xf32>, vector<32x128xf32>, vector<2x128xf32> -> vector<2x128xf32>
    %c0_169 = arith.constant 0 : index
    %c0_170 = arith.constant 0 : index
    %164 = vector.load %arg16[%c0_169, %c0_170] : memref<1x128xf32, #tpu.memory_space<vmem>>, vector<1x128xf32>
    %165 = vector.broadcast %164 : vector<1x128xf32> to vector<2x128xf32>
    %166 = arith.addf %163, %165 : vector<2x128xf32>
    %c0_171 = arith.constant 0 : index
    %c0_172 = arith.constant 0 : index
    %167 = vector.load %arg17[%c0_171, %c0_172] : memref<2x128xf32, #tpu.memory_space<vmem>>, vector<2x128xf32>
    tpu.vector_store %arg17[%c0_171, %c0_172], %166 {strides = array<i32>} : memref<2x128xf32, #tpu.memory_space<vmem>>, vector<2x128xf32>,
    return
  }
}

</mosaic_0001>

<llo_original>
// kernel: forward.1
$region0: #{forward.1}
  #allocation0 [shape = 'u32[]', space=smem, size = 0x4, offset = 0x4, fixed_abs, tag = 'smem constant byte address 0x4 - core index']
  #allocation1 [shape = 'u32[144,128]{1,0:T(1,128)}', space=vmem, size = 0x12000, scoped, tag = 'internal scratch']
  %s0 = inlined_call_operand.vmem [shape: f32[98,36], index: 0, kind: input, shape index: {}]
  %s1 = inlined_call_operand.vmem [shape: f32[2,3], index: 1, kind: input, shape index: {}]
  %s2 = inlined_call_operand.vmem [shape: f32[36,16], index: 2, kind: input, shape index: {}]
  %s3 = inlined_call_operand.vmem [shape: f32[1,16], index: 3, kind: input, shape index: {}]
  %s4 = inlined_call_operand.vmem [shape: f32[9,16,32], index: 4, kind: input, shape index: {}]
  %s5 = inlined_call_operand.vmem [shape: f32[1,32], index: 5, kind: input, shape index: {}]
  %s6 = inlined_call_operand.vmem [shape: f32[9,18,98], index: 6, kind: input, shape index: {}]
  %s7 = inlined_call_operand.vmem [shape: f32[9,32,32], index: 7, kind: input, shape index: {}]
  %s8 = inlined_call_operand.vmem [shape: f32[3,32], index: 8, kind: input, shape index: {}]
  %s9 = inlined_call_operand.vmem [shape: f32[1,32], index: 9, kind: input, shape index: {}]
  %s10 = inlined_call_operand.vmem [shape: f32[9,2,18], index: 10, kind: input, shape index: {}]
  %s11 = inlined_call_operand.vmem [shape: f32[32,32], index: 11, kind: input, shape index: {}]
  %s12 = inlined_call_operand.vmem [shape: f32[1,32], index: 12, kind: input, shape index: {}]
  %s13 = inlined_call_operand.vmem [shape: f32[32,32], index: 13, kind: input, shape index: {}]
  %s14 = inlined_call_operand.vmem [shape: f32[1,32], index: 14, kind: input, shape index: {}]
  %s15 = inlined_call_operand.vmem [shape: f32[32,128], index: 15, kind: input, shape index: {}]
  %s16 = inlined_call_operand.vmem [shape: f32[1,128], index: 16, kind: input, shape index: {}]
  %s17 = inlined_call_operand.vmem [shape: f32[2,128], index: 17, kind: output, shape index: {}]
  %s18 = sld [smem:[#allocation0]]
  $region78: #{forward.1} parent=0
    _
  %s20 = ssub.s32 1, %s18
  %s21 = scalar_select 0, %s20, %s18
  // Predicated region
  $region2: #{forward.1} parent=0 // pred_check
    _
  $region3: #{forward.1} parent=0 // pred_check_branch
    %23 = sbr.rel (0) target = $region5
  $region4: #{forward.1} parent=0 // pred_region
    _
  $region5: #{forward.1} parent=0 // pred_fallthru
    _
  // Predicated region
  $region6: #{forward.1} parent=0 // pred_check
    _
  $region7: #{forward.1} parent=0 // pred_check_branch
    %25 = sbr.rel (0) target = $region9
  $region8: #{forward.1} parent=0 // pred_region
    _
  $region9: #{forward.1} parent=0 // pred_fallthru
    _
  // Predicated region
  $region10: #{forward.1} parent=0 // pred_check
    _
  $region11: #{forward.1} parent=0 // pred_check_branch
    %27 = sbr.rel (0) target = $region13
  $region12: #{forward.1} parent=0 // pred_region
    _
  $region13: #{forward.1} parent=0 // pred_fallthru
    _
  // Predicated region
  $region14: #{forward.1} parent=0 // pred_check
    _
  $region15: #{forward.1} parent=0 // pred_check_branch
    %29 = sbr.rel (0) target = $region17
  $region16: #{forward.1} parent=0 // pred_region
    _
  $region17: #{forward.1} parent=0 // pred_fallthru
    _
  // Predicated region
  $region18: #{forward.1} parent=0 // pred_check
    _
  $region19: #{forward.1} parent=0 // pred_check_branch
    %31 = sbr.rel (0) target = $region21
  $region20: #{forward.1} parent=0 // pred_region
    _
  $region21: #{forward.1} parent=0 // pred_fallthru
    _
  // Predicated region
  $region22: #{forward.1} parent=0 // pred_check
    _
  $region23: #{forward.1} parent=0 // pred_check_branch
    %33 = sbr.rel (0) target = $region25
  $region24: #{forward.1} parent=0 // pred_region
    _
  $region25: #{forward.1} parent=0 // pred_fallthru
    _
  // Predicated region
  $region26: #{forward.1} parent=0 // pred_check
    _
  $region27: #{forward.1} parent=0 // pred_check_branch
    %35 = sbr.rel (0) target = $region29
  $region28: #{forward.1} parent=0 // pred_region
    _
  $region29: #{forward.1} parent=0 // pred_fallthru
    _
  // Predicated region
  $region30: #{forward.1} parent=0 // pred_check
    _
  $region31: #{forward.1} parent=0 // pred_check_branch
    %37 = sbr.rel (0) target = $region33
  $region32: #{forward.1} parent=0 // pred_region
    _
  $region33: #{forward.1} parent=0 // pred_fallthru
    _
  // Predicated region
  $region34: #{forward.1} parent=0 // pred_check
    _
  $region35: #{forward.1} parent=0 // pred_check_branch
    %39 = sbr.rel (0) target = $region37
  $region36: #{forward.1} parent=0 // pred_region
    _
  $region37: #{forward.1} parent=0 // pred_fallthru
    _
  // Predicated region
  $region38: #{forward.1} parent=0 // pred_check
    _
  $region39: #{forward.1} parent=0 // pred_check_branch
    %41 = sbr.rel (0) target = $region41
  $region40: #{forward.1} parent=0 // pred_region
    _
  $region41: #{forward.1} parent=0 // pred_fallthru
    _
  // Predicated region
  $region42: #{forward.1} parent=0 // pred_check
    _
  $region43: #{forward.1} parent=0 // pred_check_branch
    %43 = sbr.rel (0) target = $region45
  $region44: #{forward.1} parent=0 // pred_region
    _
  $region45: #{forward.1} parent=0 // pred_fallthru
    _
  // Predicated region
  $region46: #{forward.1} parent=0 // pred_check
    _
  $region47: #{forward.1} parent=0 // pred_check_branch
    %45 = sbr.rel (0) target = $region49
  $region48: #{forward.1} parent=0 // pred_region
    _
  $region49: #{forward.1} parent=0 // pred_fallthru
    _
  // Predicated region
  $region50: #{forward.1} parent=0 // pred_check
    _
  $region51: #{forward.1} parent=0 // pred_check_branch
    %47 = sbr.rel (0) target = $region53
  $region52: #{forward.1} parent=0 // pred_region
    _
  $region53: #{forward.1} parent=0 // pred_fallthru
    _
  // Predicated region
  $region54: #{forward.1} parent=0 // pred_check
    _
  $region55: #{forward.1} parent=0 // pred_check_branch
    %49 = sbr.rel (0) target = $region57
  $region56: #{forward.1} parent=0 // pred_region
    _
  $region57: #{forward.1} parent=0 // pred_fallthru
    _
  // Predicated region
  $region58: #{forward.1} parent=0 // pred_check
    _
  $region59: #{forward.1} parent=0 // pred_check_branch
    %51 = sbr.rel (0) target = $region61
  $region60: #{forward.1} parent=0 // pred_region
    _
  $region61: #{forward.1} parent=0 // pred_fallthru
    _
  // Predicated region
  $region62: #{forward.1} parent=0 // pred_check
    _
  $region63: #{forward.1} parent=0 // pred_check_branch
    %53 = sbr.rel (0) target = $region65
  $region64: #{forward.1} parent=0 // pred_region
    _
  $region65: #{forward.1} parent=0 // pred_fallthru
    _
  // Predicated region
  $region66: #{forward.1} parent=0 // pred_check
    _
  $region67: #{forward.1} parent=0 // pred_check_branch
    %55 = sbr.rel (0) target = $region69
  $region68: #{forward.1} parent=0 // pred_region
    _
  $region69: #{forward.1} parent=0 // pred_fallthru
    _
  %v56 = vld [vmem:[%s0] sm:$0xff]
  %v57 = vld [vmem:[%s0 + $0x8] sm:$0xff]
  %v58 = vld [vmem:[%s0 + $0x10] sm:$0xff]
  %v59 = vld [vmem:[%s0 + $0x18] sm:$0xff]
  %v60 = vld [vmem:[%s0 + $0x20] sm:$0xff]
  %v61 = vld [vmem:[%s0 + $0x28] sm:$0xff]
  %v62 = vld [vmem:[%s0 + $0x30] sm:$0xff]
  %v63 = vld [vmem:[%s0 + $0x38] sm:$0xff]
  %v64 = vld [vmem:[%s0 + $0x40] sm:$0xff]
  %v65 = vld [vmem:[%s0 + $0x48] sm:$0xff]
  %v66 = vld [vmem:[%s0 + $0x50] sm:$0xff]
  %v67 = vld [vmem:[%s0 + $0x58] sm:$0xff]
  %v68 = vld [vmem:[%s0 + $0x60] sm:$0x3]
  %v69 = vld [vmem:[%s2] sm:$0xff]
  %v70 = vld [vmem:[%s2 + $0x8] sm:$0xff]
  %v71 = vld [vmem:[%s2 + $0x10] sm:$0xff]
  %v72 = vld [vmem:[%s2 + $0x18] sm:$0xff]
  %v73 = vld [vmem:[%s2 + $0x20] sm:$0xf]
  %v74 = vld [vmem:[%s3] sm:$0x1]
  %v76 = vlaneseq
  %v77 = vshrl.u32 %v76, 7
  %v78 = vsub.s32 0, %v77
  %v79 = vrot.slane %v74, %v78
  %vm81 = vcmask 293888
  %v83 = vsel %vm81, %v56, 0
  %v86 = vsel %vm81, %v57, 0
  %v89 = vsel %vm81, %v58, 0
  %v92 = vsel %vm81, %v59, 0
  %v95 = vsel %vm81, %v60, 0
  %v98 = vsel %vm81, %v61, 0
  %v101 = vsel %vm81, %v62, 0
  %v104 = vsel %vm81, %v63, 0
  %v107 = vsel %vm81, %v64, 0
  %v110 = vsel %vm81, %v65, 0
  %v113 = vsel %vm81, %v66, 0
  %v116 = vsel %vm81, %v67, 0
  %v119 = vsel %vm81, %v68, 0
  %vm121 = vcmask 1043456
  %v123 = vsel %vm121, %v73, 0
  %125 = vmatprep.subr.mxu0 0.0
  %126 = vmatpush1.msra.mxu0 %v69
  %127 = vmatprep.subr.mxu0 0.0
  %128 = vmatpush1.msra.mxu0 %v70
  %129 = vmatprep.subr.mxu0 0.0
  %130 = vmatpush1.msra.mxu0 %v71
  %131 = vmatprep.subr.mxu0 0.0
  %132 = vmatpush1.msra.mxu0 %v72
  %133 = vmatprep.subr.mxu0 0.0
  %134 = vmatpush1.msra.mxu0 %v123
  %135 = vmatprep.subr.mxu0 0.0
  %136 = vmatpush1.msra.mxu0 0.0
  %137 = vmatprep.subr.mxu0 0.0
  %138 = vmatpush1.msra.mxu0 0.0
  %139 = vmatprep.subr.mxu0 0.0
  %140 = vmatpush1.msra.mxu0 0.0
  %141 = vmatprep.subr.mxu0 0.0
  %142 = vmatpush1.msra.mxu0 0.0
  %143 = vmatprep.subr.mxu0 0.0
  %144 = vmatpush1.msra.mxu0 0.0
  %145 = vmatprep.subr.mxu0 0.0
  %146 = vmatpush1.msra.mxu0 0.0
  %147 = vmatprep.subr.mxu0 0.0
  %148 = vmatpush1.msra.mxu0 0.0
  %149 = vmatprep.subr.mxu0 0.0
  %150 = vmatpush1.msra.mxu0 0.0
  %151 = vmatprep.subr.mxu0 0.0
  %152 = vmatpush1.msra.mxu0 0.0
  %153 = vmatprep.subr.mxu0 0.0
  %154 = vmatpush1.msra.mxu0 0.0
  %155 = vmatprep.subr.mxu0 0.0
  %156 = vmatpush1.msra.mxu0 0.0
  %157 = vmatprep.subr.mxu0 0.0
  %158 = vmatpush1.msra.mxu0 0.0
  %159 = vmatprep.subr.mxu0 0.0
  %160 = vmatpush1.msra.mxu0 0.0
  %161 = vmatprep.subr.mxu0 0.0
  %162 = vmatpush1.msra.mxu0 0.0
  %163 = vmatprep.subr.mxu0 0.0
  %164 = vmatpush1.msra.mxu0 0.0
  %165 = vmatprep.subr.mxu0 0.0
  %166 = vmatpush1.msra.mxu0 0.0
  %167 = vmatprep.subr.mxu0 0.0
  %168 = vmatpush1.msra.mxu0 0.0
  %169 = vmatprep.subr.mxu0 0.0
  %170 = vmatpush1.msra.mxu0 0.0
  %171 = vmatprep.subr.mxu0 0.0
  %172 = vmatpush1.msra.mxu0 0.0
  %173 = vmatprep.subr.mxu0 0.0
  %174 = vmatpush1.msra.mxu0 0.0
  %175 = vmatprep.subr.mxu0 0.0
  %176 = vmatpush1.msra.mxu0 0.0
  %177 = vmatprep.subr.mxu0 0.0
  %178 = vmatpush1.msra.mxu0 0.0
  %179 = vmatprep.subr.mxu0 0.0
  %180 = vmatpush1.msra.mxu0 0.0
  %181 = vmatprep.subr.mxu0 0.0
  %182 = vmatpush1.msra.mxu0 0.0
  %183 = vmatprep.subr.mxu0 0.0
  %184 = vmatpush1.msra.mxu0 0.0
  %185 = vmatprep.subr.mxu0 0.0
  %186 = vmatpush1.msra.mxu0 0.0
  %187 = vmatprep.subr.mxu0 0.0
  %188 = vmatpush1.msra.mxu0 0.0
  %189 = vmatprep.mubr.f32.mxu0 0.0
  %190 = vmatmul.mubr.f32.gmra.mrb[0].mxu0 %v83
  %v191 = vpop.f32.mrb[0].mxu0
  %v192 = vadd.f32 %v79, %v191
  %v193 = vpop.f32.mrb[0].mxu0
  %194 = vmatprep.mubr.f32.mxu0 0.0
  %195 = vmatmul.mubr.f32.gmra.mrb[0].mxu0 %v86
  %v196 = vpop.f32.mrb[0].mxu0
  %v197 = vadd.f32 %v79, %v196
  %v198 = vpop.f32.mrb[0].mxu0
  %199 = vmatprep.mubr.f32.mxu0 0.0
  %200 = vmatmul.mubr.f32.gmra.mrb[0].mxu0 %v89
  %v201 = vpop.f32.mrb[0].mxu0
  %v202 = vadd.f32 %v79, %v201
  %v203 = vpop.f32.mrb[0].mxu0
  %204 = vmatprep.mubr.f32.mxu0 0.0
  %205 = vmatmul.mubr.f32.gmra.mrb[0].mxu0 %v92
  %v206 = vpop.f32.mrb[0].mxu0
  %v207 = vadd.f32 %v79, %v206
  %v208 = vpop.f32.mrb[0].mxu0
  %209 = vmatprep.mubr.f32.mxu0 0.0
  %210 = vmatmul.mubr.f32.gmra.mrb[0].mxu0 %v95
  %v211 = vpop.f32.mrb[0].mxu0
  %v212 = vadd.f32 %v79, %v211
  %v213 = vpop.f32.mrb[0].mxu0
  %214 = vmatprep.mubr.f32.mxu0 0.0
  %215 = vmatmul.mubr.f32.gmra.mrb[0].mxu0 %v98
  %v216 = vpop.f32.mrb[0].mxu0
  %v217 = vadd.f32 %v79, %v216
  %v218 = vpop.f32.mrb[0].mxu0
  %219 = vmatprep.mubr.f32.mxu0 0.0
  %220 = vmatmul.mubr.f32.gmra.mrb[0].mxu0 %v101
  %v221 = vpop.f32.mrb[0].mxu0
  %v222 = vadd.f32 %v79, %v221
  %v223 = vpop.f32.mrb[0].mxu0
  %224 = vmatprep.mubr.f32.mxu0 0.0
  %225 = vmatmul.mubr.f32.gmra.mrb[0].mxu0 %v104
  %v226 = vpop.f32.mrb[0].mxu0
  %v227 = vadd.f32 %v79, %v226
  %v228 = vpop.f32.mrb[0].mxu0
  %229 = vmatprep.mubr.f32.mxu0 0.0
  %230 = vmatmul.mubr.f32.gmra.mrb[0].mxu0 %v107
  %v231 = vpop.f32.mrb[0].mxu0
  %v232 = vadd.f32 %v79, %v231
  %v233 = vpop.f32.mrb[0].mxu0
  %234 = vmatprep.mubr.f32.mxu0 0.0
  %235 = vmatmul.mubr.f32.gmra.mrb[0].mxu0 %v110
  %v236 = vpop.f32.mrb[0].mxu0
  %v237 = vadd.f32 %v79, %v236
  %v238 = vpop.f32.mrb[0].mxu0
  %239 = vmatprep.mubr.f32.mxu0 0.0
  %240 = vmatmul.mubr.f32.gmra.mrb[0].mxu0 %v113
  %v241 = vpop.f32.mrb[0].mxu0
  %v242 = vadd.f32 %v79, %v241
  %v243 = vpop.f32.mrb[0].mxu0
  %244 = vmatprep.mubr.f32.mxu0 0.0
  %245 = vmatmul.mubr.f32.gmra.mrb[0].mxu0 %v116
  %v246 = vpop.f32.mrb[0].mxu0
  %v247 = vadd.f32 %v79, %v246
  %v248 = vpop.f32.mrb[0].mxu0
  %249 = vmatprep.mubr.f32.mxu0 0.0
  %250 = vmatmul.mubr.f32.gmra.mrb[0].mxu0 %v119
  %v251 = vpop.f32.mrb[0].mxu0
  %v252 = vadd.f32 %v79, %v251
  %v253 = vpop.f32.mrb[0].mxu0
  %254 = vdwg.mxu0
  %v255 = vmax.f32 %v192, 0.0
  %v256 = vmax.f32 %v197, 0.0
  %v257 = vmax.f32 %v202, 0.0
  %v258 = vmax.f32 %v207, 0.0
  %v259 = vmax.f32 %v212, 0.0
  %v260 = vmax.f32 %v217, 0.0
  %v261 = vmax.f32 %v222, 0.0
  %v262 = vmax.f32 %v227, 0.0
  %v263 = vmax.f32 %v232, 0.0
  %v264 = vmax.f32 %v237, 0.0
  %v265 = vmax.f32 %v242, 0.0
  %v266 = vmax.f32 %v247, 0.0
  %v267 = vmax.f32 %v252, 0.0
  %v268 = vld [vmem:[%s5] sm:$0x1]
  %v270 = vlaneseq
  %v271 = vshrl.u32 %v270, 7
  %v272 = vsub.s32 0, %v271
  %v273 = vrot.slane %v268, %v272
  %v275 = vadd.f32 %v273, 0.0
  %v276 = vld [vmem:[%s6] sm:$0xff]
  %v277 = vld [vmem:[%s6 + $0x8] sm:$0xff]
  %v278 = vld [vmem:[%s6 + $0x10] sm:$0x3]
  %vm279 = vcmask 801792
  %v281 = vsel %vm279, %v276, 0
  %v284 = vsel %vm279, %v277, 0
  %v287 = vsel %vm279, %v278, 0
  %vm289 = vcmask 1041408
  %v291 = vsel %vm289, %v267, 0
  %293 = vmatprep.subr.mxu0 0.0
  %294 = vmatpush1.msra.mxu0 %v255
  %295 = vmatprep.subr.mxu0 0.0
  %296 = vmatpush1.msra.mxu0 %v256
  %297 = vmatprep.subr.mxu0 0.0
  %298 = vmatpush1.msra.mxu0 %v257
  %299 = vmatprep.subr.mxu0 0.0
  %300 = vmatpush1.msra.mxu0 %v258
  %301 = vmatprep.subr.mxu0 0.0
  %302 = vmatpush1.msra.mxu0 %v259
  %303 = vmatprep.subr.mxu0 0.0
  %304 = vmatpush1.msra.mxu0 %v260
  %305 = vmatprep.subr.mxu0 0.0
  %306 = vmatpush1.msra.mxu0 %v261
  %307 = vmatprep.subr.mxu0 0.0
  %308 = vmatpush1.msra.mxu0 %v262
  %309 = vmatprep.subr.mxu0 0.0
  %310 = vmatpush1.msra.mxu0 %v263
  %311 = vmatprep.subr.mxu0 0.0
  %312 = vmatpush1.msra.mxu0 %v264
  %313 = vmatprep.subr.mxu0 0.0
  %314 = vmatpush1.msra.mxu0 %v265
  %315 = vmatprep.subr.mxu0 0.0
  %316 = vmatpush1.msra.mxu0 %v266
  %317 = vmatprep.subr.mxu0 0.0
  %318 = vmatpush1.msra.mxu0 %v291
  %319 = vmatprep.subr.mxu0 0.0
  %320 = vmatpush1.msra.mxu0 0.0
  %321 = vmatprep.subr.mxu0 0.0
  %322 = vmatpush1.msra.mxu0 0.0
  %323 = vmatprep.subr.mxu0 0.0
  %324 = vmatpush1.msra.mxu0 0.0
  %325 = vmatprep.subr.mxu0 0.0
  %326 = vmatpush1.msra.mxu0 0.0
  %327 = vmatprep.subr.mxu0 0.0
  %328 = vmatpush1.msra.mxu0 0.0
  %329 = vmatprep.subr.mxu0 0.0
  %330 = vmatpush1.msra.mxu0 0.0
  %331 = vmatprep.subr.mxu0 0.0
  %332 = vmatpush1.msra.mxu0 0.0
  %333 = vmatprep.subr.mxu0 0.0
  %334 = vmatpush1.msra.mxu0 0.0
  %335 = vmatprep.subr.mxu0 0.0
  %336 = vmatpush1.msra.mxu0 0.0
  %337 = vmatprep.subr.mxu0 0.0
  %338 = vmatpush1.msra.mxu0 0.0
  %339 = vmatprep.subr.mxu0 0.0
  %340 = vmatpush1.msra.mxu0 0.0
  %341 = vmatprep.subr.mxu0 0.0
  %342 = vmatpush1.msra.mxu0 0.0
  %343 = vmatprep.subr.mxu0 0.0
  %344 = vmatpush1.msra.mxu0 0.0
  %345 = vmatprep.subr.mxu0 0.0
  %346 = vmatpush1.msra.mxu0 0.0
  %347 = vmatprep.subr.mxu0 0.0
  %348 = vmatpush1.msra.mxu0 0.0
  %349 = vmatprep.subr.mxu0 0.0
  %350 = vmatpush1.msra.mxu0 0.0
  %351 = vmatprep.subr.mxu0 0.0
  %352 = vmatpush1.msra.mxu0 0.0
  %353 = vmatprep.subr.mxu0 0.0
  %354 = vmatpush1.msra.mxu0 0.0
  %355 = vmatprep.subr.mxu0 0.0
  %356 = vmatpush1.msra.mxu0 0.0
  %357 = vmatprep.mubr.f32.mxu0 0.0
  %358 = vmatmul.mubr.f32.gmra.mrb[0].mxu0 %v281
  %v359 = vpop.f32.mrb[0].mxu0
  %v360 = vadd.f32 0.0, %v359
  %v361 = vpop.f32.mrb[0].mxu0
  %362 = vmatprep.mubr.f32.mxu0 0.0
  %363 = vmatmul.mubr.f32.gmra.mrb[0].mxu0 %v284
  %v364 = vpop.f32.mrb[0].mxu0
  %v365 = vadd.f32 0.0, %v364
  %v366 = vpop.f32.mrb[0].mxu0
  %367 = vmatprep.mubr.f32.mxu0 0.0
  %368 = vmatmul.mubr.f32.gmra.mrb[0].mxu0 %v287
  %v369 = vpop.f32.mrb[0].mxu0
  %v370 = vadd.f32 0.0, %v369
  %v371 = vpop.f32.mrb[0].mxu0
  %372 = vdwg.mxu0
  %v373 = vld [vmem:[%s4] sm:$0xff]
  %v374 = vld [vmem:[%s4 + $0x8] sm:$0xff]
  %vm375 = vcmask 130048
  %v377 = vsel %vm375, %v360, 0
  %v380 = vsel %vm375, %v365, 0
  %v383 = vsel %vm375, %v370, 0
  %385 = vmatprep.subr.mxu0 0.0
  %386 = vmatpush1.msra.mxu0 %v373
  %387 = vmatprep.subr.mxu0 0.0
  %388 = vmatpush1.msra.mxu0 %v374
  %389 = vmatprep.subr.mxu0 0.0
  %390 = vmatpush1.msra.mxu0 0.0
  %391 = vmatprep.subr.mxu0 0.0
  %392 = vmatpush1.msra.mxu0 0.0
  %393 = vmatprep.subr.mxu0 0.0
  %394 = vmatpush1.msra.mxu0 0.0
  %395 = vmatprep.subr.mxu0 0.0
  %396 = vmatpush1.msra.mxu0 0.0
  %397 = vmatprep.subr.mxu0 0.0
  %398 = vmatpush1.msra.mxu0 0.0
  %399 = vmatprep.subr.mxu0 0.0
  %400 = vmatpush1.msra.mxu0 0.0
  %401 = vmatprep.subr.mxu0 0.0
  %402 = vmatpush1.msra.mxu0 0.0
  %403 = vmatprep.subr.mxu0 0.0
  %404 = vmatpush1.msra.mxu0 0.0
  %405 = vmatprep.subr.mxu0 0.0
  %406 = vmatpush1.msra.mxu0 0.0
  %407 = vmatprep.subr.mxu0 0.0
  %408 = vmatpush1.msra.mxu0 0.0
  %409 = vmatprep.subr.mxu0 0.0
  %410 = vmatpush1.msra.mxu0 0.0
  %411 = vmatprep.subr.mxu0 0.0
  %412 = vmatpush1.msra.mxu0 0.0
  %413 = vmatprep.subr.mxu0 0.0
  %414 = vmatpush1.msra.mxu0 0.0
  %415 = vmatprep.subr.mxu0 0.0
  %416 = vmatpush1.msra.mxu0 0.0
  %417 = vmatprep.subr.mxu0 0.0
  %418 = vmatpush1.msra.mxu0 0.0
  %419 = vmatprep.subr.mxu0 0.0
  %420 = vmatpush1.msra.mxu0 0.0
  %421 = vmatprep.subr.mxu0 0.0
  %422 = vmatpush1.msra.mxu0 0.0
  %423 = vmatprep.subr.mxu0 0.0
  %424 = vmatpush1.msra.mxu0 0.0
  %425 = vmatprep.subr.mxu0 0.0
  %426 = vmatpush1.msra.mxu0 0.0
  %427 = vmatprep.subr.mxu0 0.0
  %428 = vmatpush1.msra.mxu0 0.0
  %429 = vmatprep.subr.mxu0 0.0
  %430 = vmatpush1.msra.mxu0 0.0
  %431 = vmatprep.subr.mxu0 0.0
  %432 = vmatpush1.msra.mxu0 0.0
  %433 = vmatprep.subr.mxu0 0.0
  %434 = vmatpush1.msra.mxu0 0.0
  %435 = vmatprep.subr.mxu0 0.0
  %436 = vmatpush1.msra.mxu0 0.0
  %437 = vmatprep.subr.mxu0 0.0
  %438 = vmatpush1.msra.mxu0 0.0
  %439 = vmatprep.subr.mxu0 0.0
  %440 = vmatpush1.msra.mxu0 0.0
  %441 = vmatprep.subr.mxu0 0.0
  %442 = vmatpush1.msra.mxu0 0.0
  %443 = vmatprep.subr.mxu0 0.0
  %444 = vmatpush1.msra.mxu0 0.0
  %445 = vmatprep.subr.mxu0 0.0
  %446 = vmatpush1.msra.mxu0 0.0
  %447 = vmatprep.subr.mxu0 0.0
  %448 = vmatpush1.msra.mxu0 0.0
  %449 = vmatprep.mubr.f32.mxu0 0.0
  %450 = vmatmul.mubr.f32.gmra.mrb[0].mxu0 %v377
  %v451 = vpop.f32.mrb[0].mxu0
  %v452 = vadd.f32 0.0, %v451
  %v453 = vpop.f32.mrb[0].mxu0
  %454 = vmatprep.mubr.f32.mxu0 0.0
  %455 = vmatmul.mubr.f32.gmra.mrb[0].mxu0 %v380
  %v456 = vpop.f32.mrb[0].mxu0
  %v457 = vadd.f32 0.0, %v456
  %v458 = vpop.f32.mrb[0].mxu0
  %459 = vmatprep.mubr.f32.mxu0 0.0
  %460 = vmatmul.mubr.f32.gmra.mrb[0].mxu0 %v383
  %v461 = vpop.f32.mrb[0].mxu0
  %v462 = vadd.f32 0.0, %v461
  %v463 = vpop.f32.mrb[0].mxu0
  %464 = vdwg.mxu0
  %v465 = vadd.f32 %v275, %v452
  %v466 = vadd.f32 %v275, %v457
  %v467 = vadd.f32 %v275, %v462
  %s468 = scalar_lea.vmem %s6, 24
  %v469 = vld [vmem:[%s468] sm:$0xff]
  %v470 = vld [vmem:[%s468 + $0x8] sm:$0xff]
  %v471 = vld [vmem:[%s468 + $0x10] sm:$0x3]
  %v473 = vsel %vm279, %v469, 0
  %v476 = vsel %vm279, %v470, 0
  %v479 = vsel %vm279, %v471, 0
  %481 = vmatprep.subr.mxu0 0.0
  %482 = vmatpush1.msra.mxu0 %v255
  %483 = vmatprep.subr.mxu0 0.0
  %484 = vmatpush1.msra.mxu0 %v256
  %485 = vmatprep.subr.mxu0 0.0
  %486 = vmatpush1.msra.mxu0 %v257
  %487 = vmatprep.subr.mxu0 0.0
  %488 = vmatpush1.msra.mxu0 %v258
  %489 = vmatprep.subr.mxu0 0.0
  %490 = vmatpush1.msra.mxu0 %v259
  %491 = vmatprep.subr.mxu0 0.0
  %492 = vmatpush1.msra.mxu0 %v260
  %493 = vmatprep.subr.mxu0 0.0
  %494 = vmatpush1.msra.mxu0 %v261
  %495 = vmatprep.subr.mxu0 0.0
  %496 = vmatpush1.msra.mxu0 %v262
  %497 = vmatprep.subr.mxu0 0.0
  %498 = vmatpush1.msra.mxu0 %v263
  %499 = vmatprep.subr.mxu0 0.0
  %500 = vmatpush1.msra.mxu0 %v264
  %501 = vmatprep.subr.mxu0 0.0
  %502 = vmatpush1.msra.mxu0 %v265
  %503 = vmatprep.subr.mxu0 0.0
  %504 = vmatpush1.msra.mxu0 %v266
  %505 = vmatprep.subr.mxu0 0.0
  %506 = vmatpush1.msra.mxu0 %v291
  %507 = vmatprep.subr.mxu0 0.0
  %508 = vmatpush1.msra.mxu0 0.0
  %509 = vmatprep.subr.mxu0 0.0
  %510 = vmatpush1.msra.mxu0 0.0
  %511 = vmatprep.subr.mxu0 0.0
  %512 = vmatpush1.msra.mxu0 0.0
  %513 = vmatprep.subr.mxu0 0.0
  %514 = vmatpush1.msra.mxu0 0.0
  %515 = vmatprep.subr.mxu0 0.0
  %516 = vmatpush1.msra.mxu0 0.0
  %517 = vmatprep.subr.mxu0 0.0
  %518 = vmatpush1.msra.mxu0 0.0
  %519 = vmatprep.subr.mxu0 0.0
  %520 = vmatpush1.msra.mxu0 0.0
  %521 = vmatprep.subr.mxu0 0.0
  %522 = vmatpush1.msra.mxu0 0.0
  %523 = vmatprep.subr.mxu0 0.0
  %524 = vmatpush1.msra.mxu0 0.0
  %525 = vmatprep.subr.mxu0 0.0
  %526 = vmatpush1.msra.mxu0 0.0
  %527 = vmatprep.subr.mxu0 0.0
  %528 = vmatpush1.msra.mxu0 0.0
  %529 = vmatprep.subr.mxu0 0.0
  %530 = vmatpush1.msra.mxu0 0.0
  %531 = vmatprep.subr.mxu0 0.0
  %532 = vmatpush1.msra.mxu0 0.0
  %533 = vmatprep.subr.mxu0 0.0
  %534 = vmatpush1.msra.mxu0 0.0
  %535 = vmatprep.subr.mxu0 0.0
  %536 = vmatpush1.msra.mxu0 0.0
  %537 = vmatprep.subr.mxu0 0.0
  %538 = vmatpush1.msra.mxu0 0.0
  %539 = vmatprep.subr.mxu0 0.0
  %540 = vmatpush1.msra.mxu0 0.0
  %541 = vmatprep.subr.mxu0 0.0
  %542 = vmatpush1.msra.mxu0 0.0
  %543 = vmatprep.subr.mxu0 0.0
  %544 = vmatpush1.msra.mxu0 0.0
  %545 = vmatprep.mubr.f32.mxu0 0.0
  %546 = vmatmul.mubr.f32.gmra.mrb[0].mxu0 %v473
  %v547 = vpop.f32.mrb[0].mxu0
  %v548 = vadd.f32 0.0, %v547
  %v549 = vpop.f32.mrb[0].mxu0
  %550 = vmatprep.mubr.f32.mxu0 0.0
  %551 = vmatmul.mubr.f32.gmra.mrb[0].mxu0 %v476
  %v552 = vpop.f32.mrb[0].mxu0
  %v553 = vadd.f32 0.0, %v552
  %v554 = vpop.f32.mrb[0].mxu0
  %555 = vmatprep.mubr.f32.mxu0 0.0
  %556 = vmatmul.mubr.f32.gmra.mrb[0].mxu0 %v479
  %v557 = vpop.f32.mrb[0].mxu0
  %v558 = vadd.f32 0.0, %v557
  %v559 = vpop.f32.mrb[0].mxu0
  %560 = vdwg.mxu0
  %s561 = scalar_lea.vmem %s4, 16
  %v562 = vld [vmem:[%s561] sm:$0xff]
  %v563 = vld [vmem:[%s561 + $0x8] sm:$0xff]
  %v565 = vsel %vm375, %v548, 0
  %v568 = vsel %vm375, %v553, 0
  %v571 = vsel %vm375, %v558, 0
  %573 = vmatprep.subr.mxu0 0.0
  %574 = vmatpush1.msra.mxu0 %v562
  %575 = vmatprep.subr.mxu0 0.0
  %576 = vmatpush1.msra.mxu0 %v563
  %577 = vmatprep.subr.mxu0 0.0
  %578 = vmatpush1.msra.mxu0 0.0
  %579 = vmatprep.subr.mxu0 0.0
  %580 = vmatpush1.msra.mxu0 0.0
  %581 = vmatprep.subr.mxu0 0.0
  %582 = vmatpush1.msra.mxu0 0.0
  %583 = vmatprep.subr.mxu0 0.0
  %584 = vmatpush1.msra.mxu0 0.0
  %585 = vmatprep.subr.mxu0 0.0
  %586 = vmatpush1.msra.mxu0 0.0
  %587 = vmatprep.subr.mxu0 0.0
  %588 = vmatpush1.msra.mxu0 0.0
  %589 = vmatprep.subr.mxu0 0.0
  %590 = vmatpush1.msra.mxu0 0.0
  %591 = vmatprep.subr.mxu0 0.0
  %592 = vmatpush1.msra.mxu0 0.0
  %593 = vmatprep.subr.mxu0 0.0
  %594 = vmatpush1.msra.mxu0 0.0
  %595 = vmatprep.subr.mxu0 0.0
  %596 = vmatpush1.msra.mxu0 0.0
  %597 = vmatprep.subr.mxu0 0.0
  %598 = vmatpush1.msra.mxu0 0.0
  %599 = vmatprep.subr.mxu0 0.0
  %600 = vmatpush1.msra.mxu0 0.0
  %601 = vmatprep.subr.mxu0 0.0
  %602 = vmatpush1.msra.mxu0 0.0
  %603 = vmatprep.subr.mxu0 0.0
  %604 = vmatpush1.msra.mxu0 0.0
  %605 = vmatprep.subr.mxu0 0.0
  %606 = vmatpush1.msra.mxu0 0.0
  %607 = vmatprep.subr.mxu0 0.0
  %608 = vmatpush1.msra.mxu0 0.0
  %609 = vmatprep.subr.mxu0 0.0
  %610 = vmatpush1.msra.mxu0 0.0
  %611 = vmatprep.subr.mxu0 0.0
  %612 = vmatpush1.msra.mxu0 0.0
  %613 = vmatprep.subr.mxu0 0.0
  %614 = vmatpush1.msra.mxu0 0.0
  %615 = vmatprep.subr.mxu0 0.0
  %616 = vmatpush1.msra.mxu0 0.0
  %617 = vmatprep.subr.mxu0 0.0
  %618 = vmatpush1.msra.mxu0 0.0
  %619 = vmatprep.subr.mxu0 0.0
  %620 = vmatpush1.msra.mxu0 0.0
  %621 = vmatprep.subr.mxu0 0.0
  %622 = vmatpush1.msra.mxu0 0.0
  %623 = vmatprep.subr.mxu0 0.0
  %624 = vmatpush1.msra.mxu0 0.0
  %625 = vmatprep.subr.mxu0 0.0
  %626 = vmatpush1.msra.mxu0 0.0
  %627 = vmatprep.subr.mxu0 0.0
  %628 = vmatpush1.msra.mxu0 0.0
  %629 = vmatprep.subr.mxu0 0.0
  %630 = vmatpush1.msra.mxu0 0.0
  %631 = vmatprep.subr.mxu0 0.0
  %632 = vmatpush1.msra.mxu0 0.0
  %633 = vmatprep.subr.mxu0 0.0
  %634 = vmatpush1.msra.mxu0 0.0
  %635 = vmatprep.subr.mxu0 0.0
  %636 = vmatpush1.msra.mxu0 0.0
  %637 = vmatprep.mubr.f32.mxu0 0.0
  %638 = vmatmul.mubr.f32.gmra.mrb[0].mxu0 %v565
  %v639 = vpop.f32.mrb[0].mxu0
  %v640 = vadd.f32 0.0, %v639
  %v641 = vpop.f32.mrb[0].mxu0
  %642 = vmatprep.mubr.f32.mxu0 0.0
  %643 = vmatmul.mubr.f32.gmra.mrb[0].mxu0 %v568
  %v644 = vpop.f32.mrb[0].mxu0
  %v645 = vadd.f32 0.0, %v644
  %v646 = vpop.f32.mrb[0].mxu0
  %647 = vmatprep.mubr.f32.mxu0 0.0
  %648 = vmatmul.mubr.f32.gmra.mrb[0].mxu0 %v571
  %v649 = vpop.f32.mrb[0].mxu0
  %v650 = vadd.f32 0.0, %v649
  %v651 = vpop.f32.mrb[0].mxu0
  %652 = vdwg.mxu0
  %v653 = vadd.f32 %v465, %v640
  %v654 = vadd.f32 %v466, %v645
  %v655 = vadd.f32 %v467, %v650
  %s656 = scalar_lea.vmem %s6, 48
  %v657 = vld [vmem:[%s656] sm:$0xff]
  %v658 = vld [vmem:[%s656 + $0x8] sm:$0xff]
  %v659 = vld [vmem:[%s656 + $0x10] sm:$0x3]
  %v661 = vsel %vm279, %v657, 0
  %v664 = vsel %vm279, %v658, 0
  %v667 = vsel %vm279, %v659, 0
  %669 = vmatprep.subr.mxu0 0.0
  %670 = vmatpush1.msra.mxu0 %v255
  %671 = vmatprep.subr.mxu0 0.0
  %672 = vmatpush1.msra.mxu0 %v256
  %673 = vmatprep.subr.mxu0 0.0
  %674 = vmatpush1.msra.mxu0 %v257
  %675 = vmatprep.subr.mxu0 0.0
  %676 = vmatpush1.msra.mxu0 %v258
  %677 = vmatprep.subr.mxu0 0.0
  %678 = vmatpush1.msra.mxu0 %v259
  %679 = vmatprep.subr.mxu0 0.0
  %680 = vmatpush1.msra.mxu0 %v260
  %681 = vmatprep.subr.mxu0 0.0
  %682 = vmatpush1.msra.mxu0 %v261
  %683 = vmatprep.subr.mxu0 0.0
  %684 = vmatpush1.msra.mxu0 %v262
  %685 = vmatprep.subr.mxu0 0.0
  %686 = vmatpush1.msra.mxu0 %v263
  %687 = vmatprep.subr.mxu0 0.0
  %688 = vmatpush1.msra.mxu0 %v264
  %689 = vmatprep.subr.mxu0 0.0
  %690 = vmatpush1.msra.mxu0 %v265
  %691 = vmatprep.subr.mxu0 0.0
  %692 = vmatpush1.msra.mxu0 %v266
  %693 = vmatprep.subr.mxu0 0.0
  %694 = vmatpush1.msra.mxu0 %v291
  %695 = vmatprep.subr.mxu0 0.0
  %696 = vmatpush1.msra.mxu0 0.0
  %697 = vmatprep.subr.mxu0 0.0
  %698 = vmatpush1.msra.mxu0 0.0
  %699 = vmatprep.subr.mxu0 0.0
  %700 = vmatpush1.msra.mxu0 0.0
  %701 = vmatprep.subr.mxu0 0.0
  %702 = vmatpush1.msra.mxu0 0.0
  %703 = vmatprep.subr.mxu0 0.0
  %704 = vmatpush1.msra.mxu0 0.0
  %705 = vmatprep.subr.mxu0 0.0
  %706 = vmatpush1.msra.mxu0 0.0
  %707 = vmatprep.subr.mxu0 0.0
  %708 = vmatpush1.msra.mxu0 0.0
  %709 = vmatprep.subr.mxu0 0.0
  %710 = vmatpush1.msra.mxu0 0.0
  %711 = vmatprep.subr.mxu0 0.0
  %712 = vmatpush1.msra.mxu0 0.0
  %713 = vmatprep.subr.mxu0 0.0
  %714 = vmatpush1.msra.mxu0 0.0
  %715 = vmatprep.subr.mxu0 0.0
  %716 = vmatpush1.msra.mxu0 0.0
  %717 = vmatprep.subr.mxu0 0.0
  %718 = vmatpush1.msra.mxu0 0.0
  %719 = vmatprep.subr.mxu0 0.0
  %720 = vmatpush1.msra.mxu0 0.0
  %721 = vmatprep.subr.mxu0 0.0
  %722 = vmatpush1.msra.mxu0 0.0
  %723 = vmatprep.subr.mxu0 0.0
  %724 = vmatpush1.msra.mxu0 0.0
  %725 = vmatprep.subr.mxu0 0.0
  %726 = vmatpush1.msra.mxu0 0.0
  %727 = vmatprep.subr.mxu0 0.0
  %728 = vmatpush1.msra.mxu0 0.0
  %729 = vmatprep.subr.mxu0 0.0
  %730 = vmatpush1.msra.mxu0 0.0
  %731 = vmatprep.subr.mxu0 0.0
  %732 = vmatpush1.msra.mxu0 0.0
  %733 = vmatprep.mubr.f32.mxu0 0.0
  %734 = vmatmul.mubr.f32.gmra.mrb[0].mxu0 %v661
  %v735 = vpop.f32.mrb[0].mxu0
  %v736 = vadd.f32 0.0, %v735
  %v737 = vpop.f32.mrb[0].mxu0
  %738 = vmatprep.mubr.f32.mxu0 0.0
  %739 = vmatmul.mubr.f32.gmra.mrb[0].mxu0 %v664
  %v740 = vpop.f32.mrb[0].mxu0
  %v741 = vadd.f32 0.0, %v740
  %v742 = vpop.f32.mrb[0].mxu0
  %743 = vmatprep.mubr.f32.mxu0 0.0
  %744 = vmatmul.mubr.f32.gmra.mrb[0].mxu0 %v667
  %v745 = vpop.f32.mrb[0].mxu0
  %v746 = vadd.f32 0.0, %v745
  %v747 = vpop.f32.mrb[0].mxu0
  %748 = vdwg.mxu0
  %s749 = scalar_lea.vmem %s4, 32
  %v750 = vld [vmem:[%s749] sm:$0xff]
  %v751 = vld [vmem:[%s749 + $0x8] sm:$0xff]
  %v753 = vsel %vm375, %v736, 0
  %v756 = vsel %vm375, %v741, 0
  %v759 = vsel %vm375, %v746, 0
  %761 = vmatprep.subr.mxu0 0.0
  %762 = vmatpush1.msra.mxu0 %v750
  %763 = vmatprep.subr.mxu0 0.0
  %764 = vmatpush1.msra.mxu0 %v751
  %765 = vmatprep.subr.mxu0 0.0
  %766 = vmatpush1.msra.mxu0 0.0
  %767 = vmatprep.subr.mxu0 0.0
  %768 = vmatpush1.msra.mxu0 0.0
  %769 = vmatprep.subr.mxu0 0.0
  %770 = vmatpush1.msra.mxu0 0.0
  %771 = vmatprep.subr.mxu0 0.0
  %772 = vmatpush1.msra.mxu0 0.0
  %773 = vmatprep.subr.mxu0 0.0
  %774 = vmatpush1.msra.mxu0 0.0
  %775 = vmatprep.subr.mxu0 0.0
  %776 = vmatpush1.msra.mxu0 0.0
  %777 = vmatprep.subr.mxu0 0.0
  %778 = vmatpush1.msra.mxu0 0.0
  %779 = vmatprep.subr.mxu0 0.0
  %780 = vmatpush1.msra.mxu0 0.0
  %781 = vmatprep.subr.mxu0 0.0
  %782 = vmatpush1.msra.mxu0 0.0
  %783 = vmatprep.subr.mxu0 0.0
  %784 = vmatpush1.msra.mxu0 0.0
  %785 = vmatprep.subr.mxu0 0.0
  %786 = vmatpush1.msra.mxu0 0.0
  %787 = vmatprep.subr.mxu0 0.0
  %788 = vmatpush1.msra.mxu0 0.0
  %789 = vmatprep.subr.mxu0 0.0
  %790 = vmatpush1.msra.mxu0 0.0
  %791 = vmatprep.subr.mxu0 0.0
  %792 = vmatpush1.msra.mxu0 0.0
  %793 = vmatprep.subr.mxu0 0.0
  %794 = vmatpush1.msra.mxu0 0.0
  %795 = vmatprep.subr.mxu0 0.0
  %796 = vmatpush1.msra.mxu0 0.0
  %797 = vmatprep.subr.mxu0 0.0
  %798 = vmatpush1.msra.mxu0 0.0
  %799 = vmatprep.subr.mxu0 0.0
  %800 = vmatpush1.msra.mxu0 0.0
  %801 = vmatprep.subr.mxu0 0.0
  %802 = vmatpush1.msra.mxu0 0.0
  %803 = vmatprep.subr.mxu0 0.0
  %804 = vmatpush1.msra.mxu0 0.0
  %805 = vmatprep.subr.mxu0 0.0
  %806 = vmatpush1.msra.mxu0 0.0
  %807 = vmatprep.subr.mxu0 0.0
  %808 = vmatpush1.msra.mxu0 0.0
  %809 = vmatprep.subr.mxu0 0.0
  %810 = vmatpush1.msra.mxu0 0.0
  %811 = vmatprep.subr.mxu0 0.0
  %812 = vmatpush1.msra.mxu0 0.0
  %813 = vmatprep.subr.mxu0 0.0
  %814 = vmatpush1.msra.mxu0 0.0
  %815 = vmatprep.subr.mxu0 0.0
  %816 = vmatpush1.msra.mxu0 0.0
  %817 = vmatprep.subr.mxu0 0.0
  %818 = vmatpush1.msra.mxu0 0.0
  %819 = vmatprep.subr.mxu0 0.0
  %820 = vmatpush1.msra.mxu0 0.0
  %821 = vmatprep.subr.mxu0 0.0
  %822 = vmatpush1.msra.mxu0 0.0
  %823 = vmatprep.subr.mxu0 0.0
  %824 = vmatpush1.msra.mxu0 0.0
  %825 = vmatprep.mubr.f32.mxu0 0.0
  %826 = vmatmul.mubr.f32.gmra.mrb[0].mxu0 %v753
  %v827 = vpop.f32.mrb[0].mxu0
  %v828 = vadd.f32 0.0, %v827
  %v829 = vpop.f32.mrb[0].mxu0
  %830 = vmatprep.mubr.f32.mxu0 0.0
  %831 = vmatmul.mubr.f32.gmra.mrb[0].mxu0 %v756
  %v832 = vpop.f32.mrb[0].mxu0
  %v833 = vadd.f32 0.0, %v832
  %v834 = vpop.f32.mrb[0].mxu0
  %835 = vmatprep.mubr.f32.mxu0 0.0
  %836 = vmatmul.mubr.f32.gmra.mrb[0].mxu0 %v759
  %v837 = vpop.f32.mrb[0].mxu0
  %v838 = vadd.f32 0.0, %v837
  %v839 = vpop.f32.mrb[0].mxu0
  %840 = vdwg.mxu0
  %v841 = vadd.f32 %v653, %v828
  %v842 = vadd.f32 %v654, %v833
  %v843 = vadd.f32 %v655, %v838
  %s844 = scalar_lea.vmem %s6, 72
  %v845 = vld [vmem:[%s844] sm:$0xff]
  %v846 = vld [vmem:[%s844 + $0x8] sm:$0xff]
  %v847 = vld [vmem:[%s844 + $0x10] sm:$0x3]
  %v849 = vsel %vm279, %v845, 0
  %v852 = vsel %vm279, %v846, 0
  %v855 = vsel %vm279, %v847, 0
  %857 = vmatprep.subr.mxu0 0.0
  %858 = vmatpush1.msra.mxu0 %v255
  %859 = vmatprep.subr.mxu0 0.0
  %860 = vmatpush1.msra.mxu0 %v256
  %861 = vmatprep.subr.mxu0 0.0
  %862 = vmatpush1.msra.mxu0 %v257
  %863 = vmatprep.subr.mxu0 0.0
  %864 = vmatpush1.msra.mxu0 %v258
  %865 = vmatprep.subr.mxu0 0.0
  %866 = vmatpush1.msra.mxu0 %v259
  %867 = vmatprep.subr.mxu0 0.0
  %868 = vmatpush1.msra.mxu0 %v260
  %869 = vmatprep.subr.mxu0 0.0
  %870 = vmatpush1.msra.mxu0 %v261
  %871 = vmatprep.subr.mxu0 0.0
  %872 = vmatpush1.msra.mxu0 %v262
  %873 = vmatprep.subr.mxu0 0.0
  %874 = vmatpush1.msra.mxu0 %v263
  %875 = vmatprep.subr.mxu0 0.0
  %876 = vmatpush1.msra.mxu0 %v264
  %877 = vmatprep.subr.mxu0 0.0
  %878 = vmatpush1.msra.mxu0 %v265
  %879 = vmatprep.subr.mxu0 0.0
  %880 = vmatpush1.msra.mxu0 %v266
  %881 = vmatprep.subr.mxu0 0.0
  %882 = vmatpush1.msra.mxu0 %v291
  %883 = vmatprep.subr.mxu0 0.0
  %884 = vmatpush1.msra.mxu0 0.0
  %885 = vmatprep.subr.mxu0 0.0
  %886 = vmatpush1.msra.mxu0 0.0
  %887 = vmatprep.subr.mxu0 0.0
  %888 = vmatpush1.msra.mxu0 0.0
  %889 = vmatprep.subr.mxu0 0.0
  %890 = vmatpush1.msra.mxu0 0.0
  %891 = vmatprep.subr.mxu0 0.0
  %892 = vmatpush1.msra.mxu0 0.0
  %893 = vmatprep.subr.mxu0 0.0
  %894 = vmatpush1.msra.mxu0 0.0
  %895 = vmatprep.subr.mxu0 0.0
  %896 = vmatpush1.msra.mxu0 0.0
  %897 = vmatprep.subr.mxu0 0.0
  %898 = vmatpush1.msra.mxu0 0.0
  %899 = vmatprep.subr.mxu0 0.0
  %900 = vmatpush1.msra.mxu0 0.0
  %901 = vmatprep.subr.mxu0 0.0
  %902 = vmatpush1.msra.mxu0 0.0
  %903 = vmatprep.subr.mxu0 0.0
  %904 = vmatpush1.msra.mxu0 0.0
  %905 = vmatprep.subr.mxu0 0.0
  %906 = vmatpush1.msra.mxu0 0.0
  %907 = vmatprep.subr.mxu0 0.0
  %908 = vmatpush1.msra.mxu0 0.0
  %909 = vmatprep.subr.mxu0 0.0
  %910 = vmatpush1.msra.mxu0 0.0
  %911 = vmatprep.subr.mxu0 0.0
  %912 = vmatpush1.msra.mxu0 0.0
  %913 = vmatprep.subr.mxu0 0.0
  %914 = vmatpush1.msra.mxu0 0.0
  %915 = vmatprep.subr.mxu0 0.0
  %916 = vmatpush1.msra.mxu0 0.0
  %917 = vmatprep.subr.mxu0 0.0
  %918 = vmatpush1.msra.mxu0 0.0
  %919 = vmatprep.subr.mxu0 0.0
  %920 = vmatpush1.msra.mxu0 0.0
  %921 = vmatprep.mubr.f32.mxu0 0.0
  %922 = vmatmul.mubr.f32.gmra.mrb[0].mxu0 %v849
  %v923 = vpop.f32.mrb[0].mxu0
  %v924 = vadd.f32 0.0, %v923
  %v925 = vpop.f32.mrb[0].mxu0
  %926 = vmatprep.mubr.f32.mxu0 0.0
  %927 = vmatmul.mubr.f32.gmra.mrb[0].mxu0 %v852
  %v928 = vpop.f32.mrb[0].mxu0
  %v929 = vadd.f32 0.0, %v928
  %v930 = vpop.f32.mrb[0].mxu0
  %931 = vmatprep.mubr.f32.mxu0 0.0
  %932 = vmatmul.mubr.f32.gmra.mrb[0].mxu0 %v855
  %v933 = vpop.f32.mrb[0].mxu0
  %v934 = vadd.f32 0.0, %v933
  %v935 = vpop.f32.mrb[0].mxu0
  %936 = vdwg.mxu0
  %s937 = scalar_lea.vmem %s4, 48
  %v938 = vld [vmem:[%s937] sm:$0xff]
  %v939 = vld [vmem:[%s937 + $0x8] sm:$0xff]
  %v941 = vsel %vm375, %v924, 0
  %v944 = vsel %vm375, %v929, 0
  %v947 = vsel %vm375, %v934, 0
  %949 = vmatprep.subr.mxu0 0.0
  %950 = vmatpush1.msra.mxu0 %v938
  %951 = vmatprep.subr.mxu0 0.0
  %952 = vmatpush1.msra.mxu0 %v939
  %953 = vmatprep.subr.mxu0 0.0
  %954 = vmatpush1.msra.mxu0 0.0
  %955 = vmatprep.subr.mxu0 0.0
  %956 = vmatpush1.msra.mxu0 0.0
  %957 = vmatprep.subr.mxu0 0.0
  %958 = vmatpush1.msra.mxu0 0.0
  %959 = vmatprep.subr.mxu0 0.0
  %960 = vmatpush1.msra.mxu0 0.0
  %961 = vmatprep.subr.mxu0 0.0
  %962 = vmatpush1.msra.mxu0 0.0
  %963 = vmatprep.subr.mxu0 0.0
  %964 = vmatpush1.msra.mxu0 0.0
  %965 = vmatprep.subr.mxu0 0.0
  %966 = vmatpush1.msra.mxu0 0.0
  %967 = vmatprep.subr.mxu0 0.0
  %968 = vmatpush1.msra.mxu0 0.0
  %969 = vmatprep.subr.mxu0 0.0
  %970 = vmatpush1.msra.mxu0 0.0
  %971 = vmatprep.subr.mxu0 0.0
  %972 = vmatpush1.msra.mxu0 0.0
  %973 = vmatprep.subr.mxu0 0.0
  %974 = vmatpush1.msra.mxu0 0.0
  %975 = vmatprep.subr.mxu0 0.0
  %976 = vmatpush1.msra.mxu0 0.0
  %977 = vmatprep.subr.mxu0 0.0
  %978 = vmatpush1.msra.mxu0 0.0
  %979 = vmatprep.subr.mxu0 0.0
  %980 = vmatpush1.msra.mxu0 0.0
  %981 = vmatprep.subr.mxu0 0.0
  %982 = vmatpush1.msra.mxu0 0.0
  %983 = vmatprep.subr.mxu0 0.0
  %984 = vmatpush1.msra.mxu0 0.0
  %985 = vmatprep.subr.mxu0 0.0
  %986 = vmatpush1.msra.mxu0 0.0
  %987 = vmatprep.subr.mxu0 0.0
  %988 = vmatpush1.msra.mxu0 0.0
  %989 = vmatprep.subr.mxu0 0.0
  %990 = vmatpush1.msra.mxu0 0.0
  %991 = vmatprep.subr.mxu0 0.0
  %992 = vmatpush1.msra.mxu0 0.0
  %993 = vmatprep.subr.mxu0 0.0
  %994 = vmatpush1.msra.mxu0 0.0
  %995 = vmatprep.subr.mxu0 0.0
  %996 = vmatpush1.msra.mxu0 0.0
  %997 = vmatprep.subr.mxu0 0.0
  %998 = vmatpush1.msra.mxu0 0.0
  %999 = vmatprep.subr.mxu0 0.0
  %1000 = vmatpush1.msra.mxu0 0.0
  %1001 = vmatprep.subr.mxu0 0.0
  %1002 = vmatpush1.msra.mxu0 0.0
  %1003 = vmatprep.subr.mxu0 0.0
  %1004 = vmatpush1.msra.mxu0 0.0
  %1005 = vmatprep.subr.mxu0 0.0
  %1006 = vmatpush1.msra.mxu0 0.0
  %1007 = vmatprep.subr.mxu0 0.0
  %1008 = vmatpush1.msra.mxu0 0.0
  %1009 = vmatprep.subr.mxu0 0.0
  %1010 = vmatpush1.msra.mxu0 0.0
  %1011 = vmatprep.subr.mxu0 0.0
  %1012 = vmatpush1.msra.mxu0 0.0
  %1013 = vmatprep.mubr.f32.mxu0 0.0
  %1014 = vmatmul.mubr.f32.gmra.mrb[0].mxu0 %v941
  %v1015 = vpop.f32.mrb[0].mxu0
  %v1016 = vadd.f32 0.0, %v1015
  %v1017 = vpop.f32.mrb[0].mxu0
  %1018 = vmatprep.mubr.f32.mxu0 0.0
  %1019 = vmatmul.mubr.f32.gmra.mrb[0].mxu0 %v944
  %v1020 = vpop.f32.mrb[0].mxu0
  %v1021 = vadd.f32 0.0, %v1020
  %v1022 = vpop.f32.mrb[0].mxu0
  %1023 = vmatprep.mubr.f32.mxu0 0.0
  %1024 = vmatmul.mubr.f32.gmra.mrb[0].mxu0 %v947
  %v1025 = vpop.f32.mrb[0].mxu0
  %v1026 = vadd.f32 0.0, %v1025
  %v1027 = vpop.f32.mrb[0].mxu0
  %1028 = vdwg.mxu0
  %v1029 = vadd.f32 %v841, %v1016
  %v1030 = vadd.f32 %v842, %v1021
  %v1031 = vadd.f32 %v843, %v1026
  %s1032 = scalar_lea.vmem %s6, 96
  %v1033 = vld [vmem:[%s1032] sm:$0xff]
  %v1034 = vld [vmem:[%s1032 + $0x8] sm:$0xff]
  %v1035 = vld [vmem:[%s1032 + $0x10] sm:$0x3]
  %v1037 = vsel %vm279, %v1033, 0
  %v1040 = vsel %vm279, %v1034, 0
  %v1043 = vsel %vm279, %v1035, 0
  %1045 = vmatprep.subr.mxu0 0.0
  %1046 = vmatpush1.msra.mxu0 %v255
  %1047 = vmatprep.subr.mxu0 0.0
  %1048 = vmatpush1.msra.mxu0 %v256
  %1049 = vmatprep.subr.mxu0 0.0
  %1050 = vmatpush1.msra.mxu0 %v257
  %1051 = vmatprep.subr.mxu0 0.0
  %1052 = vmatpush1.msra.mxu0 %v258
  %1053 = vmatprep.subr.mxu0 0.0
  %1054 = vmatpush1.msra.mxu0 %v259
  %1055 = vmatprep.subr.mxu0 0.0
  %1056 = vmatpush1.msra.mxu0 %v260
  %1057 = vmatprep.subr.mxu0 0.0
  %1058 = vmatpush1.msra.mxu0 %v261
  %1059 = vmatprep.subr.mxu0 0.0
  %1060 = vmatpush1.msra.mxu0 %v262
  %1061 = vmatprep.subr.mxu0 0.0
  %1062 = vmatpush1.msra.mxu0 %v263
  %1063 = vmatprep.subr.mxu0 0.0
  %1064 = vmatpush1.msra.mxu0 %v264
  %1065 = vmatprep.subr.mxu0 0.0
  %1066 = vmatpush1.msra.mxu0 %v265
  %1067 = vmatprep.subr.mxu0 0.0
  %1068 = vmatpush1.msra.mxu0 %v266
  %1069 = vmatprep.subr.mxu0 0.0
  %1070 = vmatpush1.msra.mxu0 %v291
  %1071 = vmatprep.subr.mxu0 0.0
  %1072 = vmatpush1.msra.mxu0 0.0
  %1073 = vmatprep.subr.mxu0 0.0
  %1074 = vmatpush1.msra.mxu0 0.0
  %1075 = vmatprep.subr.mxu0 0.0
  %1076 = vmatpush1.msra.mxu0 0.0
  %1077 = vmatprep.subr.mxu0 0.0
  %1078 = vmatpush1.msra.mxu0 0.0
  %1079 = vmatprep.subr.mxu0 0.0
  %1080 = vmatpush1.msra.mxu0 0.0
  %1081 = vmatprep.subr.mxu0 0.0
  %1082 = vmatpush1.msra.mxu0 0.0
  %1083 = vmatprep.subr.mxu0 0.0
  %1084 = vmatpush1.msra.mxu0 0.0
  %1085 = vmatprep.subr.mxu0 0.0
  %1086 = vmatpush1.msra.mxu0 0.0
  %1087 = vmatprep.subr.mxu0 0.0
  %1088 = vmatpush1.msra.mxu0 0.0
  %1089 = vmatprep.subr.mxu0 0.0
  %1090 = vmatpush1.msra.mxu0 0.0
  %1091 = vmatprep.subr.mxu0 0.0
  %1092 = vmatpush1.msra.mxu0 0.0
  %1093 = vmatprep.subr.mxu0 0.0
  %1094 = vmatpush1.msra.mxu0 0.0
  %1095 = vmatprep.subr.mxu0 0.0
  %1096 = vmatpush1.msra.mxu0 0.0
  %1097 = vmatprep.subr.mxu0 0.0
  %1098 = vmatpush1.msra.mxu0 0.0
  %1099 = vmatprep.subr.mxu0 0.0
  %1100 = vmatpush1.msra.mxu0 0.0
  %1101 = vmatprep.subr.mxu0 0.0
  %1102 = vmatpush1.msra.mxu0 0.0
  %1103 = vmatprep.subr.mxu0 0.0
  %1104 = vmatpush1.msra.mxu0 0.0
  %1105 = vmatprep.subr.mxu0 0.0
  %1106 = vmatpush1.msra.mxu0 0.0
  %1107 = vmatprep.subr.mxu0 0.0
  %1108 = vmatpush1.msra.mxu0 0.0
  %1109 = vmatprep.mubr.f32.mxu0 0.0
  %1110 = vmatmul.mubr.f32.gmra.mrb[0].mxu0 %v1037
  %v1111 = vpop.f32.mrb[0].mxu0
  %v1112 = vadd.f32 0.0, %v1111
  %v1113 = vpop.f32.mrb[0].mxu0
  %1114 = vmatprep.mubr.f32.mxu0 0.0
  %1115 = vmatmul.mubr.f32.gmra.mrb[0].mxu0 %v1040
  %v1116 = vpop.f32.mrb[0].mxu0
  %v1117 = vadd.f32 0.0, %v1116
  %v1118 = vpop.f32.mrb[0].mxu0
  %1119 = vmatprep.mubr.f32.mxu0 0.0
  %1120 = vmatmul.mubr.f32.gmra.mrb[0].mxu0 %v1043
  %v1121 = vpop.f32.mrb[0].mxu0
  %v1122 = vadd.f32 0.0, %v1121
  %v1123 = vpop.f32.mrb[0].mxu0
  %1124 = vdwg.mxu0
  %s1125 = scalar_lea.vmem %s4, 64
  %v1126 = vld [vmem:[%s1125] sm:$0xff]
  %v1127 = vld [vmem:[%s1125 + $0x8] sm:$0xff]
  %v1129 = vsel %vm375, %v1112, 0
  %v1132 = vsel %vm375, %v1117, 0
  %v1135 = vsel %vm375, %v1122, 0
  %1137 = vmatprep.subr.mxu0 0.0
  %1138 = vmatpush1.msra.mxu0 %v1126
  %1139 = vmatprep.subr.mxu0 0.0
  %1140 = vmatpush1.msra.mxu0 %v1127
  %1141 = vmatprep.subr.mxu0 0.0
  %1142 = vmatpush1.msra.mxu0 0.0
  %1143 = vmatprep.subr.mxu0 0.0
  %1144 = vmatpush1.msra.mxu0 0.0
  %1145 = vmatprep.subr.mxu0 0.0
  %1146 = vmatpush1.msra.mxu0 0.0
  %1147 = vmatprep.subr.mxu0 0.0
  %1148 = vmatpush1.msra.mxu0 0.0
  %1149 = vmatprep.subr.mxu0 0.0
  %1150 = vmatpush1.msra.mxu0 0.0
  %1151 = vmatprep.subr.mxu0 0.0
  %1152 = vmatpush1.msra.mxu0 0.0
  %1153 = vmatprep.subr.mxu0 0.0
  %1154 = vmatpush1.msra.mxu0 0.0
  %1155 = vmatprep.subr.mxu0 0.0
  %1156 = vmatpush1.msra.mxu0 0.0
  %1157 = vmatprep.subr.mxu0 0.0
  %1158 = vmatpush1.msra.mxu0 0.0
  %1159 = vmatprep.subr.mxu0 0.0
  %1160 = vmatpush1.msra.mxu0 0.0
  %1161 = vmatprep.subr.mxu0 0.0
  %1162 = vmatpush1.msra.mxu0 0.0
  %1163 = vmatprep.subr.mxu0 0.0
  %1164 = vmatpush1.msra.mxu0 0.0
  %1165 = vmatprep.subr.mxu0 0.0
  %1166 = vmatpush1.msra.mxu0 0.0
  %1167 = vmatprep.subr.mxu0 0.0
  %1168 = vmatpush1.msra.mxu0 0.0
  %1169 = vmatprep.subr.mxu0 0.0
  %1170 = vmatpush1.msra.mxu0 0.0
  %1171 = vmatprep.subr.mxu0 0.0
  %1172 = vmatpush1.msra.mxu0 0.0
  %1173 = vmatprep.subr.mxu0 0.0
  %1174 = vmatpush1.msra.mxu0 0.0
  %1175 = vmatprep.subr.mxu0 0.0
  %1176 = vmatpush1.msra.mxu0 0.0
  %1177 = vmatprep.subr.mxu0 0.0
  %1178 = vmatpush1.msra.mxu0 0.0
  %1179 = vmatprep.subr.mxu0 0.0
  %1180 = vmatpush1.msra.mxu0 0.0
  %1181 = vmatprep.subr.mxu0 0.0
  %1182 = vmatpush1.msra.mxu0 0.0
  %1183 = vmatprep.subr.mxu0 0.0
  %1184 = vmatpush1.msra.mxu0 0.0
  %1185 = vmatprep.subr.mxu0 0.0
  %1186 = vmatpush1.msra.mxu0 0.0
  %1187 = vmatprep.subr.mxu0 0.0
  %1188 = vmatpush1.msra.mxu0 0.0
  %1189 = vmatprep.subr.mxu0 0.0
  %1190 = vmatpush1.msra.mxu0 0.0
  %1191 = vmatprep.subr.mxu0 0.0
  %1192 = vmatpush1.msra.mxu0 0.0
  %1193 = vmatprep.subr.mxu0 0.0
  %1194 = vmatpush1.msra.mxu0 0.0
  %1195 = vmatprep.subr.mxu0 0.0
  %1196 = vmatpush1.msra.mxu0 0.0
  %1197 = vmatprep.subr.mxu0 0.0
  %1198 = vmatpush1.msra.mxu0 0.0
  %1199 = vmatprep.subr.mxu0 0.0
  %1200 = vmatpush1.msra.mxu0 0.0
  %1201 = vmatprep.mubr.f32.mxu0 0.0
  %1202 = vmatmul.mubr.f32.gmra.mrb[0].mxu0 %v1129
  %v1203 = vpop.f32.mrb[0].mxu0
  %v1204 = vadd.f32 0.0, %v1203
  %v1205 = vpop.f32.mrb[0].mxu0
  %1206 = vmatprep.mubr.f32.mxu0 0.0
  %1207 = vmatmul.mubr.f32.gmra.mrb[0].mxu0 %v1132
  %v1208 = vpop.f32.mrb[0].mxu0
  %v1209 = vadd.f32 0.0, %v1208
  %v1210 = vpop.f32.mrb[0].mxu0
  %1211 = vmatprep.mubr.f32.mxu0 0.0
  %1212 = vmatmul.mubr.f32.gmra.mrb[0].mxu0 %v1135
  %v1213 = vpop.f32.mrb[0].mxu0
  %v1214 = vadd.f32 0.0, %v1213
  %v1215 = vpop.f32.mrb[0].mxu0
  %1216 = vdwg.mxu0
  %v1217 = vadd.f32 %v1029, %v1204
  %v1218 = vadd.f32 %v1030, %v1209
  %v1219 = vadd.f32 %v1031, %v1214
  %s1220 = scalar_lea.vmem %s6, 120
  %v1221 = vld [vmem:[%s1220] sm:$0xff]
  %v1222 = vld [vmem:[%s1220 + $0x8] sm:$0xff]
  %v1223 = vld [vmem:[%s1220 + $0x10] sm:$0x3]
  %v1225 = vsel %vm279, %v1221, 0
  %v1228 = vsel %vm279, %v1222, 0
  %v1231 = vsel %vm279, %v1223, 0
  %1233 = vmatprep.subr.mxu0 0.0
  %1234 = vmatpush1.msra.mxu0 %v255
  %1235 = vmatprep.subr.mxu0 0.0
  %1236 = vmatpush1.msra.mxu0 %v256
  %1237 = vmatprep.subr.mxu0 0.0
  %1238 = vmatpush1.msra.mxu0 %v257
  %1239 = vmatprep.subr.mxu0 0.0
  %1240 = vmatpush1.msra.mxu0 %v258
  %1241 = vmatprep.subr.mxu0 0.0
  %1242 = vmatpush1.msra.mxu0 %v259
  %1243 = vmatprep.subr.mxu0 0.0
  %1244 = vmatpush1.msra.mxu0 %v260
  %1245 = vmatprep.subr.mxu0 0.0
  %1246 = vmatpush1.msra.mxu0 %v261
  %1247 = vmatprep.subr.mxu0 0.0
  %1248 = vmatpush1.msra.mxu0 %v262
  %1249 = vmatprep.subr.mxu0 0.0
  %1250 = vmatpush1.msra.mxu0 %v263
  %1251 = vmatprep.subr.mxu0 0.0
  %1252 = vmatpush1.msra.mxu0 %v264
  %1253 = vmatprep.subr.mxu0 0.0
  %1254 = vmatpush1.msra.mxu0 %v265
  %1255 = vmatprep.subr.mxu0 0.0
  %1256 = vmatpush1.msra.mxu0 %v266
  %1257 = vmatprep.subr.mxu0 0.0
  %1258 = vmatpush1.msra.mxu0 %v291
  %1259 = vmatprep.subr.mxu0 0.0
  %1260 = vmatpush1.msra.mxu0 0.0
  %1261 = vmatprep.subr.mxu0 0.0
  %1262 = vmatpush1.msra.mxu0 0.0
  %1263 = vmatprep.subr.mxu0 0.0
  %1264 = vmatpush1.msra.mxu0 0.0
  %1265 = vmatprep.subr.mxu0 0.0
  %1266 = vmatpush1.msra.mxu0 0.0
  %1267 = vmatprep.subr.mxu0 0.0
  %1268 = vmatpush1.msra.mxu0 0.0
  %1269 = vmatprep.subr.mxu0 0.0
  %1270 = vmatpush1.msra.mxu0 0.0
  %1271 = vmatprep.subr.mxu0 0.0
  %1272 = vmatpush1.msra.mxu0 0.0
  %1273 = vmatprep.subr.mxu0 0.0
  %1274 = vmatpush1.msra.mxu0 0.0
  %1275 = vmatprep.subr.mxu0 0.0
  %1276 = vmatpush1.msra.mxu0 0.0
  %1277 = vmatprep.subr.mxu0 0.0
  %1278 = vmatpush1.msra.mxu0 0.0
  %1279 = vmatprep.subr.mxu0 0.0
  %1280 = vmatpush1.msra.mxu0 0.0
  %1281 = vmatprep.subr.mxu0 0.0
  %1282 = vmatpush1.msra.mxu0 0.0
  %1283 = vmatprep.subr.mxu0 0.0
  %1284 = vmatpush1.msra.mxu0 0.0
  %1285 = vmatprep.subr.mxu0 0.0
  %1286 = vmatpush1.msra.mxu0 0.0
  %1287 = vmatprep.subr.mxu0 0.0
  %1288 = vmatpush1.msra.mxu0 0.0
  %1289 = vmatprep.subr.mxu0 0.0
  %1290 = vmatpush1.msra.mxu0 0.0
  %1291 = vmatprep.subr.mxu0 0.0
  %1292 = vmatpush1.msra.mxu0 0.0
  %1293 = vmatprep.subr.mxu0 0.0
  %1294 = vmatpush1.msra.mxu0 0.0
  %1295 = vmatprep.subr.mxu0 0.0
  %1296 = vmatpush1.msra.mxu0 0.0
  %1297 = vmatprep.mubr.f32.mxu0 0.0
  %1298 = vmatmul.mubr.f32.gmra.mrb[0].mxu0 %v1225
  %v1299 = vpop.f32.mrb[0].mxu0
  %v1300 = vadd.f32 0.0, %v1299
  %v1301 = vpop.f32.mrb[0].mxu0
  %1302 = vmatprep.mubr.f32.mxu0 0.0
  %1303 = vmatmul.mubr.f32.gmra.mrb[0].mxu0 %v1228
  %v1304 = vpop.f32.mrb[0].mxu0
  %v1305 = vadd.f32 0.0, %v1304
  %v1306 = vpop.f32.mrb[0].mxu0
  %1307 = vmatprep.mubr.f32.mxu0 0.0
  %1308 = vmatmul.mubr.f32.gmra.mrb[0].mxu0 %v1231
  %v1309 = vpop.f32.mrb[0].mxu0
  %v1310 = vadd.f32 0.0, %v1309
  %v1311 = vpop.f32.mrb[0].mxu0
  %1312 = vdwg.mxu0
  %s1313 = scalar_lea.vmem %s4, 80
  %v1314 = vld [vmem:[%s1313] sm:$0xff]
  %v1315 = vld [vmem:[%s1313 + $0x8] sm:$0xff]
  %v1317 = vsel %vm375, %v1300, 0
  %v1320 = vsel %vm375, %v1305, 0
  %v1323 = vsel %vm375, %v1310, 0
  %1325 = vmatprep.subr.mxu0 0.0
  %1326 = vmatpush1.msra.mxu0 %v1314
  %1327 = vmatprep.subr.mxu0 0.0
  %1328 = vmatpush1.msra.mxu0 %v1315
  %1329 = vmatprep.subr.mxu0 0.0
  %1330 = vmatpush1.msra.mxu0 0.0
  %1331 = vmatprep.subr.mxu0 0.0
  %1332 = vmatpush1.msra.mxu0 0.0
  %1333 = vmatprep.subr.mxu0 0.0
  %1334 = vmatpush1.msra.mxu0 0.0
  %1335 = vmatprep.subr.mxu0 0.0
  %1336 = vmatpush1.msra.mxu0 0.0
  %1337 = vmatprep.subr.mxu0 0.0
  %1338 = vmatpush1.msra.mxu0 0.0
  %1339 = vmatprep.subr.mxu0 0.0
  %1340 = vmatpush1.msra.mxu0 0.0
  %1341 = vmatprep.subr.mxu0 0.0
  %1342 = vmatpush1.msra.mxu0 0.0
  %1343 = vmatprep.subr.mxu0 0.0
  %1344 = vmatpush1.msra.mxu0 0.0
  %1345 = vmatprep.subr.mxu0 0.0
  %1346 = vmatpush1.msra.mxu0 0.0
  %1347 = vmatprep.subr.mxu0 0.0
  %1348 = vmatpush1.msra.mxu0 0.0
  %1349 = vmatprep.subr.mxu0 0.0
  %1350 = vmatpush1.msra.mxu0 0.0
  %1351 = vmatprep.subr.mxu0 0.0
  %1352 = vmatpush1.msra.mxu0 0.0
  %1353 = vmatprep.subr.mxu0 0.0
  %1354 = vmatpush1.msra.mxu0 0.0
  %1355 = vmatprep.subr.mxu0 0.0
  %1356 = vmatpush1.msra.mxu0 0.0
  %1357 = vmatprep.subr.mxu0 0.0
  %1358 = vmatpush1.msra.mxu0 0.0
  %1359 = vmatprep.subr.mxu0 0.0
  %1360 = vmatpush1.msra.mxu0 0.0
  %1361 = vmatprep.subr.mxu0 0.0
  %1362 = vmatpush1.msra.mxu0 0.0
  %1363 = vmatprep.subr.mxu0 0.0
  %1364 = vmatpush1.msra.mxu0 0.0
  %1365 = vmatprep.subr.mxu0 0.0
  %1366 = vmatpush1.msra.mxu0 0.0
  %1367 = vmatprep.subr.mxu0 0.0
  %1368 = vmatpush1.msra.mxu0 0.0
  %1369 = vmatprep.subr.mxu0 0.0
  %1370 = vmatpush1.msra.mxu0 0.0
  %1371 = vmatprep.subr.mxu0 0.0
  %1372 = vmatpush1.msra.mxu0 0.0
  %1373 = vmatprep.subr.mxu0 0.0
  %1374 = vmatpush1.msra.mxu0 0.0
  %1375 = vmatprep.subr.mxu0 0.0
  %1376 = vmatpush1.msra.mxu0 0.0
  %1377 = vmatprep.subr.mxu0 0.0
  %1378 = vmatpush1.msra.mxu0 0.0
  %1379 = vmatprep.subr.mxu0 0.0
  %1380 = vmatpush1.msra.mxu0 0.0
  %1381 = vmatprep.subr.mxu0 0.0
  %1382 = vmatpush1.msra.mxu0 0.0
  %1383 = vmatprep.subr.mxu0 0.0
  %1384 = vmatpush1.msra.mxu0 0.0
  %1385 = vmatprep.subr.mxu0 0.0
  %1386 = vmatpush1.msra.mxu0 0.0
  %1387 = vmatprep.subr.mxu0 0.0
  %1388 = vmatpush1.msra.mxu0 0.0
  %1389 = vmatprep.mubr.f32.mxu0 0.0
  %1390 = vmatmul.mubr.f32.gmra.mrb[0].mxu0 %v1317
  %v1391 = vpop.f32.mrb[0].mxu0
  %v1392 = vadd.f32 0.0, %v1391
  %v1393 = vpop.f32.mrb[0].mxu0
  %1394 = vmatprep.mubr.f32.mxu0 0.0
  %1395 = vmatmul.mubr.f32.gmra.mrb[0].mxu0 %v1320
  %v1396 = vpop.f32.mrb[0].mxu0
  %v1397 = vadd.f32 0.0, %v1396
  %v1398 = vpop.f32.mrb[0].mxu0
  %1399 = vmatprep.mubr.f32.mxu0 0.0
  %1400 = vmatmul.mubr.f32.gmra.mrb[0].mxu0 %v1323
  %v1401 = vpop.f32.mrb[0].mxu0
  %v1402 = vadd.f32 0.0, %v1401
  %v1403 = vpop.f32.mrb[0].mxu0
  %1404 = vdwg.mxu0
  %v1405 = vadd.f32 %v1217, %v1392
  %v1406 = vadd.f32 %v1218, %v1397
  %v1407 = vadd.f32 %v1219, %v1402
  %s1408 = scalar_lea.vmem %s6, 144
  %v1409 = vld [vmem:[%s1408] sm:$0xff]
  %v1410 = vld [vmem:[%s1408 + $0x8] sm:$0xff]
  %v1411 = vld [vmem:[%s1408 + $0x10] sm:$0x3]
  %v1413 = vsel %vm279, %v1409, 0
  %v1416 = vsel %vm279, %v1410, 0
  %v1419 = vsel %vm279, %v1411, 0
  %1421 = vmatprep.subr.mxu0 0.0
  %1422 = vmatpush1.msra.mxu0 %v255
  %1423 = vmatprep.subr.mxu0 0.0
  %1424 = vmatpush1.msra.mxu0 %v256
  %1425 = vmatprep.subr.mxu0 0.0
  %1426 = vmatpush1.msra.mxu0 %v257
  %1427 = vmatprep.subr.mxu0 0.0
  %1428 = vmatpush1.msra.mxu0 %v258
  %1429 = vmatprep.subr.mxu0 0.0
  %1430 = vmatpush1.msra.mxu0 %v259
  %1431 = vmatprep.subr.mxu0 0.0
  %1432 = vmatpush1.msra.mxu0 %v260
  %1433 = vmatprep.subr.mxu0 0.0
  %1434 = vmatpush1.msra.mxu0 %v261
  %1435 = vmatprep.subr.mxu0 0.0
  %1436 = vmatpush1.msra.mxu0 %v262
  %1437 = vmatprep.subr.mxu0 0.0
  %1438 = vmatpush1.msra.mxu0 %v263
  %1439 = vmatprep.subr.mxu0 0.0
  %1440 = vmatpush1.msra.mxu0 %v264
  %1441 = vmatprep.subr.mxu0 0.0
  %1442 = vmatpush1.msra.mxu0 %v265
  %1443 = vmatprep.subr.mxu0 0.0
  %1444 = vmatpush1.msra.mxu0 %v266
  %1445 = vmatprep.subr.mxu0 0.0
  %1446 = vmatpush1.msra.mxu0 %v291
  %1447 = vmatprep.subr.mxu0 0.0
  %1448 = vmatpush1.msra.mxu0 0.0
  %1449 = vmatprep.subr.mxu0 0.0
  %1450 = vmatpush1.msra.mxu0 0.0
  %1451 = vmatprep.subr.mxu0 0.0
  %1452 = vmatpush1.msra.mxu0 0.0
  %1453 = vmatprep.subr.mxu0 0.0
  %1454 = vmatpush1.msra.mxu0 0.0
  %1455 = vmatprep.subr.mxu0 0.0
  %1456 = vmatpush1.msra.mxu0 0.0
  %1457 = vmatprep.subr.mxu0 0.0
  %1458 = vmatpush1.msra.mxu0 0.0
  %1459 = vmatprep.subr.mxu0 0.0
  %1460 = vmatpush1.msra.mxu0 0.0
  %1461 = vmatprep.subr.mxu0 0.0
  %1462 = vmatpush1.msra.mxu0 0.0
  %1463 = vmatprep.subr.mxu0 0.0
  %1464 = vmatpush1.msra.mxu0 0.0
  %1465 = vmatprep.subr.mxu0 0.0
  %1466 = vmatpush1.msra.mxu0 0.0
  %1467 = vmatprep.subr.mxu0 0.0
  %1468 = vmatpush1.msra.mxu0 0.0
  %1469 = vmatprep.subr.mxu0 0.0
  %1470 = vmatpush1.msra.mxu0 0.0
  %1471 = vmatprep.subr.mxu0 0.0
  %1472 = vmatpush1.msra.mxu0 0.0
  %1473 = vmatprep.subr.mxu0 0.0
  %1474 = vmatpush1.msra.mxu0 0.0
  %1475 = vmatprep.subr.mxu0 0.0
  %1476 = vmatpush1.msra.mxu0 0.0
  %1477 = vmatprep.subr.mxu0 0.0
  %1478 = vmatpush1.msra.mxu0 0.0
  %1479 = vmatprep.subr.mxu0 0.0
  %1480 = vmatpush1.msra.mxu0 0.0
  %1481 = vmatprep.subr.mxu0 0.0
  %1482 = vmatpush1.msra.mxu0 0.0
  %1483 = vmatprep.subr.mxu0 0.0
  %1484 = vmatpush1.msra.mxu0 0.0
  %1485 = vmatprep.mubr.f32.mxu0 0.0
  %1486 = vmatmul.mubr.f32.gmra.mrb[0].mxu0 %v1413
  %v1487 = vpop.f32.mrb[0].mxu0
  %v1488 = vadd.f32 0.0, %v1487
  %v1489 = vpop.f32.mrb[0].mxu0
  %1490 = vmatprep.mubr.f32.mxu0 0.0
  %1491 = vmatmul.mubr.f32.gmra.mrb[0].mxu0 %v1416
  %v1492 = vpop.f32.mrb[0].mxu0
  %v1493 = vadd.f32 0.0, %v1492
  %v1494 = vpop.f32.mrb[0].mxu0
  %1495 = vmatprep.mubr.f32.mxu0 0.0
  %1496 = vmatmul.mubr.f32.gmra.mrb[0].mxu0 %v1419
  %v1497 = vpop.f32.mrb[0].mxu0
  %v1498 = vadd.f32 0.0, %v1497
  %v1499 = vpop.f32.mrb[0].mxu0
  %1500 = vdwg.mxu0
  %s1501 = scalar_lea.vmem %s4, 96
  %v1502 = vld [vmem:[%s1501] sm:$0xff]
  %v1503 = vld [vmem:[%s1501 + $0x8] sm:$0xff]
  %v1505 = vsel %vm375, %v1488, 0
  %v1508 = vsel %vm375, %v1493, 0
  %v1511 = vsel %vm375, %v1498, 0
  %1513 = vmatprep.subr.mxu0 0.0
  %1514 = vmatpush1.msra.mxu0 %v1502
  %1515 = vmatprep.subr.mxu0 0.0
  %1516 = vmatpush1.msra.mxu0 %v1503
  %1517 = vmatprep.subr.mxu0 0.0
  %1518 = vmatpush1.msra.mxu0 0.0
  %1519 = vmatprep.subr.mxu0 0.0
  %1520 = vmatpush1.msra.mxu0 0.0
  %1521 = vmatprep.subr.mxu0 0.0
  %1522 = vmatpush1.msra.mxu0 0.0
  %1523 = vmatprep.subr.mxu0 0.0
  %1524 = vmatpush1.msra.mxu0 0.0
  %1525 = vmatprep.subr.mxu0 0.0
  %1526 = vmatpush1.msra.mxu0 0.0
  %1527 = vmatprep.subr.mxu0 0.0
  %1528 = vmatpush1.msra.mxu0 0.0
  %1529 = vmatprep.subr.mxu0 0.0
  %1530 = vmatpush1.msra.mxu0 0.0
  %1531 = vmatprep.subr.mxu0 0.0
  %1532 = vmatpush1.msra.mxu0 0.0
  %1533 = vmatprep.subr.mxu0 0.0
  %1534 = vmatpush1.msra.mxu0 0.0
  %1535 = vmatprep.subr.mxu0 0.0
  %1536 = vmatpush1.msra.mxu0 0.0
  %1537 = vmatprep.subr.mxu0 0.0
  %1538 = vmatpush1.msra.mxu0 0.0
  %1539 = vmatprep.subr.mxu0 0.0
  %1540 = vmatpush1.msra.mxu0 0.0
  %1541 = vmatprep.subr.mxu0 0.0
  %1542 = vmatpush1.msra.mxu0 0.0
  %1543 = vmatprep.subr.mxu0 0.0
  %1544 = vmatpush1.msra.mxu0 0.0
  %1545 = vmatprep.subr.mxu0 0.0
  %1546 = vmatpush1.msra.mxu0 0.0
  %1547 = vmatprep.subr.mxu0 0.0
  %1548 = vmatpush1.msra.mxu0 0.0
  %1549 = vmatprep.subr.mxu0 0.0
  %1550 = vmatpush1.msra.mxu0 0.0
  %1551 = vmatprep.subr.mxu0 0.0
  %1552 = vmatpush1.msra.mxu0 0.0
  %1553 = vmatprep.subr.mxu0 0.0
  %1554 = vmatpush1.msra.mxu0 0.0
  %1555 = vmatprep.subr.mxu0 0.0
  %1556 = vmatpush1.msra.mxu0 0.0
  %1557 = vmatprep.subr.mxu0 0.0
  %1558 = vmatpush1.msra.mxu0 0.0
  %1559 = vmatprep.subr.mxu0 0.0
  %1560 = vmatpush1.msra.mxu0 0.0
  %1561 = vmatprep.subr.mxu0 0.0
  %1562 = vmatpush1.msra.mxu0 0.0
  %1563 = vmatprep.subr.mxu0 0.0
  %1564 = vmatpush1.msra.mxu0 0.0
  %1565 = vmatprep.subr.mxu0 0.0
  %1566 = vmatpush1.msra.mxu0 0.0
  %1567 = vmatprep.subr.mxu0 0.0
  %1568 = vmatpush1.msra.mxu0 0.0
  %1569 = vmatprep.subr.mxu0 0.0
  %1570 = vmatpush1.msra.mxu0 0.0
  %1571 = vmatprep.subr.mxu0 0.0
  %1572 = vmatpush1.msra.mxu0 0.0
  %1573 = vmatprep.subr.mxu0 0.0
  %1574 = vmatpush1.msra.mxu0 0.0
  %1575 = vmatprep.subr.mxu0 0.0
  %1576 = vmatpush1.msra.mxu0 0.0
  %1577 = vmatprep.mubr.f32.mxu0 0.0
  %1578 = vmatmul.mubr.f32.gmra.mrb[0].mxu0 %v1505
  %v1579 = vpop.f32.mrb[0].mxu0
  %v1580 = vadd.f32 0.0, %v1579
  %v1581 = vpop.f32.mrb[0].mxu0
  %1582 = vmatprep.mubr.f32.mxu0 0.0
  %1583 = vmatmul.mubr.f32.gmra.mrb[0].mxu0 %v1508
  %v1584 = vpop.f32.mrb[0].mxu0
  %v1585 = vadd.f32 0.0, %v1584
  %v1586 = vpop.f32.mrb[0].mxu0
  %1587 = vmatprep.mubr.f32.mxu0 0.0
  %1588 = vmatmul.mubr.f32.gmra.mrb[0].mxu0 %v1511
  %v1589 = vpop.f32.mrb[0].mxu0
  %v1590 = vadd.f32 0.0, %v1589
  %v1591 = vpop.f32.mrb[0].mxu0
  %1592 = vdwg.mxu0
  %v1593 = vadd.f32 %v1405, %v1580
  %v1594 = vadd.f32 %v1406, %v1585
  %v1595 = vadd.f32 %v1407, %v1590
  %s1596 = scalar_lea.vmem %s6, 168
  %v1597 = vld [vmem:[%s1596] sm:$0xff]
  %v1598 = vld [vmem:[%s1596 + $0x8] sm:$0xff]
  %v1599 = vld [vmem:[%s1596 + $0x10] sm:$0x3]
  %v1601 = vsel %vm279, %v1597, 0
  %v1604 = vsel %vm279, %v1598, 0
  %v1607 = vsel %vm279, %v1599, 0
  %1609 = vmatprep.subr.mxu0 0.0
  %1610 = vmatpush1.msra.mxu0 %v255
  %1611 = vmatprep.subr.mxu0 0.0
  %1612 = vmatpush1.msra.mxu0 %v256
  %1613 = vmatprep.subr.mxu0 0.0
  %1614 = vmatpush1.msra.mxu0 %v257
  %1615 = vmatprep.subr.mxu0 0.0
  %1616 = vmatpush1.msra.mxu0 %v258
  %1617 = vmatprep.subr.mxu0 0.0
  %1618 = vmatpush1.msra.mxu0 %v259
  %1619 = vmatprep.subr.mxu0 0.0
  %1620 = vmatpush1.msra.mxu0 %v260
  %1621 = vmatprep.subr.mxu0 0.0
  %1622 = vmatpush1.msra.mxu0 %v261
  %1623 = vmatprep.subr.mxu0 0.0
  %1624 = vmatpush1.msra.mxu0 %v262
  %1625 = vmatprep.subr.mxu0 0.0
  %1626 = vmatpush1.msra.mxu0 %v263
  %1627 = vmatprep.subr.mxu0 0.0
  %1628 = vmatpush1.msra.mxu0 %v264
  %1629 = vmatprep.subr.mxu0 0.0
  %1630 = vmatpush1.msra.mxu0 %v265
  %1631 = vmatprep.subr.mxu0 0.0
  %1632 = vmatpush1.msra.mxu0 %v266
  %1633 = vmatprep.subr.mxu0 0.0
  %1634 = vmatpush1.msra.mxu0 %v291
  %1635 = vmatprep.subr.mxu0 0.0
  %1636 = vmatpush1.msra.mxu0 0.0
  %1637 = vmatprep.subr.mxu0 0.0
  %1638 = vmatpush1.msra.mxu0 0.0
  %1639 = vmatprep.subr.mxu0 0.0
  %1640 = vmatpush1.msra.mxu0 0.0
  %1641 = vmatprep.subr.mxu0 0.0
  %1642 = vmatpush1.msra.mxu0 0.0
  %1643 = vmatprep.subr.mxu0 0.0
  %1644 = vmatpush1.msra.mxu0 0.0
  %1645 = vmatprep.subr.mxu0 0.0
  %1646 = vmatpush1.msra.mxu0 0.0
  %1647 = vmatprep.subr.mxu0 0.0
  %1648 = vmatpush1.msra.mxu0 0.0
  %1649 = vmatprep.subr.mxu0 0.0
  %1650 = vmatpush1.msra.mxu0 0.0
  %1651 = vmatprep.subr.mxu0 0.0
  %1652 = vmatpush1.msra.mxu0 0.0
  %1653 = vmatprep.subr.mxu0 0.0
  %1654 = vmatpush1.msra.mxu0 0.0
  %1655 = vmatprep.subr.mxu0 0.0
  %1656 = vmatpush1.msra.mxu0 0.0
  %1657 = vmatprep.subr.mxu0 0.0
  %1658 = vmatpush1.msra.mxu0 0.0
  %1659 = vmatprep.subr.mxu0 0.0
  %1660 = vmatpush1.msra.mxu0 0.0
  %1661 = vmatprep.subr.mxu0 0.0
  %1662 = vmatpush1.msra.mxu0 0.0
  %1663 = vmatprep.subr.mxu0 0.0
  %1664 = vmatpush1.msra.mxu0 0.0
  %1665 = vmatprep.subr.mxu0 0.0
  %1666 = vmatpush1.msra.mxu0 0.0
  %1667 = vmatprep.subr.mxu0 0.0
  %1668 = vmatpush1.msra.mxu0 0.0
  %1669 = vmatprep.subr.mxu0 0.0
  %1670 = vmatpush1.msra.mxu0 0.0
  %1671 = vmatprep.subr.mxu0 0.0
  %1672 = vmatpush1.msra.mxu0 0.0
  %1673 = vmatprep.mubr.f32.mxu0 0.0
  %1674 = vmatmul.mubr.f32.gmra.mrb[0].mxu0 %v1601
  %v1675 = vpop.f32.mrb[0].mxu0
  %v1676 = vadd.f32 0.0, %v1675
  %v1677 = vpop.f32.mrb[0].mxu0
  %1678 = vmatprep.mubr.f32.mxu0 0.0
  %1679 = vmatmul.mubr.f32.gmra.mrb[0].mxu0 %v1604
  %v1680 = vpop.f32.mrb[0].mxu0
  %v1681 = vadd.f32 0.0, %v1680
  %v1682 = vpop.f32.mrb[0].mxu0
  %1683 = vmatprep.mubr.f32.mxu0 0.0
  %1684 = vmatmul.mubr.f32.gmra.mrb[0].mxu0 %v1607
  %v1685 = vpop.f32.mrb[0].mxu0
  %v1686 = vadd.f32 0.0, %v1685
  %v1687 = vpop.f32.mrb[0].mxu0
  %1688 = vdwg.mxu0
  %s1689 = scalar_lea.vmem %s4, 112
  %v1690 = vld [vmem:[%s1689] sm:$0xff]
  %v1691 = vld [vmem:[%s1689 + $0x8] sm:$0xff]
  %v1693 = vsel %vm375, %v1676, 0
  %v1696 = vsel %vm375, %v1681, 0
  %v1699 = vsel %vm375, %v1686, 0
  %1701 = vmatprep.subr.mxu0 0.0
  %1702 = vmatpush1.msra.mxu0 %v1690
  %1703 = vmatprep.subr.mxu0 0.0
  %1704 = vmatpush1.msra.mxu0 %v1691
  %1705 = vmatprep.subr.mxu0 0.0
  %1706 = vmatpush1.msra.mxu0 0.0
  %1707 = vmatprep.subr.mxu0 0.0
  %1708 = vmatpush1.msra.mxu0 0.0
  %1709 = vmatprep.subr.mxu0 0.0
  %1710 = vmatpush1.msra.mxu0 0.0
  %1711 = vmatprep.subr.mxu0 0.0
  %1712 = vmatpush1.msra.mxu0 0.0
  %1713 = vmatprep.subr.mxu0 0.0
  %1714 = vmatpush1.msra.mxu0 0.0
  %1715 = vmatprep.subr.mxu0 0.0
  %1716 = vmatpush1.msra.mxu0 0.0
  %1717 = vmatprep.subr.mxu0 0.0
  %1718 = vmatpush1.msra.mxu0 0.0
  %1719 = vmatprep.subr.mxu0 0.0
  %1720 = vmatpush1.msra.mxu0 0.0
  %1721 = vmatprep.subr.mxu0 0.0
  %1722 = vmatpush1.msra.mxu0 0.0
  %1723 = vmatprep.subr.mxu0 0.0
  %1724 = vmatpush1.msra.mxu0 0.0
  %1725 = vmatprep.subr.mxu0 0.0
  %1726 = vmatpush1.msra.mxu0 0.0
  %1727 = vmatprep.subr.mxu0 0.0
  %1728 = vmatpush1.msra.mxu0 0.0
  %1729 = vmatprep.subr.mxu0 0.0
  %1730 = vmatpush1.msra.mxu0 0.0
  %1731 = vmatprep.subr.mxu0 0.0
  %1732 = vmatpush1.msra.mxu0 0.0
  %1733 = vmatprep.subr.mxu0 0.0
  %1734 = vmatpush1.msra.mxu0 0.0
  %1735 = vmatprep.subr.mxu0 0.0
  %1736 = vmatpush1.msra.mxu0 0.0
  %1737 = vmatprep.subr.mxu0 0.0
  %1738 = vmatpush1.msra.mxu0 0.0
  %1739 = vmatprep.subr.mxu0 0.0
  %1740 = vmatpush1.msra.mxu0 0.0
  %1741 = vmatprep.subr.mxu0 0.0
  %1742 = vmatpush1.msra.mxu0 0.0
  %1743 = vmatprep.subr.mxu0 0.0
  %1744 = vmatpush1.msra.mxu0 0.0
  %1745 = vmatprep.subr.mxu0 0.0
  %1746 = vmatpush1.msra.mxu0 0.0
  %1747 = vmatprep.subr.mxu0 0.0
  %1748 = vmatpush1.msra.mxu0 0.0
  %1749 = vmatprep.subr.mxu0 0.0
  %1750 = vmatpush1.msra.mxu0 0.0
  %1751 = vmatprep.subr.mxu0 0.0
  %1752 = vmatpush1.msra.mxu0 0.0
  %1753 = vmatprep.subr.mxu0 0.0
  %1754 = vmatpush1.msra.mxu0 0.0
  %1755 = vmatprep.subr.mxu0 0.0
  %1756 = vmatpush1.msra.mxu0 0.0
  %1757 = vmatprep.subr.mxu0 0.0
  %1758 = vmatpush1.msra.mxu0 0.0
  %1759 = vmatprep.subr.mxu0 0.0
  %1760 = vmatpush1.msra.mxu0 0.0
  %1761 = vmatprep.subr.mxu0 0.0
  %1762 = vmatpush1.msra.mxu0 0.0
  %1763 = vmatprep.subr.mxu0 0.0
  %1764 = vmatpush1.msra.mxu0 0.0
  %1765 = vmatprep.mubr.f32.mxu0 0.0
  %1766 = vmatmul.mubr.f32.gmra.mrb[0].mxu0 %v1693
  %v1767 = vpop.f32.mrb[0].mxu0
  %v1768 = vadd.f32 0.0, %v1767
  %v1769 = vpop.f32.mrb[0].mxu0
  %1770 = vmatprep.mubr.f32.mxu0 0.0
  %1771 = vmatmul.mubr.f32.gmra.mrb[0].mxu0 %v1696
  %v1772 = vpop.f32.mrb[0].mxu0
  %v1773 = vadd.f32 0.0, %v1772
  %v1774 = vpop.f32.mrb[0].mxu0
  %1775 = vmatprep.mubr.f32.mxu0 0.0
  %1776 = vmatmul.mubr.f32.gmra.mrb[0].mxu0 %v1699
  %v1777 = vpop.f32.mrb[0].mxu0
  %v1778 = vadd.f32 0.0, %v1777
  %v1779 = vpop.f32.mrb[0].mxu0
  %1780 = vdwg.mxu0
  %v1781 = vadd.f32 %v1593, %v1768
  %v1782 = vadd.f32 %v1594, %v1773
  %v1783 = vadd.f32 %v1595, %v1778
  %s1784 = scalar_lea.vmem %s6, 192
  %v1785 = vld [vmem:[%s1784] sm:$0xff]
  %v1786 = vld [vmem:[%s1784 + $0x8] sm:$0xff]
  %v1787 = vld [vmem:[%s1784 + $0x10] sm:$0x3]
  %v1789 = vsel %vm279, %v1785, 0
  %v1792 = vsel %vm279, %v1786, 0
  %v1795 = vsel %vm279, %v1787, 0
  %1797 = vmatprep.subr.mxu0 0.0
  %1798 = vmatpush1.msra.mxu0 %v255
  %1799 = vmatprep.subr.mxu0 0.0
  %1800 = vmatpush1.msra.mxu0 %v256
  %1801 = vmatprep.subr.mxu0 0.0
  %1802 = vmatpush1.msra.mxu0 %v257
  %1803 = vmatprep.subr.mxu0 0.0
  %1804 = vmatpush1.msra.mxu0 %v258
  %1805 = vmatprep.subr.mxu0 0.0
  %1806 = vmatpush1.msra.mxu0 %v259
  %1807 = vmatprep.subr.mxu0 0.0
  %1808 = vmatpush1.msra.mxu0 %v260
  %1809 = vmatprep.subr.mxu0 0.0
  %1810 = vmatpush1.msra.mxu0 %v261
  %1811 = vmatprep.subr.mxu0 0.0
  %1812 = vmatpush1.msra.mxu0 %v262
  %1813 = vmatprep.subr.mxu0 0.0
  %1814 = vmatpush1.msra.mxu0 %v263
  %1815 = vmatprep.subr.mxu0 0.0
  %1816 = vmatpush1.msra.mxu0 %v264
  %1817 = vmatprep.subr.mxu0 0.0
  %1818 = vmatpush1.msra.mxu0 %v265
  %1819 = vmatprep.subr.mxu0 0.0
  %1820 = vmatpush1.msra.mxu0 %v266
  %1821 = vmatprep.subr.mxu0 0.0
  %1822 = vmatpush1.msra.mxu0 %v291
  %1823 = vmatprep.subr.mxu0 0.0
  %1824 = vmatpush1.msra.mxu0 0.0
  %1825 = vmatprep.subr.mxu0 0.0
  %1826 = vmatpush1.msra.mxu0 0.0
  %1827 = vmatprep.subr.mxu0 0.0
  %1828 = vmatpush1.msra.mxu0 0.0
  %1829 = vmatprep.subr.mxu0 0.0
  %1830 = vmatpush1.msra.mxu0 0.0
  %1831 = vmatprep.subr.mxu0 0.0
  %1832 = vmatpush1.msra.mxu0 0.0
  %1833 = vmatprep.subr.mxu0 0.0
  %1834 = vmatpush1.msra.mxu0 0.0
  %1835 = vmatprep.subr.mxu0 0.0
  %1836 = vmatpush1.msra.mxu0 0.0
  %1837 = vmatprep.subr.mxu0 0.0
  %1838 = vmatpush1.msra.mxu0 0.0
  %1839 = vmatprep.subr.mxu0 0.0
  %1840 = vmatpush1.msra.mxu0 0.0
  %1841 = vmatprep.subr.mxu0 0.0
  %1842 = vmatpush1.msra.mxu0 0.0
  %1843 = vmatprep.subr.mxu0 0.0
  %1844 = vmatpush1.msra.mxu0 0.0
  %1845 = vmatprep.subr.mxu0 0.0
  %1846 = vmatpush1.msra.mxu0 0.0
  %1847 = vmatprep.subr.mxu0 0.0
  %1848 = vmatpush1.msra.mxu0 0.0
  %1849 = vmatprep.subr.mxu0 0.0
  %1850 = vmatpush1.msra.mxu0 0.0
  %1851 = vmatprep.subr.mxu0 0.0
  %1852 = vmatpush1.msra.mxu0 0.0
  %1853 = vmatprep.subr.mxu0 0.0
  %1854 = vmatpush1.msra.mxu0 0.0
  %1855 = vmatprep.subr.mxu0 0.0
  %1856 = vmatpush1.msra.mxu0 0.0
  %1857 = vmatprep.subr.mxu0 0.0
  %1858 = vmatpush1.msra.mxu0 0.0
  %1859 = vmatprep.subr.mxu0 0.0
  %1860 = vmatpush1.msra.mxu0 0.0
  %1861 = vmatprep.mubr.f32.mxu0 0.0
  %1862 = vmatmul.mubr.f32.gmra.mrb[0].mxu0 %v1789
  %v1863 = vpop.f32.mrb[0].mxu0
  %v1864 = vadd.f32 0.0, %v1863
  %v1865 = vpop.f32.mrb[0].mxu0
  %1866 = vmatprep.mubr.f32.mxu0 0.0
  %1867 = vmatmul.mubr.f32.gmra.mrb[0].mxu0 %v1792
  %v1868 = vpop.f32.mrb[0].mxu0
  %v1869 = vadd.f32 0.0, %v1868
  %v1870 = vpop.f32.mrb[0].mxu0
  %1871 = vmatprep.mubr.f32.mxu0 0.0
  %1872 = vmatmul.mubr.f32.gmra.mrb[0].mxu0 %v1795
  %v1873 = vpop.f32.mrb[0].mxu0
  %v1874 = vadd.f32 0.0, %v1873
  %v1875 = vpop.f32.mrb[0].mxu0
  %1876 = vdwg.mxu0
  %s1877 = scalar_lea.vmem %s4, 128
  %v1878 = vld [vmem:[%s1877] sm:$0xff]
  %v1879 = vld [vmem:[%s1877 + $0x8] sm:$0xff]
  %v1881 = vsel %vm375, %v1864, 0
  %v1884 = vsel %vm375, %v1869, 0
  %v1887 = vsel %vm375, %v1874, 0
  %1889 = vmatprep.subr.mxu0 0.0
  %1890 = vmatpush1.msra.mxu0 %v1878
  %1891 = vmatprep.subr.mxu0 0.0
  %1892 = vmatpush1.msra.mxu0 %v1879
  %1893 = vmatprep.subr.mxu0 0.0
  %1894 = vmatpush1.msra.mxu0 0.0
  %1895 = vmatprep.subr.mxu0 0.0
  %1896 = vmatpush1.msra.mxu0 0.0
  %1897 = vmatprep.subr.mxu0 0.0
  %1898 = vmatpush1.msra.mxu0 0.0
  %1899 = vmatprep.subr.mxu0 0.0
  %1900 = vmatpush1.msra.mxu0 0.0
  %1901 = vmatprep.subr.mxu0 0.0
  %1902 = vmatpush1.msra.mxu0 0.0
  %1903 = vmatprep.subr.mxu0 0.0
  %1904 = vmatpush1.msra.mxu0 0.0
  %1905 = vmatprep.subr.mxu0 0.0
  %1906 = vmatpush1.msra.mxu0 0.0
  %1907 = vmatprep.subr.mxu0 0.0
  %1908 = vmatpush1.msra.mxu0 0.0
  %1909 = vmatprep.subr.mxu0 0.0
  %1910 = vmatpush1.msra.mxu0 0.0
  %1911 = vmatprep.subr.mxu0 0.0
  %1912 = vmatpush1.msra.mxu0 0.0
  %1913 = vmatprep.subr.mxu0 0.0
  %1914 = vmatpush1.msra.mxu0 0.0
  %1915 = vmatprep.subr.mxu0 0.0
  %1916 = vmatpush1.msra.mxu0 0.0
  %1917 = vmatprep.subr.mxu0 0.0
  %1918 = vmatpush1.msra.mxu0 0.0
  %1919 = vmatprep.subr.mxu0 0.0
  %1920 = vmatpush1.msra.mxu0 0.0
  %1921 = vmatprep.subr.mxu0 0.0
  %1922 = vmatpush1.msra.mxu0 0.0
  %1923 = vmatprep.subr.mxu0 0.0
  %1924 = vmatpush1.msra.mxu0 0.0
  %1925 = vmatprep.subr.mxu0 0.0
  %1926 = vmatpush1.msra.mxu0 0.0
  %1927 = vmatprep.subr.mxu0 0.0
  %1928 = vmatpush1.msra.mxu0 0.0
  %1929 = vmatprep.subr.mxu0 0.0
  %1930 = vmatpush1.msra.mxu0 0.0
  %1931 = vmatprep.subr.mxu0 0.0
  %1932 = vmatpush1.msra.mxu0 0.0
  %1933 = vmatprep.subr.mxu0 0.0
  %1934 = vmatpush1.msra.mxu0 0.0
  %1935 = vmatprep.subr.mxu0 0.0
  %1936 = vmatpush1.msra.mxu0 0.0
  %1937 = vmatprep.subr.mxu0 0.0
  %1938 = vmatpush1.msra.mxu0 0.0
  %1939 = vmatprep.subr.mxu0 0.0
  %1940 = vmatpush1.msra.mxu0 0.0
  %1941 = vmatprep.subr.mxu0 0.0
  %1942 = vmatpush1.msra.mxu0 0.0
  %1943 = vmatprep.subr.mxu0 0.0
  %1944 = vmatpush1.msra.mxu0 0.0
  %1945 = vmatprep.subr.mxu0 0.0
  %1946 = vmatpush1.msra.mxu0 0.0
  %1947 = vmatprep.subr.mxu0 0.0
  %1948 = vmatpush1.msra.mxu0 0.0
  %1949 = vmatprep.subr.mxu0 0.0
  %1950 = vmatpush1.msra.mxu0 0.0
  %1951 = vmatprep.subr.mxu0 0.0
  %1952 = vmatpush1.msra.mxu0 0.0
  %1953 = vmatprep.mubr.f32.mxu0 0.0
  %1954 = vmatmul.mubr.f32.gmra.mrb[0].mxu0 %v1881
  %v1955 = vpop.f32.mrb[0].mxu0
  %v1956 = vadd.f32 0.0, %v1955
  %v1957 = vpop.f32.mrb[0].mxu0
  %1958 = vmatprep.mubr.f32.mxu0 0.0
  %1959 = vmatmul.mubr.f32.gmra.mrb[0].mxu0 %v1884
  %v1960 = vpop.f32.mrb[0].mxu0
  %v1961 = vadd.f32 0.0, %v1960
  %v1962 = vpop.f32.mrb[0].mxu0
  %1963 = vmatprep.mubr.f32.mxu0 0.0
  %1964 = vmatmul.mubr.f32.gmra.mrb[0].mxu0 %v1887
  %v1965 = vpop.f32.mrb[0].mxu0
  %v1966 = vadd.f32 0.0, %v1965
  %v1967 = vpop.f32.mrb[0].mxu0
  %1968 = vdwg.mxu0
  %v1969 = vadd.f32 %v1781, %v1956
  %v1970 = vadd.f32 %v1782, %v1961
  %v1971 = vadd.f32 %v1783, %v1966
  %v1972 = vmax.f32 %v1969, 0.0
  %v1973 = vmax.f32 %v1970, 0.0
  %v1974 = vmax.f32 %v1971, 0.0
  %v1975 = vld [vmem:[%s1] sm:$0x3]
  %v1976 = vld [vmem:[%s8] sm:$0x7]
  %v1977 = vld [vmem:[%s9] sm:$0x1]
  %v1979 = vlaneseq
  %v1980 = vshrl.u32 %v1979, 7
  %v1981 = vsub.s32 0, %v1980
  %v1982 = vrot.slane %v1977, %v1981
  %vm1984 = vcmask 23552
  %v1986 = vsel %vm1984, %v1975, 0
  %vm1988 = vcmask 1042432
  %v1990 = vsel %vm1988, %v1976, 0
  %1992 = vmatprep.subr.mxu0 0.0
  %1993 = vmatpush1.msra.mxu0 %v1990
  %1994 = vmatprep.subr.mxu0 0.0
  %1995 = vmatpush1.msra.mxu0 0.0
  %1996 = vmatprep.subr.mxu0 0.0
  %1997 = vmatpush1.msra.mxu0 0.0
  %1998 = vmatprep.subr.mxu0 0.0
  %1999 = vmatpush1.msra.mxu0 0.0
  %2000 = vmatprep.subr.mxu0 0.0
  %2001 = vmatpush1.msra.mxu0 0.0
  %2002 = vmatprep.subr.mxu0 0.0
  %2003 = vmatpush1.msra.mxu0 0.0
  %2004 = vmatprep.subr.mxu0 0.0
  %2005 = vmatpush1.msra.mxu0 0.0
  %2006 = vmatprep.subr.mxu0 0.0
  %2007 = vmatpush1.msra.mxu0 0.0
  %2008 = vmatprep.subr.mxu0 0.0
  %2009 = vmatpush1.msra.mxu0 0.0
  %2010 = vmatprep.subr.mxu0 0.0
  %2011 = vmatpush1.msra.mxu0 0.0
  %2012 = vmatprep.subr.mxu0 0.0
  %2013 = vmatpush1.msra.mxu0 0.0
  %2014 = vmatprep.subr.mxu0 0.0
  %2015 = vmatpush1.msra.mxu0 0.0
  %2016 = vmatprep.subr.mxu0 0.0
  %2017 = vmatpush1.msra.mxu0 0.0
  %2018 = vmatprep.subr.mxu0 0.0
  %2019 = vmatpush1.msra.mxu0 0.0
  %2020 = vmatprep.subr.mxu0 0.0
  %2021 = vmatpush1.msra.mxu0 0.0
  %2022 = vmatprep.subr.mxu0 0.0
  %2023 = vmatpush1.msra.mxu0 0.0
  %2024 = vmatprep.subr.mxu0 0.0
  %2025 = vmatpush1.msra.mxu0 0.0
  %2026 = vmatprep.subr.mxu0 0.0
  %2027 = vmatpush1.msra.mxu0 0.0
  %2028 = vmatprep.subr.mxu0 0.0
  %2029 = vmatpush1.msra.mxu0 0.0
  %2030 = vmatprep.subr.mxu0 0.0
  %2031 = vmatpush1.msra.mxu0 0.0
  %2032 = vmatprep.subr.mxu0 0.0
  %2033 = vmatpush1.msra.mxu0 0.0
  %2034 = vmatprep.subr.mxu0 0.0
  %2035 = vmatpush1.msra.mxu0 0.0
  %2036 = vmatprep.subr.mxu0 0.0
  %2037 = vmatpush1.msra.mxu0 0.0
  %2038 = vmatprep.subr.mxu0 0.0
  %2039 = vmatpush1.msra.mxu0 0.0
  %2040 = vmatprep.subr.mxu0 0.0
  %2041 = vmatpush1.msra.mxu0 0.0
  %2042 = vmatprep.subr.mxu0 0.0
  %2043 = vmatpush1.msra.mxu0 0.0
  %2044 = vmatprep.subr.mxu0 0.0
  %2045 = vmatpush1.msra.mxu0 0.0
  %2046 = vmatprep.subr.mxu0 0.0
  %2047 = vmatpush1.msra.mxu0 0.0
  %2048 = vmatprep.subr.mxu0 0.0
  %2049 = vmatpush1.msra.mxu0 0.0
  %2050 = vmatprep.subr.mxu0 0.0
  %2051 = vmatpush1.msra.mxu0 0.0
  %2052 = vmatprep.subr.mxu0 0.0
  %2053 = vmatpush1.msra.mxu0 0.0
  %2054 = vmatprep.subr.mxu0 0.0
  %2055 = vmatpush1.msra.mxu0 0.0
  %2056 = vmatprep.mubr.f32.mxu0 0.0
  %2057 = vmatmul.mubr.f32.gmra.mrb[0].mxu0 %v1986
  %v2058 = vpop.f32.mrb[0].mxu0
  %v2059 = vadd.f32 %v1982, %v2058
  %v2060 = vpop.f32.mrb[0].mxu0
  %2061 = vdwg.mxu0
  %v2062 = vld [vmem:[%s10] sm:$0x3]
  %vm2063 = vcmask 146432
  %v2065 = vsel %vm2063, %v2062, 0
  %v2068 = vsel %vm289, %v1974, 0
  %2070 = vmatprep.subr.mxu0 0.0
  %2071 = vmatpush1.msra.mxu0 %v1972
  %2072 = vmatprep.subr.mxu0 0.0
  %2073 = vmatpush1.msra.mxu0 %v1973
  %2074 = vmatprep.subr.mxu0 0.0
  %2075 = vmatpush1.msra.mxu0 %v2068
  %2076 = vmatprep.subr.mxu0 0.0
  %2077 = vmatpush1.msra.mxu0 0.0
  %2078 = vmatprep.subr.mxu0 0.0
  %2079 = vmatpush1.msra.mxu0 0.0
  %2080 = vmatprep.subr.mxu0 0.0
  %2081 = vmatpush1.msra.mxu0 0.0
  %2082 = vmatprep.subr.mxu0 0.0
  %2083 = vmatpush1.msra.mxu0 0.0
  %2084 = vmatprep.subr.mxu0 0.0
  %2085 = vmatpush1.msra.mxu0 0.0
  %2086 = vmatprep.subr.mxu0 0.0
  %2087 = vmatpush1.msra.mxu0 0.0
  %2088 = vmatprep.subr.mxu0 0.0
  %2089 = vmatpush1.msra.mxu0 0.0
  %2090 = vmatprep.subr.mxu0 0.0
  %2091 = vmatpush1.msra.mxu0 0.0
  %2092 = vmatprep.subr.mxu0 0.0
  %2093 = vmatpush1.msra.mxu0 0.0
  %2094 = vmatprep.subr.mxu0 0.0
  %2095 = vmatpush1.msra.mxu0 0.0
  %2096 = vmatprep.subr.mxu0 0.0
  %2097 = vmatpush1.msra.mxu0 0.0
  %2098 = vmatprep.subr.mxu0 0.0
  %2099 = vmatpush1.msra.mxu0 0.0
  %2100 = vmatprep.subr.mxu0 0.0
  %2101 = vmatpush1.msra.mxu0 0.0
  %2102 = vmatprep.subr.mxu0 0.0
  %2103 = vmatpush1.msra.mxu0 0.0
  %2104 = vmatprep.subr.mxu0 0.0
  %2105 = vmatpush1.msra.mxu0 0.0
  %2106 = vmatprep.subr.mxu0 0.0
  %2107 = vmatpush1.msra.mxu0 0.0
  %2108 = vmatprep.subr.mxu0 0.0
  %2109 = vmatpush1.msra.mxu0 0.0
  %2110 = vmatprep.subr.mxu0 0.0
  %2111 = vmatpush1.msra.mxu0 0.0
  %2112 = vmatprep.subr.mxu0 0.0
  %2113 = vmatpush1.msra.mxu0 0.0
  %2114 = vmatprep.subr.mxu0 0.0
  %2115 = vmatpush1.msra.mxu0 0.0
  %2116 = vmatprep.subr.mxu0 0.0
  %2117 = vmatpush1.msra.mxu0 0.0
  %2118 = vmatprep.subr.mxu0 0.0
  %2119 = vmatpush1.msra.mxu0 0.0
  %2120 = vmatprep.subr.mxu0 0.0
  %2121 = vmatpush1.msra.mxu0 0.0
  %2122 = vmatprep.subr.mxu0 0.0
  %2123 = vmatpush1.msra.mxu0 0.0
  %2124 = vmatprep.subr.mxu0 0.0
  %2125 = vmatpush1.msra.mxu0 0.0
  %2126 = vmatprep.subr.mxu0 0.0
  %2127 = vmatpush1.msra.mxu0 0.0
  %2128 = vmatprep.subr.mxu0 0.0
  %2129 = vmatpush1.msra.mxu0 0.0
  %2130 = vmatprep.subr.mxu0 0.0
  %2131 = vmatpush1.msra.mxu0 0.0
  %2132 = vmatprep.subr.mxu0 0.0
  %2133 = vmatpush1.msra.mxu0 0.0
  %2134 = vmatprep.mubr.f32.mxu0 0.0
  %2135 = vmatmul.mubr.f32.gmra.mrb[0].mxu0 %v2065
  %v2136 = vpop.f32.mrb[0].mxu0
  %v2137 = vadd.f32 0.0, %v2136
  %v2138 = vpop.f32.mrb[0].mxu0
  %2139 = vdwg.mxu0
  %v2140 = vld [vmem:[%s7] sm:$0xff]
  %v2141 = vld [vmem:[%s7 + $0x8] sm:$0xff]
  %v2142 = vld [vmem:[%s7 + $0x10] sm:$0xff]
  %v2143 = vld [vmem:[%s7 + $0x18] sm:$0xff]
  %vm2144 = vcmask 261120
  %v2146 = vsel %vm2144, %v2137, 0
  %2148 = vmatprep.subr.mxu0 0.0
  %2149 = vmatpush1.msra.mxu0 %v2140
  %2150 = vmatprep.subr.mxu0 0.0
  %2151 = vmatpush1.msra.mxu0 %v2141
  %2152 = vmatprep.subr.mxu0 0.0
  %2153 = vmatpush1.msra.mxu0 %v2142
  %2154 = vmatprep.subr.mxu0 0.0
  %2155 = vmatpush1.msra.mxu0 %v2143
  %2156 = vmatprep.subr.mxu0 0.0
  %2157 = vmatpush1.msra.mxu0 0.0
  %2158 = vmatprep.subr.mxu0 0.0
  %2159 = vmatpush1.msra.mxu0 0.0
  %2160 = vmatprep.subr.mxu0 0.0
  %2161 = vmatpush1.msra.mxu0 0.0
  %2162 = vmatprep.subr.mxu0 0.0
  %2163 = vmatpush1.msra.mxu0 0.0
  %2164 = vmatprep.subr.mxu0 0.0
  %2165 = vmatpush1.msra.mxu0 0.0
  %2166 = vmatprep.subr.mxu0 0.0
  %2167 = vmatpush1.msra.mxu0 0.0
  %2168 = vmatprep.subr.mxu0 0.0
  %2169 = vmatpush1.msra.mxu0 0.0
  %2170 = vmatprep.subr.mxu0 0.0
  %2171 = vmatpush1.msra.mxu0 0.0
  %2172 = vmatprep.subr.mxu0 0.0
  %2173 = vmatpush1.msra.mxu0 0.0
  %2174 = vmatprep.subr.mxu0 0.0
  %2175 = vmatpush1.msra.mxu0 0.0
  %2176 = vmatprep.subr.mxu0 0.0
  %2177 = vmatpush1.msra.mxu0 0.0
  %2178 = vmatprep.subr.mxu0 0.0
  %2179 = vmatpush1.msra.mxu0 0.0
  %2180 = vmatprep.subr.mxu0 0.0
  %2181 = vmatpush1.msra.mxu0 0.0
  %2182 = vmatprep.subr.mxu0 0.0
  %2183 = vmatpush1.msra.mxu0 0.0
  %2184 = vmatprep.subr.mxu0 0.0
  %2185 = vmatpush1.msra.mxu0 0.0
  %2186 = vmatprep.subr.mxu0 0.0
  %2187 = vmatpush1.msra.mxu0 0.0
  %2188 = vmatprep.subr.mxu0 0.0
  %2189 = vmatpush1.msra.mxu0 0.0
  %2190 = vmatprep.subr.mxu0 0.0
  %2191 = vmatpush1.msra.mxu0 0.0
  %2192 = vmatprep.subr.mxu0 0.0
  %2193 = vmatpush1.msra.mxu0 0.0
  %2194 = vmatprep.subr.mxu0 0.0
  %2195 = vmatpush1.msra.mxu0 0.0
  %2196 = vmatprep.subr.mxu0 0.0
  %2197 = vmatpush1.msra.mxu0 0.0
  %2198 = vmatprep.subr.mxu0 0.0
  %2199 = vmatpush1.msra.mxu0 0.0
  %2200 = vmatprep.subr.mxu0 0.0
  %2201 = vmatpush1.msra.mxu0 0.0
  %2202 = vmatprep.subr.mxu0 0.0
  %2203 = vmatpush1.msra.mxu0 0.0
  %2204 = vmatprep.subr.mxu0 0.0
  %2205 = vmatpush1.msra.mxu0 0.0
  %2206 = vmatprep.subr.mxu0 0.0
  %2207 = vmatpush1.msra.mxu0 0.0
  %2208 = vmatprep.subr.mxu0 0.0
  %2209 = vmatpush1.msra.mxu0 0.0
  %2210 = vmatprep.subr.mxu0 0.0
  %2211 = vmatpush1.msra.mxu0 0.0
  %2212 = vmatprep.mubr.f32.mxu0 0.0
  %2213 = vmatmul.mubr.f32.gmra.mrb[0].mxu0 %v2146
  %v2214 = vpop.f32.mrb[0].mxu0
  %v2215 = vadd.f32 0.0, %v2214
  %v2216 = vpop.f32.mrb[0].mxu0
  %2217 = vdwg.mxu0
  %v2218 = vadd.f32 %v2059, %v2215
  %s2219 = scalar_lea.vmem %s10, 2
  %v2220 = vld [vmem:[%s2219] sm:$0x3]
  %v2222 = vsel %vm2063, %v2220, 0
  %2224 = vmatprep.subr.mxu0 0.0
  %2225 = vmatpush1.msra.mxu0 %v1972
  %2226 = vmatprep.subr.mxu0 0.0
  %2227 = vmatpush1.msra.mxu0 %v1973
  %2228 = vmatprep.subr.mxu0 0.0
  %2229 = vmatpush1.msra.mxu0 %v2068
  %2230 = vmatprep.subr.mxu0 0.0
  %2231 = vmatpush1.msra.mxu0 0.0
  %2232 = vmatprep.subr.mxu0 0.0
  %2233 = vmatpush1.msra.mxu0 0.0
  %2234 = vmatprep.subr.mxu0 0.0
  %2235 = vmatpush1.msra.mxu0 0.0
  %2236 = vmatprep.subr.mxu0 0.0
  %2237 = vmatpush1.msra.mxu0 0.0
  %2238 = vmatprep.subr.mxu0 0.0
  %2239 = vmatpush1.msra.mxu0 0.0
  %2240 = vmatprep.subr.mxu0 0.0
  %2241 = vmatpush1.msra.mxu0 0.0
  %2242 = vmatprep.subr.mxu0 0.0
  %2243 = vmatpush1.msra.mxu0 0.0
  %2244 = vmatprep.subr.mxu0 0.0
  %2245 = vmatpush1.msra.mxu0 0.0
  %2246 = vmatprep.subr.mxu0 0.0
  %2247 = vmatpush1.msra.mxu0 0.0
  %2248 = vmatprep.subr.mxu0 0.0
  %2249 = vmatpush1.msra.mxu0 0.0
  %2250 = vmatprep.subr.mxu0 0.0
  %2251 = vmatpush1.msra.mxu0 0.0
  %2252 = vmatprep.subr.mxu0 0.0
  %2253 = vmatpush1.msra.mxu0 0.0
  %2254 = vmatprep.subr.mxu0 0.0
  %2255 = vmatpush1.msra.mxu0 0.0
  %2256 = vmatprep.subr.mxu0 0.0
  %2257 = vmatpush1.msra.mxu0 0.0
  %2258 = vmatprep.subr.mxu0 0.0
  %2259 = vmatpush1.msra.mxu0 0.0
  %2260 = vmatprep.subr.mxu0 0.0
  %2261 = vmatpush1.msra.mxu0 0.0
  %2262 = vmatprep.subr.mxu0 0.0
  %2263 = vmatpush1.msra.mxu0 0.0
  %2264 = vmatprep.subr.mxu0 0.0
  %2265 = vmatpush1.msra.mxu0 0.0
  %2266 = vmatprep.subr.mxu0 0.0
  %2267 = vmatpush1.msra.mxu0 0.0
  %2268 = vmatprep.subr.mxu0 0.0
  %2269 = vmatpush1.msra.mxu0 0.0
  %2270 = vmatprep.subr.mxu0 0.0
  %2271 = vmatpush1.msra.mxu0 0.0
  %2272 = vmatprep.subr.mxu0 0.0
  %2273 = vmatpush1.msra.mxu0 0.0
  %2274 = vmatprep.subr.mxu0 0.0
  %2275 = vmatpush1.msra.mxu0 0.0
  %2276 = vmatprep.subr.mxu0 0.0
  %2277 = vmatpush1.msra.mxu0 0.0
  %2278 = vmatprep.subr.mxu0 0.0
  %2279 = vmatpush1.msra.mxu0 0.0
  %2280 = vmatprep.subr.mxu0 0.0
  %2281 = vmatpush1.msra.mxu0 0.0
  %2282 = vmatprep.subr.mxu0 0.0
  %2283 = vmatpush1.msra.mxu0 0.0
  %2284 = vmatprep.subr.mxu0 0.0
  %2285 = vmatpush1.msra.mxu0 0.0
  %2286 = vmatprep.subr.mxu0 0.0
  %2287 = vmatpush1.msra.mxu0 0.0
  %2288 = vmatprep.mubr.f32.mxu0 0.0
  %2289 = vmatmul.mubr.f32.gmra.mrb[0].mxu0 %v2222
  %v2290 = vpop.f32.mrb[0].mxu0
  %v2291 = vadd.f32 0.0, %v2290
  %v2292 = vpop.f32.mrb[0].mxu0
  %2293 = vdwg.mxu0
  %s2294 = scalar_lea.vmem %s7, 32
  %v2295 = vld [vmem:[%s2294] sm:$0xff]
  %v2296 = vld [vmem:[%s2294 + $0x8] sm:$0xff]
  %v2297 = vld [vmem:[%s2294 + $0x10] sm:$0xff]
  %v2298 = vld [vmem:[%s2294 + $0x18] sm:$0xff]
  %v2300 = vsel %vm2144, %v2291, 0
  %2302 = vmatprep.subr.mxu0 0.0
  %2303 = vmatpush1.msra.mxu0 %v2295
  %2304 = vmatprep.subr.mxu0 0.0
  %2305 = vmatpush1.msra.mxu0 %v2296
  %2306 = vmatprep.subr.mxu0 0.0
  %2307 = vmatpush1.msra.mxu0 %v2297
  %2308 = vmatprep.subr.mxu0 0.0
  %2309 = vmatpush1.msra.mxu0 %v2298
  %2310 = vmatprep.subr.mxu0 0.0
  %2311 = vmatpush1.msra.mxu0 0.0
  %2312 = vmatprep.subr.mxu0 0.0
  %2313 = vmatpush1.msra.mxu0 0.0
  %2314 = vmatprep.subr.mxu0 0.0
  %2315 = vmatpush1.msra.mxu0 0.0
  %2316 = vmatprep.subr.mxu0 0.0
  %2317 = vmatpush1.msra.mxu0 0.0
  %2318 = vmatprep.subr.mxu0 0.0
  %2319 = vmatpush1.msra.mxu0 0.0
  %2320 = vmatprep.subr.mxu0 0.0
  %2321 = vmatpush1.msra.mxu0 0.0
  %2322 = vmatprep.subr.mxu0 0.0
  %2323 = vmatpush1.msra.mxu0 0.0
  %2324 = vmatprep.subr.mxu0 0.0
  %2325 = vmatpush1.msra.mxu0 0.0
  %2326 = vmatprep.subr.mxu0 0.0
  %2327 = vmatpush1.msra.mxu0 0.0
  %2328 = vmatprep.subr.mxu0 0.0
  %2329 = vmatpush1.msra.mxu0 0.0
  %2330 = vmatprep.subr.mxu0 0.0
  %2331 = vmatpush1.msra.mxu0 0.0
  %2332 = vmatprep.subr.mxu0 0.0
  %2333 = vmatpush1.msra.mxu0 0.0
  %2334 = vmatprep.subr.mxu0 0.0
  %2335 = vmatpush1.msra.mxu0 0.0
  %2336 = vmatprep.subr.mxu0 0.0
  %2337 = vmatpush1.msra.mxu0 0.0
  %2338 = vmatprep.subr.mxu0 0.0
  %2339 = vmatpush1.msra.mxu0 0.0
  %2340 = vmatprep.subr.mxu0 0.0
  %2341 = vmatpush1.msra.mxu0 0.0
  %2342 = vmatprep.subr.mxu0 0.0
  %2343 = vmatpush1.msra.mxu0 0.0
  %2344 = vmatprep.subr.mxu0 0.0
  %2345 = vmatpush1.msra.mxu0 0.0
  %2346 = vmatprep.subr.mxu0 0.0
  %2347 = vmatpush1.msra.mxu0 0.0
  %2348 = vmatprep.subr.mxu0 0.0
  %2349 = vmatpush1.msra.mxu0 0.0
  %2350 = vmatprep.subr.mxu0 0.0
  %2351 = vmatpush1.msra.mxu0 0.0
  %2352 = vmatprep.subr.mxu0 0.0
  %2353 = vmatpush1.msra.mxu0 0.0
  %2354 = vmatprep.subr.mxu0 0.0
  %2355 = vmatpush1.msra.mxu0 0.0
  %2356 = vmatprep.subr.mxu0 0.0
  %2357 = vmatpush1.msra.mxu0 0.0
  %2358 = vmatprep.subr.mxu0 0.0
  %2359 = vmatpush1.msra.mxu0 0.0
  %2360 = vmatprep.subr.mxu0 0.0
  %2361 = vmatpush1.msra.mxu0 0.0
  %2362 = vmatprep.subr.mxu0 0.0
  %2363 = vmatpush1.msra.mxu0 0.0
  %2364 = vmatprep.subr.mxu0 0.0
  %2365 = vmatpush1.msra.mxu0 0.0
  %2366 = vmatprep.mubr.f32.mxu0 0.0
  %2367 = vmatmul.mubr.f32.gmra.mrb[0].mxu0 %v2300
  %v2368 = vpop.f32.mrb[0].mxu0
  %v2369 = vadd.f32 0.0, %v2368
  %v2370 = vpop.f32.mrb[0].mxu0
  %2371 = vdwg.mxu0
  %v2372 = vadd.f32 %v2218, %v2369
  %s2373 = scalar_lea.vmem %s10, 4
  %v2374 = vld [vmem:[%s2373] sm:$0x3]
  %v2376 = vsel %vm2063, %v2374, 0
  %2378 = vmatprep.subr.mxu0 0.0
  %2379 = vmatpush1.msra.mxu0 %v1972
  %2380 = vmatprep.subr.mxu0 0.0
  %2381 = vmatpush1.msra.mxu0 %v1973
  %2382 = vmatprep.subr.mxu0 0.0
  %2383 = vmatpush1.msra.mxu0 %v2068
  %2384 = vmatprep.subr.mxu0 0.0
  %2385 = vmatpush1.msra.mxu0 0.0
  %2386 = vmatprep.subr.mxu0 0.0
  %2387 = vmatpush1.msra.mxu0 0.0
  %2388 = vmatprep.subr.mxu0 0.0
  %2389 = vmatpush1.msra.mxu0 0.0
  %2390 = vmatprep.subr.mxu0 0.0
  %2391 = vmatpush1.msra.mxu0 0.0
  %2392 = vmatprep.subr.mxu0 0.0
  %2393 = vmatpush1.msra.mxu0 0.0
  %2394 = vmatprep.subr.mxu0 0.0
  %2395 = vmatpush1.msra.mxu0 0.0
  %2396 = vmatprep.subr.mxu0 0.0
  %2397 = vmatpush1.msra.mxu0 0.0
  %2398 = vmatprep.subr.mxu0 0.0
  %2399 = vmatpush1.msra.mxu0 0.0
  %2400 = vmatprep.subr.mxu0 0.0
  %2401 = vmatpush1.msra.mxu0 0.0
  %2402 = vmatprep.subr.mxu0 0.0
  %2403 = vmatpush1.msra.mxu0 0.0
  %2404 = vmatprep.subr.mxu0 0.0
  %2405 = vmatpush1.msra.mxu0 0.0
  %2406 = vmatprep.subr.mxu0 0.0
  %2407 = vmatpush1.msra.mxu0 0.0
  %2408 = vmatprep.subr.mxu0 0.0
  %2409 = vmatpush1.msra.mxu0 0.0
  %2410 = vmatprep.subr.mxu0 0.0
  %2411 = vmatpush1.msra.mxu0 0.0
  %2412 = vmatprep.subr.mxu0 0.0
  %2413 = vmatpush1.msra.mxu0 0.0
  %2414 = vmatprep.subr.mxu0 0.0
  %2415 = vmatpush1.msra.mxu0 0.0
  %2416 = vmatprep.subr.mxu0 0.0
  %2417 = vmatpush1.msra.mxu0 0.0
  %2418 = vmatprep.subr.mxu0 0.0
  %2419 = vmatpush1.msra.mxu0 0.0
  %2420 = vmatprep.subr.mxu0 0.0
  %2421 = vmatpush1.msra.mxu0 0.0
  %2422 = vmatprep.subr.mxu0 0.0
  %2423 = vmatpush1.msra.mxu0 0.0
  %2424 = vmatprep.subr.mxu0 0.0
  %2425 = vmatpush1.msra.mxu0 0.0
  %2426 = vmatprep.subr.mxu0 0.0
  %2427 = vmatpush1.msra.mxu0 0.0
  %2428 = vmatprep.subr.mxu0 0.0
  %2429 = vmatpush1.msra.mxu0 0.0
  %2430 = vmatprep.subr.mxu0 0.0
  %2431 = vmatpush1.msra.mxu0 0.0
  %2432 = vmatprep.subr.mxu0 0.0
  %2433 = vmatpush1.msra.mxu0 0.0
  %2434 = vmatprep.subr.mxu0 0.0
  %2435 = vmatpush1.msra.mxu0 0.0
  %2436 = vmatprep.subr.mxu0 0.0
  %2437 = vmatpush1.msra.mxu0 0.0
  %2438 = vmatprep.subr.mxu0 0.0
  %2439 = vmatpush1.msra.mxu0 0.0
  %2440 = vmatprep.subr.mxu0 0.0
  %2441 = vmatpush1.msra.mxu0 0.0
  %2442 = vmatprep.mubr.f32.mxu0 0.0
  %2443 = vmatmul.mubr.f32.gmra.mrb[0].mxu0 %v2376
  %v2444 = vpop.f32.mrb[0].mxu0
  %v2445 = vadd.f32 0.0, %v2444
  %v2446 = vpop.f32.mrb[0].mxu0
  %2447 = vdwg.mxu0
  %s2448 = scalar_lea.vmem %s7, 64
  %v2449 = vld [vmem:[%s2448] sm:$0xff]
  %v2450 = vld [vmem:[%s2448 + $0x8] sm:$0xff]
  %v2451 = vld [vmem:[%s2448 + $0x10] sm:$0xff]
  %v2452 = vld [vmem:[%s2448 + $0x18] sm:$0xff]
  %v2454 = vsel %vm2144, %v2445, 0
  %2456 = vmatprep.subr.mxu0 0.0
  %2457 = vmatpush1.msra.mxu0 %v2449
  %2458 = vmatprep.subr.mxu0 0.0
  %2459 = vmatpush1.msra.mxu0 %v2450
  %2460 = vmatprep.subr.mxu0 0.0
  %2461 = vmatpush1.msra.mxu0 %v2451
  %2462 = vmatprep.subr.mxu0 0.0
  %2463 = vmatpush1.msra.mxu0 %v2452
  %2464 = vmatprep.subr.mxu0 0.0
  %2465 = vmatpush1.msra.mxu0 0.0
  %2466 = vmatprep.subr.mxu0 0.0
  %2467 = vmatpush1.msra.mxu0 0.0
  %2468 = vmatprep.subr.mxu0 0.0
  %2469 = vmatpush1.msra.mxu0 0.0
  %2470 = vmatprep.subr.mxu0 0.0
  %2471 = vmatpush1.msra.mxu0 0.0
  %2472 = vmatprep.subr.mxu0 0.0
  %2473 = vmatpush1.msra.mxu0 0.0
  %2474 = vmatprep.subr.mxu0 0.0
  %2475 = vmatpush1.msra.mxu0 0.0
  %2476 = vmatprep.subr.mxu0 0.0
  %2477 = vmatpush1.msra.mxu0 0.0
  %2478 = vmatprep.subr.mxu0 0.0
  %2479 = vmatpush1.msra.mxu0 0.0
  %2480 = vmatprep.subr.mxu0 0.0
  %2481 = vmatpush1.msra.mxu0 0.0
  %2482 = vmatprep.subr.mxu0 0.0
  %2483 = vmatpush1.msra.mxu0 0.0
  %2484 = vmatprep.subr.mxu0 0.0
  %2485 = vmatpush1.msra.mxu0 0.0
  %2486 = vmatprep.subr.mxu0 0.0
  %2487 = vmatpush1.msra.mxu0 0.0
  %2488 = vmatprep.subr.mxu0 0.0
  %2489 = vmatpush1.msra.mxu0 0.0
  %2490 = vmatprep.subr.mxu0 0.0
  %2491 = vmatpush1.msra.mxu0 0.0
  %2492 = vmatprep.subr.mxu0 0.0
  %2493 = vmatpush1.msra.mxu0 0.0
  %2494 = vmatprep.subr.mxu0 0.0
  %2495 = vmatpush1.msra.mxu0 0.0
  %2496 = vmatprep.subr.mxu0 0.0
  %2497 = vmatpush1.msra.mxu0 0.0
  %2498 = vmatprep.subr.mxu0 0.0
  %2499 = vmatpush1.msra.mxu0 0.0
  %2500 = vmatprep.subr.mxu0 0.0
  %2501 = vmatpush1.msra.mxu0 0.0
  %2502 = vmatprep.subr.mxu0 0.0
  %2503 = vmatpush1.msra.mxu0 0.0
  %2504 = vmatprep.subr.mxu0 0.0
  %2505 = vmatpush1.msra.mxu0 0.0
  %2506 = vmatprep.subr.mxu0 0.0
  %2507 = vmatpush1.msra.mxu0 0.0
  %2508 = vmatprep.subr.mxu0 0.0
  %2509 = vmatpush1.msra.mxu0 0.0
  %2510 = vmatprep.subr.mxu0 0.0
  %2511 = vmatpush1.msra.mxu0 0.0
  %2512 = vmatprep.subr.mxu0 0.0
  %2513 = vmatpush1.msra.mxu0 0.0
  %2514 = vmatprep.subr.mxu0 0.0
  %2515 = vmatpush1.msra.mxu0 0.0
  %2516 = vmatprep.subr.mxu0 0.0
  %2517 = vmatpush1.msra.mxu0 0.0
  %2518 = vmatprep.subr.mxu0 0.0
  %2519 = vmatpush1.msra.mxu0 0.0
  %2520 = vmatprep.mubr.f32.mxu0 0.0
  %2521 = vmatmul.mubr.f32.gmra.mrb[0].mxu0 %v2454
  %v2522 = vpop.f32.mrb[0].mxu0
  %v2523 = vadd.f32 0.0, %v2522
  %v2524 = vpop.f32.mrb[0].mxu0
  %2525 = vdwg.mxu0
  %v2526 = vadd.f32 %v2372, %v2523
  %s2527 = scalar_lea.vmem %s10, 6
  %v2528 = vld [vmem:[%s2527] sm:$0x3]
  %v2530 = vsel %vm2063, %v2528, 0
  %2532 = vmatprep.subr.mxu0 0.0
  %2533 = vmatpush1.msra.mxu0 %v1972
  %2534 = vmatprep.subr.mxu0 0.0
  %2535 = vmatpush1.msra.mxu0 %v1973
  %2536 = vmatprep.subr.mxu0 0.0
  %2537 = vmatpush1.msra.mxu0 %v2068
  %2538 = vmatprep.subr.mxu0 0.0
  %2539 = vmatpush1.msra.mxu0 0.0
  %2540 = vmatprep.subr.mxu0 0.0
  %2541 = vmatpush1.msra.mxu0 0.0
  %2542 = vmatprep.subr.mxu0 0.0
  %2543 = vmatpush1.msra.mxu0 0.0
  %2544 = vmatprep.subr.mxu0 0.0
  %2545 = vmatpush1.msra.mxu0 0.0
  %2546 = vmatprep.subr.mxu0 0.0
  %2547 = vmatpush1.msra.mxu0 0.0
  %2548 = vmatprep.subr.mxu0 0.0
  %2549 = vmatpush1.msra.mxu0 0.0
  %2550 = vmatprep.subr.mxu0 0.0
  %2551 = vmatpush1.msra.mxu0 0.0
  %2552 = vmatprep.subr.mxu0 0.0
  %2553 = vmatpush1.msra.mxu0 0.0
  %2554 = vmatprep.subr.mxu0 0.0
  %2555 = vmatpush1.msra.mxu0 0.0
  %2556 = vmatprep.subr.mxu0 0.0
  %2557 = vmatpush1.msra.mxu0 0.0
  %2558 = vmatprep.subr.mxu0 0.0
  %2559 = vmatpush1.msra.mxu0 0.0
  %2560 = vmatprep.subr.mxu0 0.0
  %2561 = vmatpush1.msra.mxu0 0.0
  %2562 = vmatprep.subr.mxu0 0.0
  %2563 = vmatpush1.msra.mxu0 0.0
  %2564 = vmatprep.subr.mxu0 0.0
  %2565 = vmatpush1.msra.mxu0 0.0
  %2566 = vmatprep.subr.mxu0 0.0
  %2567 = vmatpush1.msra.mxu0 0.0
  %2568 = vmatprep.subr.mxu0 0.0
  %2569 = vmatpush1.msra.mxu0 0.0
  %2570 = vmatprep.subr.mxu0 0.0
  %2571 = vmatpush1.msra.mxu0 0.0
  %2572 = vmatprep.subr.mxu0 0.0
  %2573 = vmatpush1.msra.mxu0 0.0
  %2574 = vmatprep.subr.mxu0 0.0
  %2575 = vmatpush1.msra.mxu0 0.0
  %2576 = vmatprep.subr.mxu0 0.0
  %2577 = vmatpush1.msra.mxu0 0.0
  %2578 = vmatprep.subr.mxu0 0.0
  %2579 = vmatpush1.msra.mxu0 0.0
  %2580 = vmatprep.subr.mxu0 0.0
  %2581 = vmatpush1.msra.mxu0 0.0
  %2582 = vmatprep.subr.mxu0 0.0
  %2583 = vmatpush1.msra.mxu0 0.0
  %2584 = vmatprep.subr.mxu0 0.0
  %2585 = vmatpush1.msra.mxu0 0.0
  %2586 = vmatprep.subr.mxu0 0.0
  %2587 = vmatpush1.msra.mxu0 0.0
  %2588 = vmatprep.subr.mxu0 0.0
  %2589 = vmatpush1.msra.mxu0 0.0
  %2590 = vmatprep.subr.mxu0 0.0
  %2591 = vmatpush1.msra.mxu0 0.0
  %2592 = vmatprep.subr.mxu0 0.0
  %2593 = vmatpush1.msra.mxu0 0.0
  %2594 = vmatprep.subr.mxu0 0.0
  %2595 = vmatpush1.msra.mxu0 0.0
  %2596 = vmatprep.mubr.f32.mxu0 0.0
  %2597 = vmatmul.mubr.f32.gmra.mrb[0].mxu0 %v2530
  %v2598 = vpop.f32.mrb[0].mxu0
  %v2599 = vadd.f32 0.0, %v2598
  %v2600 = vpop.f32.mrb[0].mxu0
  %2601 = vdwg.mxu0
  %s2602 = scalar_lea.vmem %s7, 96
  %v2603 = vld [vmem:[%s2602] sm:$0xff]
  %v2604 = vld [vmem:[%s2602 + $0x8] sm:$0xff]
  %v2605 = vld [vmem:[%s2602 + $0x10] sm:$0xff]
  %v2606 = vld [vmem:[%s2602 + $0x18] sm:$0xff]
  %v2608 = vsel %vm2144, %v2599, 0
  %2610 = vmatprep.subr.mxu0 0.0
  %2611 = vmatpush1.msra.mxu0 %v2603
  %2612 = vmatprep.subr.mxu0 0.0
  %2613 = vmatpush1.msra.mxu0 %v2604
  %2614 = vmatprep.subr.mxu0 0.0
  %2615 = vmatpush1.msra.mxu0 %v2605
  %2616 = vmatprep.subr.mxu0 0.0
  %2617 = vmatpush1.msra.mxu0 %v2606
  %2618 = vmatprep.subr.mxu0 0.0
  %2619 = vmatpush1.msra.mxu0 0.0
  %2620 = vmatprep.subr.mxu0 0.0
  %2621 = vmatpush1.msra.mxu0 0.0
  %2622 = vmatprep.subr.mxu0 0.0
  %2623 = vmatpush1.msra.mxu0 0.0
  %2624 = vmatprep.subr.mxu0 0.0
  %2625 = vmatpush1.msra.mxu0 0.0
  %2626 = vmatprep.subr.mxu0 0.0
  %2627 = vmatpush1.msra.mxu0 0.0
  %2628 = vmatprep.subr.mxu0 0.0
  %2629 = vmatpush1.msra.mxu0 0.0
  %2630 = vmatprep.subr.mxu0 0.0
  %2631 = vmatpush1.msra.mxu0 0.0
  %2632 = vmatprep.subr.mxu0 0.0
  %2633 = vmatpush1.msra.mxu0 0.0
  %2634 = vmatprep.subr.mxu0 0.0
  %2635 = vmatpush1.msra.mxu0 0.0
  %2636 = vmatprep.subr.mxu0 0.0
  %2637 = vmatpush1.msra.mxu0 0.0
  %2638 = vmatprep.subr.mxu0 0.0
  %2639 = vmatpush1.msra.mxu0 0.0
  %2640 = vmatprep.subr.mxu0 0.0
  %2641 = vmatpush1.msra.mxu0 0.0
  %2642 = vmatprep.subr.mxu0 0.0
  %2643 = vmatpush1.msra.mxu0 0.0
  %2644 = vmatprep.subr.mxu0 0.0
  %2645 = vmatpush1.msra.mxu0 0.0
  %2646 = vmatprep.subr.mxu0 0.0
  %2647 = vmatpush1.msra.mxu0 0.0
  %2648 = vmatprep.subr.mxu0 0.0
  %2649 = vmatpush1.msra.mxu0 0.0
  %2650 = vmatprep.subr.mxu0 0.0
  %2651 = vmatpush1.msra.mxu0 0.0
  %2652 = vmatprep.subr.mxu0 0.0
  %2653 = vmatpush1.msra.mxu0 0.0
  %2654 = vmatprep.subr.mxu0 0.0
  %2655 = vmatpush1.msra.mxu0 0.0
  %2656 = vmatprep.subr.mxu0 0.0
  %2657 = vmatpush1.msra.mxu0 0.0
  %2658 = vmatprep.subr.mxu0 0.0
  %2659 = vmatpush1.msra.mxu0 0.0
  %2660 = vmatprep.subr.mxu0 0.0
  %2661 = vmatpush1.msra.mxu0 0.0
  %2662 = vmatprep.subr.mxu0 0.0
  %2663 = vmatpush1.msra.mxu0 0.0
  %2664 = vmatprep.subr.mxu0 0.0
  %2665 = vmatpush1.msra.mxu0 0.0
  %2666 = vmatprep.subr.mxu0 0.0
  %2667 = vmatpush1.msra.mxu0 0.0
  %2668 = vmatprep.subr.mxu0 0.0
  %2669 = vmatpush1.msra.mxu0 0.0
  %2670 = vmatprep.subr.mxu0 0.0
  %2671 = vmatpush1.msra.mxu0 0.0
  %2672 = vmatprep.subr.mxu0 0.0
  %2673 = vmatpush1.msra.mxu0 0.0
  %2674 = vmatprep.mubr.f32.mxu0 0.0
  %2675 = vmatmul.mubr.f32.gmra.mrb[0].mxu0 %v2608
  %v2676 = vpop.f32.mrb[0].mxu0
  %v2677 = vadd.f32 0.0, %v2676
  %v2678 = vpop.f32.mrb[0].mxu0
  %2679 = vdwg.mxu0
  %v2680 = vadd.f32 %v2526, %v2677
  %s2681 = scalar_lea.vmem %s10, 8
  %v2682 = vld [vmem:[%s2681] sm:$0x3]
  %v2684 = vsel %vm2063, %v2682, 0
  %2686 = vmatprep.subr.mxu0 0.0
  %2687 = vmatpush1.msra.mxu0 %v1972
  %2688 = vmatprep.subr.mxu0 0.0
  %2689 = vmatpush1.msra.mxu0 %v1973
  %2690 = vmatprep.subr.mxu0 0.0
  %2691 = vmatpush1.msra.mxu0 %v2068
  %2692 = vmatprep.subr.mxu0 0.0
  %2693 = vmatpush1.msra.mxu0 0.0
  %2694 = vmatprep.subr.mxu0 0.0
  %2695 = vmatpush1.msra.mxu0 0.0
  %2696 = vmatprep.subr.mxu0 0.0
  %2697 = vmatpush1.msra.mxu0 0.0
  %2698 = vmatprep.subr.mxu0 0.0
  %2699 = vmatpush1.msra.mxu0 0.0
  %2700 = vmatprep.subr.mxu0 0.0
  %2701 = vmatpush1.msra.mxu0 0.0
  %2702 = vmatprep.subr.mxu0 0.0
  %2703 = vmatpush1.msra.mxu0 0.0
  %2704 = vmatprep.subr.mxu0 0.0
  %2705 = vmatpush1.msra.mxu0 0.0
  %2706 = vmatprep.subr.mxu0 0.0
  %2707 = vmatpush1.msra.mxu0 0.0
  %2708 = vmatprep.subr.mxu0 0.0
  %2709 = vmatpush1.msra.mxu0 0.0
  %2710 = vmatprep.subr.mxu0 0.0
  %2711 = vmatpush1.msra.mxu0 0.0
  %2712 = vmatprep.subr.mxu0 0.0
  %2713 = vmatpush1.msra.mxu0 0.0
  %2714 = vmatprep.subr.mxu0 0.0
  %2715 = vmatpush1.msra.mxu0 0.0
  %2716 = vmatprep.subr.mxu0 0.0
  %2717 = vmatpush1.msra.mxu0 0.0
  %2718 = vmatprep.subr.mxu0 0.0
  %2719 = vmatpush1.msra.mxu0 0.0
  %2720 = vmatprep.subr.mxu0 0.0
  %2721 = vmatpush1.msra.mxu0 0.0
  %2722 = vmatprep.subr.mxu0 0.0
  %2723 = vmatpush1.msra.mxu0 0.0
  %2724 = vmatprep.subr.mxu0 0.0
  %2725 = vmatpush1.msra.mxu0 0.0
  %2726 = vmatprep.subr.mxu0 0.0
  %2727 = vmatpush1.msra.mxu0 0.0
  %2728 = vmatprep.subr.mxu0 0.0
  %2729 = vmatpush1.msra.mxu0 0.0
  %2730 = vmatprep.subr.mxu0 0.0
  %2731 = vmatpush1.msra.mxu0 0.0
  %2732 = vmatprep.subr.mxu0 0.0
  %2733 = vmatpush1.msra.mxu0 0.0
  %2734 = vmatprep.subr.mxu0 0.0
  %2735 = vmatpush1.msra.mxu0 0.0
  %2736 = vmatprep.subr.mxu0 0.0
  %2737 = vmatpush1.msra.mxu0 0.0
  %2738 = vmatprep.subr.mxu0 0.0
  %2739 = vmatpush1.msra.mxu0 0.0
  %2740 = vmatprep.subr.mxu0 0.0
  %2741 = vmatpush1.msra.mxu0 0.0
  %2742 = vmatprep.subr.mxu0 0.0
  %2743 = vmatpush1.msra.mxu0 0.0
  %2744 = vmatprep.subr.mxu0 0.0
  %2745 = vmatpush1.msra.mxu0 0.0
  %2746 = vmatprep.subr.mxu0 0.0
  %2747 = vmatpush1.msra.mxu0 0.0
  %2748 = vmatprep.subr.mxu0 0.0
  %2749 = vmatpush1.msra.mxu0 0.0
  %2750 = vmatprep.mubr.f32.mxu0 0.0
  %2751 = vmatmul.mubr.f32.gmra.mrb[0].mxu0 %v2684
  %v2752 = vpop.f32.mrb[0].mxu0
  %v2753 = vadd.f32 0.0, %v2752
  %v2754 = vpop.f32.mrb[0].mxu0
  %2755 = vdwg.mxu0
  %s2756 = scalar_lea.vmem %s7, 128
  %v2757 = vld [vmem:[%s2756] sm:$0xff]
  %v2758 = vld [vmem:[%s2756 + $0x8] sm:$0xff]
  %v2759 = vld [vmem:[%s2756 + $0x10] sm:$0xff]
  %v2760 = vld [vmem:[%s2756 + $0x18] sm:$0xff]
  %v2762 = vsel %vm2144, %v2753, 0
  %2764 = vmatprep.subr.mxu0 0.0
  %2765 = vmatpush1.msra.mxu0 %v2757
  %2766 = vmatprep.subr.mxu0 0.0
  %2767 = vmatpush1.msra.mxu0 %v2758
  %2768 = vmatprep.subr.mxu0 0.0
  %2769 = vmatpush1.msra.mxu0 %v2759
  %2770 = vmatprep.subr.mxu0 0.0
  %2771 = vmatpush1.msra.mxu0 %v2760
  %2772 = vmatprep.subr.mxu0 0.0
  %2773 = vmatpush1.msra.mxu0 0.0
  %2774 = vmatprep.subr.mxu0 0.0
  %2775 = vmatpush1.msra.mxu0 0.0
  %2776 = vmatprep.subr.mxu0 0.0
  %2777 = vmatpush1.msra.mxu0 0.0
  %2778 = vmatprep.subr.mxu0 0.0
  %2779 = vmatpush1.msra.mxu0 0.0
  %2780 = vmatprep.subr.mxu0 0.0
  %2781 = vmatpush1.msra.mxu0 0.0
  %2782 = vmatprep.subr.mxu0 0.0
  %2783 = vmatpush1.msra.mxu0 0.0
  %2784 = vmatprep.subr.mxu0 0.0
  %2785 = vmatpush1.msra.mxu0 0.0
  %2786 = vmatprep.subr.mxu0 0.0
  %2787 = vmatpush1.msra.mxu0 0.0
  %2788 = vmatprep.subr.mxu0 0.0
  %2789 = vmatpush1.msra.mxu0 0.0
  %2790 = vmatprep.subr.mxu0 0.0
  %2791 = vmatpush1.msra.mxu0 0.0
  %2792 = vmatprep.subr.mxu0 0.0
  %2793 = vmatpush1.msra.mxu0 0.0
  %2794 = vmatprep.subr.mxu0 0.0
  %2795 = vmatpush1.msra.mxu0 0.0
  %2796 = vmatprep.subr.mxu0 0.0
  %2797 = vmatpush1.msra.mxu0 0.0
  %2798 = vmatprep.subr.mxu0 0.0
  %2799 = vmatpush1.msra.mxu0 0.0
  %2800 = vmatprep.subr.mxu0 0.0
  %2801 = vmatpush1.msra.mxu0 0.0
  %2802 = vmatprep.subr.mxu0 0.0
  %2803 = vmatpush1.msra.mxu0 0.0
  %2804 = vmatprep.subr.mxu0 0.0
  %2805 = vmatpush1.msra.mxu0 0.0
  %2806 = vmatprep.subr.mxu0 0.0
  %2807 = vmatpush1.msra.mxu0 0.0
  %2808 = vmatprep.subr.mxu0 0.0
  %2809 = vmatpush1.msra.mxu0 0.0
  %2810 = vmatprep.subr.mxu0 0.0
  %2811 = vmatpush1.msra.mxu0 0.0
  %2812 = vmatprep.subr.mxu0 0.0
  %2813 = vmatpush1.msra.mxu0 0.0
  %2814 = vmatprep.subr.mxu0 0.0
  %2815 = vmatpush1.msra.mxu0 0.0
  %2816 = vmatprep.subr.mxu0 0.0
  %2817 = vmatpush1.msra.mxu0 0.0
  %2818 = vmatprep.subr.mxu0 0.0
  %2819 = vmatpush1.msra.mxu0 0.0
  %2820 = vmatprep.subr.mxu0 0.0
  %2821 = vmatpush1.msra.mxu0 0.0
  %2822 = vmatprep.subr.mxu0 0.0
  %2823 = vmatpush1.msra.mxu0 0.0
  %2824 = vmatprep.subr.mxu0 0.0
  %2825 = vmatpush1.msra.mxu0 0.0
  %2826 = vmatprep.subr.mxu0 0.0
  %2827 = vmatpush1.msra.mxu0 0.0
  %2828 = vmatprep.mubr.f32.mxu0 0.0
  %2829 = vmatmul.mubr.f32.gmra.mrb[0].mxu0 %v2762
  %v2830 = vpop.f32.mrb[0].mxu0
  %v2831 = vadd.f32 0.0, %v2830
  %v2832 = vpop.f32.mrb[0].mxu0
  %2833 = vdwg.mxu0
  %v2834 = vadd.f32 %v2680, %v2831
  %s2835 = scalar_lea.vmem %s10, 10
  %v2836 = vld [vmem:[%s2835] sm:$0x3]
  %v2838 = vsel %vm2063, %v2836, 0
  %2840 = vmatprep.subr.mxu0 0.0
  %2841 = vmatpush1.msra.mxu0 %v1972
  %2842 = vmatprep.subr.mxu0 0.0
  %2843 = vmatpush1.msra.mxu0 %v1973
  %2844 = vmatprep.subr.mxu0 0.0
  %2845 = vmatpush1.msra.mxu0 %v2068
  %2846 = vmatprep.subr.mxu0 0.0
  %2847 = vmatpush1.msra.mxu0 0.0
  %2848 = vmatprep.subr.mxu0 0.0
  %2849 = vmatpush1.msra.mxu0 0.0
  %2850 = vmatprep.subr.mxu0 0.0
  %2851 = vmatpush1.msra.mxu0 0.0
  %2852 = vmatprep.subr.mxu0 0.0
  %2853 = vmatpush1.msra.mxu0 0.0
  %2854 = vmatprep.subr.mxu0 0.0
  %2855 = vmatpush1.msra.mxu0 0.0
  %2856 = vmatprep.subr.mxu0 0.0
  %2857 = vmatpush1.msra.mxu0 0.0
  %2858 = vmatprep.subr.mxu0 0.0
  %2859 = vmatpush1.msra.mxu0 0.0
  %2860 = vmatprep.subr.mxu0 0.0
  %2861 = vmatpush1.msra.mxu0 0.0
  %2862 = vmatprep.subr.mxu0 0.0
  %2863 = vmatpush1.msra.mxu0 0.0
  %2864 = vmatprep.subr.mxu0 0.0
  %2865 = vmatpush1.msra.mxu0 0.0
  %2866 = vmatprep.subr.mxu0 0.0
  %2867 = vmatpush1.msra.mxu0 0.0
  %2868 = vmatprep.subr.mxu0 0.0
  %2869 = vmatpush1.msra.mxu0 0.0
  %2870 = vmatprep.subr.mxu0 0.0
  %2871 = vmatpush1.msra.mxu0 0.0
  %2872 = vmatprep.subr.mxu0 0.0
  %2873 = vmatpush1.msra.mxu0 0.0
  %2874 = vmatprep.subr.mxu0 0.0
  %2875 = vmatpush1.msra.mxu0 0.0
  %2876 = vmatprep.subr.mxu0 0.0
  %2877 = vmatpush1.msra.mxu0 0.0
  %2878 = vmatprep.subr.mxu0 0.0
  %2879 = vmatpush1.msra.mxu0 0.0
  %2880 = vmatprep.subr.mxu0 0.0
  %2881 = vmatpush1.msra.mxu0 0.0
  %2882 = vmatprep.subr.mxu0 0.0
  %2883 = vmatpush1.msra.mxu0 0.0
  %2884 = vmatprep.subr.mxu0 0.0
  %2885 = vmatpush1.msra.mxu0 0.0
  %2886 = vmatprep.subr.mxu0 0.0
  %2887 = vmatpush1.msra.mxu0 0.0
  %2888 = vmatprep.subr.mxu0 0.0
  %2889 = vmatpush1.msra.mxu0 0.0
  %2890 = vmatprep.subr.mxu0 0.0
  %2891 = vmatpush1.msra.mxu0 0.0
  %2892 = vmatprep.subr.mxu0 0.0
  %2893 = vmatpush1.msra.mxu0 0.0
  %2894 = vmatprep.subr.mxu0 0.0
  %2895 = vmatpush1.msra.mxu0 0.0
  %2896 = vmatprep.subr.mxu0 0.0
  %2897 = vmatpush1.msra.mxu0 0.0
  %2898 = vmatprep.subr.mxu0 0.0
  %2899 = vmatpush1.msra.mxu0 0.0
  %2900 = vmatprep.subr.mxu0 0.0
  %2901 = vmatpush1.msra.mxu0 0.0
  %2902 = vmatprep.subr.mxu0 0.0
  %2903 = vmatpush1.msra.mxu0 0.0
  %2904 = vmatprep.mubr.f32.mxu0 0.0
  %2905 = vmatmul.mubr.f32.gmra.mrb[0].mxu0 %v2838
  %v2906 = vpop.f32.mrb[0].mxu0
  %v2907 = vadd.f32 0.0, %v2906
  %v2908 = vpop.f32.mrb[0].mxu0
  %2909 = vdwg.mxu0
  %s2910 = scalar_lea.vmem %s7, 160
  %v2911 = vld [vmem:[%s2910] sm:$0xff]
  %v2912 = vld [vmem:[%s2910 + $0x8] sm:$0xff]
  %v2913 = vld [vmem:[%s2910 + $0x10] sm:$0xff]
  %v2914 = vld [vmem:[%s2910 + $0x18] sm:$0xff]
  %v2916 = vsel %vm2144, %v2907, 0
  %2918 = vmatprep.subr.mxu0 0.0
  %2919 = vmatpush1.msra.mxu0 %v2911
  %2920 = vmatprep.subr.mxu0 0.0
  %2921 = vmatpush1.msra.mxu0 %v2912
  %2922 = vmatprep.subr.mxu0 0.0
  %2923 = vmatpush1.msra.mxu0 %v2913
  %2924 = vmatprep.subr.mxu0 0.0
  %2925 = vmatpush1.msra.mxu0 %v2914
  %2926 = vmatprep.subr.mxu0 0.0
  %2927 = vmatpush1.msra.mxu0 0.0
  %2928 = vmatprep.subr.mxu0 0.0
  %2929 = vmatpush1.msra.mxu0 0.0
  %2930 = vmatprep.subr.mxu0 0.0
  %2931 = vmatpush1.msra.mxu0 0.0
  %2932 = vmatprep.subr.mxu0 0.0
  %2933 = vmatpush1.msra.mxu0 0.0
  %2934 = vmatprep.subr.mxu0 0.0
  %2935 = vmatpush1.msra.mxu0 0.0
  %2936 = vmatprep.subr.mxu0 0.0
  %2937 = vmatpush1.msra.mxu0 0.0
  %2938 = vmatprep.subr.mxu0 0.0
  %2939 = vmatpush1.msra.mxu0 0.0
  %2940 = vmatprep.subr.mxu0 0.0
  %2941 = vmatpush1.msra.mxu0 0.0
  %2942 = vmatprep.subr.mxu0 0.0
  %2943 = vmatpush1.msra.mxu0 0.0
  %2944 = vmatprep.subr.mxu0 0.0
  %2945 = vmatpush1.msra.mxu0 0.0
  %2946 = vmatprep.subr.mxu0 0.0
  %2947 = vmatpush1.msra.mxu0 0.0
  %2948 = vmatprep.subr.mxu0 0.0
  %2949 = vmatpush1.msra.mxu0 0.0
  %2950 = vmatprep.subr.mxu0 0.0
  %2951 = vmatpush1.msra.mxu0 0.0
  %2952 = vmatprep.subr.mxu0 0.0
  %2953 = vmatpush1.msra.mxu0 0.0
  %2954 = vmatprep.subr.mxu0 0.0
  %2955 = vmatpush1.msra.mxu0 0.0
  %2956 = vmatprep.subr.mxu0 0.0
  %2957 = vmatpush1.msra.mxu0 0.0
  %2958 = vmatprep.subr.mxu0 0.0
  %2959 = vmatpush1.msra.mxu0 0.0
  %2960 = vmatprep.subr.mxu0 0.0
  %2961 = vmatpush1.msra.mxu0 0.0
  %2962 = vmatprep.subr.mxu0 0.0
  %2963 = vmatpush1.msra.mxu0 0.0
  %2964 = vmatprep.subr.mxu0 0.0
  %2965 = vmatpush1.msra.mxu0 0.0
  %2966 = vmatprep.subr.mxu0 0.0
  %2967 = vmatpush1.msra.mxu0 0.0
  %2968 = vmatprep.subr.mxu0 0.0
  %2969 = vmatpush1.msra.mxu0 0.0
  %2970 = vmatprep.subr.mxu0 0.0
  %2971 = vmatpush1.msra.mxu0 0.0
  %2972 = vmatprep.subr.mxu0 0.0
  %2973 = vmatpush1.msra.mxu0 0.0
  %2974 = vmatprep.subr.mxu0 0.0
  %2975 = vmatpush1.msra.mxu0 0.0
  %2976 = vmatprep.subr.mxu0 0.0
  %2977 = vmatpush1.msra.mxu0 0.0
  %2978 = vmatprep.subr.mxu0 0.0
  %2979 = vmatpush1.msra.mxu0 0.0
  %2980 = vmatprep.subr.mxu0 0.0
  %2981 = vmatpush1.msra.mxu0 0.0
  %2982 = vmatprep.mubr.f32.mxu0 0.0
  %2983 = vmatmul.mubr.f32.gmra.mrb[0].mxu0 %v2916
  %v2984 = vpop.f32.mrb[0].mxu0
  %v2985 = vadd.f32 0.0, %v2984
  %v2986 = vpop.f32.mrb[0].mxu0
  %2987 = vdwg.mxu0
  %v2988 = vadd.f32 %v2834, %v2985
  %s2989 = scalar_lea.vmem %s10, 12
  %v2990 = vld [vmem:[%s2989] sm:$0x3]
  %v2992 = vsel %vm2063, %v2990, 0
  %2994 = vmatprep.subr.mxu0 0.0
  %2995 = vmatpush1.msra.mxu0 %v1972
  %2996 = vmatprep.subr.mxu0 0.0
  %2997 = vmatpush1.msra.mxu0 %v1973
  %2998 = vmatprep.subr.mxu0 0.0
  %2999 = vmatpush1.msra.mxu0 %v2068
  %3000 = vmatprep.subr.mxu0 0.0
  %3001 = vmatpush1.msra.mxu0 0.0
  %3002 = vmatprep.subr.mxu0 0.0
  %3003 = vmatpush1.msra.mxu0 0.0
  %3004 = vmatprep.subr.mxu0 0.0
  %3005 = vmatpush1.msra.mxu0 0.0
  %3006 = vmatprep.subr.mxu0 0.0
  %3007 = vmatpush1.msra.mxu0 0.0
  %3008 = vmatprep.subr.mxu0 0.0
  %3009 = vmatpush1.msra.mxu0 0.0
  %3010 = vmatprep.subr.mxu0 0.0
  %3011 = vmatpush1.msra.mxu0 0.0
  %3012 = vmatprep.subr.mxu0 0.0
  %3013 = vmatpush1.msra.mxu0 0.0
  %3014 = vmatprep.subr.mxu0 0.0
  %3015 = vmatpush1.msra.mxu0 0.0
  %3016 = vmatprep.subr.mxu0 0.0
  %3017 = vmatpush1.msra.mxu0 0.0
  %3018 = vmatprep.subr.mxu0 0.0
  %3019 = vmatpush1.msra.mxu0 0.0
  %3020 = vmatprep.subr.mxu0 0.0
  %3021 = vmatpush1.msra.mxu0 0.0
  %3022 = vmatprep.subr.mxu0 0.0
  %3023 = vmatpush1.msra.mxu0 0.0
  %3024 = vmatprep.subr.mxu0 0.0
  %3025 = vmatpush1.msra.mxu0 0.0
  %3026 = vmatprep.subr.mxu0 0.0
  %3027 = vmatpush1.msra.mxu0 0.0
  %3028 = vmatprep.subr.mxu0 0.0
  %3029 = vmatpush1.msra.mxu0 0.0
  %3030 = vmatprep.subr.mxu0 0.0
  %3031 = vmatpush1.msra.mxu0 0.0
  %3032 = vmatprep.subr.mxu0 0.0
  %3033 = vmatpush1.msra.mxu0 0.0
  %3034 = vmatprep.subr.mxu0 0.0
  %3035 = vmatpush1.msra.mxu0 0.0
  %3036 = vmatprep.subr.mxu0 0.0
  %3037 = vmatpush1.msra.mxu0 0.0
  %3038 = vmatprep.subr.mxu0 0.0
  %3039 = vmatpush1.msra.mxu0 0.0
  %3040 = vmatprep.subr.mxu0 0.0
  %3041 = vmatpush1.msra.mxu0 0.0
  %3042 = vmatprep.subr.mxu0 0.0
  %3043 = vmatpush1.msra.mxu0 0.0
  %3044 = vmatprep.subr.mxu0 0.0
  %3045 = vmatpush1.msra.mxu0 0.0
  %3046 = vmatprep.subr.mxu0 0.0
  %3047 = vmatpush1.msra.mxu0 0.0
  %3048 = vmatprep.subr.mxu0 0.0
  %3049 = vmatpush1.msra.mxu0 0.0
  %3050 = vmatprep.subr.mxu0 0.0
  %3051 = vmatpush1.msra.mxu0 0.0
  %3052 = vmatprep.subr.mxu0 0.0
  %3053 = vmatpush1.msra.mxu0 0.0
  %3054 = vmatprep.subr.mxu0 0.0
  %3055 = vmatpush1.msra.mxu0 0.0
  %3056 = vmatprep.subr.mxu0 0.0
  %3057 = vmatpush1.msra.mxu0 0.0
  %3058 = vmatprep.mubr.f32.mxu0 0.0
  %3059 = vmatmul.mubr.f32.gmra.mrb[0].mxu0 %v2992
  %v3060 = vpop.f32.mrb[0].mxu0
  %v3061 = vadd.f32 0.0, %v3060
  %v3062 = vpop.f32.mrb[0].mxu0
  %3063 = vdwg.mxu0
  %s3064 = scalar_lea.vmem %s7, 192
  %v3065 = vld [vmem:[%s3064] sm:$0xff]
  %v3066 = vld [vmem:[%s3064 + $0x8] sm:$0xff]
  %v3067 = vld [vmem:[%s3064 + $0x10] sm:$0xff]
  %v3068 = vld [vmem:[%s3064 + $0x18] sm:$0xff]
  %v3070 = vsel %vm2144, %v3061, 0
  %3072 = vmatprep.subr.mxu0 0.0
  %3073 = vmatpush1.msra.mxu0 %v3065
  %3074 = vmatprep.subr.mxu0 0.0
  %3075 = vmatpush1.msra.mxu0 %v3066
  %3076 = vmatprep.subr.mxu0 0.0
  %3077 = vmatpush1.msra.mxu0 %v3067
  %3078 = vmatprep.subr.mxu0 0.0
  %3079 = vmatpush1.msra.mxu0 %v3068
  %3080 = vmatprep.subr.mxu0 0.0
  %3081 = vmatpush1.msra.mxu0 0.0
  %3082 = vmatprep.subr.mxu0 0.0
  %3083 = vmatpush1.msra.mxu0 0.0
  %3084 = vmatprep.subr.mxu0 0.0
  %3085 = vmatpush1.msra.mxu0 0.0
  %3086 = vmatprep.subr.mxu0 0.0
  %3087 = vmatpush1.msra.mxu0 0.0
  %3088 = vmatprep.subr.mxu0 0.0
  %3089 = vmatpush1.msra.mxu0 0.0
  %3090 = vmatprep.subr.mxu0 0.0
  %3091 = vmatpush1.msra.mxu0 0.0
  %3092 = vmatprep.subr.mxu0 0.0
  %3093 = vmatpush1.msra.mxu0 0.0
  %3094 = vmatprep.subr.mxu0 0.0
  %3095 = vmatpush1.msra.mxu0 0.0
  %3096 = vmatprep.subr.mxu0 0.0
  %3097 = vmatpush1.msra.mxu0 0.0
  %3098 = vmatprep.subr.mxu0 0.0
  %3099 = vmatpush1.msra.mxu0 0.0
  %3100 = vmatprep.subr.mxu0 0.0
  %3101 = vmatpush1.msra.mxu0 0.0
  %3102 = vmatprep.subr.mxu0 0.0
  %3103 = vmatpush1.msra.mxu0 0.0
  %3104 = vmatprep.subr.mxu0 0.0
  %3105 = vmatpush1.msra.mxu0 0.0
  %3106 = vmatprep.subr.mxu0 0.0
  %3107 = vmatpush1.msra.mxu0 0.0
  %3108 = vmatprep.subr.mxu0 0.0
  %3109 = vmatpush1.msra.mxu0 0.0
  %3110 = vmatprep.subr.mxu0 0.0
  %3111 = vmatpush1.msra.mxu0 0.0
  %3112 = vmatprep.subr.mxu0 0.0
  %3113 = vmatpush1.msra.mxu0 0.0
  %3114 = vmatprep.subr.mxu0 0.0
  %3115 = vmatpush1.msra.mxu0 0.0
  %3116 = vmatprep.subr.mxu0 0.0
  %3117 = vmatpush1.msra.mxu0 0.0
  %3118 = vmatprep.subr.mxu0 0.0
  %3119 = vmatpush1.msra.mxu0 0.0
  %3120 = vmatprep.subr.mxu0 0.0
  %3121 = vmatpush1.msra.mxu0 0.0
  %3122 = vmatprep.subr.mxu0 0.0
  %3123 = vmatpush1.msra.mxu0 0.0
  %3124 = vmatprep.subr.mxu0 0.0
  %3125 = vmatpush1.msra.mxu0 0.0
  %3126 = vmatprep.subr.mxu0 0.0
  %3127 = vmatpush1.msra.mxu0 0.0
  %3128 = vmatprep.subr.mxu0 0.0
  %3129 = vmatpush1.msra.mxu0 0.0
  %3130 = vmatprep.subr.mxu0 0.0
  %3131 = vmatpush1.msra.mxu0 0.0
  %3132 = vmatprep.subr.mxu0 0.0
  %3133 = vmatpush1.msra.mxu0 0.0
  %3134 = vmatprep.subr.mxu0 0.0
  %3135 = vmatpush1.msra.mxu0 0.0
  %3136 = vmatprep.mubr.f32.mxu0 0.0
  %3137 = vmatmul.mubr.f32.gmra.mrb[0].mxu0 %v3070
  %v3138 = vpop.f32.mrb[0].mxu0
  %v3139 = vadd.f32 0.0, %v3138
  %v3140 = vpop.f32.mrb[0].mxu0
  %3141 = vdwg.mxu0
  %v3142 = vadd.f32 %v2988, %v3139
  %s3143 = scalar_lea.vmem %s10, 14
  %v3144 = vld [vmem:[%s3143] sm:$0x3]
  %v3146 = vsel %vm2063, %v3144, 0
  %3148 = vmatprep.subr.mxu0 0.0
  %3149 = vmatpush1.msra.mxu0 %v1972
  %3150 = vmatprep.subr.mxu0 0.0
  %3151 = vmatpush1.msra.mxu0 %v1973
  %3152 = vmatprep.subr.mxu0 0.0
  %3153 = vmatpush1.msra.mxu0 %v2068
  %3154 = vmatprep.subr.mxu0 0.0
  %3155 = vmatpush1.msra.mxu0 0.0
  %3156 = vmatprep.subr.mxu0 0.0
  %3157 = vmatpush1.msra.mxu0 0.0
  %3158 = vmatprep.subr.mxu0 0.0
  %3159 = vmatpush1.msra.mxu0 0.0
  %3160 = vmatprep.subr.mxu0 0.0
  %3161 = vmatpush1.msra.mxu0 0.0
  %3162 = vmatprep.subr.mxu0 0.0
  %3163 = vmatpush1.msra.mxu0 0.0
  %3164 = vmatprep.subr.mxu0 0.0
  %3165 = vmatpush1.msra.mxu0 0.0
  %3166 = vmatprep.subr.mxu0 0.0
  %3167 = vmatpush1.msra.mxu0 0.0
  %3168 = vmatprep.subr.mxu0 0.0
  %3169 = vmatpush1.msra.mxu0 0.0
  %3170 = vmatprep.subr.mxu0 0.0
  %3171 = vmatpush1.msra.mxu0 0.0
  %3172 = vmatprep.subr.mxu0 0.0
  %3173 = vmatpush1.msra.mxu0 0.0
  %3174 = vmatprep.subr.mxu0 0.0
  %3175 = vmatpush1.msra.mxu0 0.0
  %3176 = vmatprep.subr.mxu0 0.0
  %3177 = vmatpush1.msra.mxu0 0.0
  %3178 = vmatprep.subr.mxu0 0.0
  %3179 = vmatpush1.msra.mxu0 0.0
  %3180 = vmatprep.subr.mxu0 0.0
  %3181 = vmatpush1.msra.mxu0 0.0
  %3182 = vmatprep.subr.mxu0 0.0
  %3183 = vmatpush1.msra.mxu0 0.0
  %3184 = vmatprep.subr.mxu0 0.0
  %3185 = vmatpush1.msra.mxu0 0.0
  %3186 = vmatprep.subr.mxu0 0.0
  %3187 = vmatpush1.msra.mxu0 0.0
  %3188 = vmatprep.subr.mxu0 0.0
  %3189 = vmatpush1.msra.mxu0 0.0
  %3190 = vmatprep.subr.mxu0 0.0
  %3191 = vmatpush1.msra.mxu0 0.0
  %3192 = vmatprep.subr.mxu0 0.0
  %3193 = vmatpush1.msra.mxu0 0.0
  %3194 = vmatprep.subr.mxu0 0.0
  %3195 = vmatpush1.msra.mxu0 0.0
  %3196 = vmatprep.subr.mxu0 0.0
  %3197 = vmatpush1.msra.mxu0 0.0
  %3198 = vmatprep.subr.mxu0 0.0
  %3199 = vmatpush1.msra.mxu0 0.0
  %3200 = vmatprep.subr.mxu0 0.0
  %3201 = vmatpush1.msra.mxu0 0.0
  %3202 = vmatprep.subr.mxu0 0.0
  %3203 = vmatpush1.msra.mxu0 0.0
  %3204 = vmatprep.subr.mxu0 0.0
  %3205 = vmatpush1.msra.mxu0 0.0
  %3206 = vmatprep.subr.mxu0 0.0
  %3207 = vmatpush1.msra.mxu0 0.0
  %3208 = vmatprep.subr.mxu0 0.0
  %3209 = vmatpush1.msra.mxu0 0.0
  %3210 = vmatprep.subr.mxu0 0.0
  %3211 = vmatpush1.msra.mxu0 0.0
  %3212 = vmatprep.mubr.f32.mxu0 0.0
  %3213 = vmatmul.mubr.f32.gmra.mrb[0].mxu0 %v3146
  %v3214 = vpop.f32.mrb[0].mxu0
  %v3215 = vadd.f32 0.0, %v3214
  %v3216 = vpop.f32.mrb[0].mxu0
  %3217 = vdwg.mxu0
  %s3218 = scalar_lea.vmem %s7, 224
  %v3219 = vld [vmem:[%s3218] sm:$0xff]
  %v3220 = vld [vmem:[%s3218 + $0x8] sm:$0xff]
  %v3221 = vld [vmem:[%s3218 + $0x10] sm:$0xff]
  %v3222 = vld [vmem:[%s3218 + $0x18] sm:$0xff]
  %v3224 = vsel %vm2144, %v3215, 0
  %3226 = vmatprep.subr.mxu0 0.0
  %3227 = vmatpush1.msra.mxu0 %v3219
  %3228 = vmatprep.subr.mxu0 0.0
  %3229 = vmatpush1.msra.mxu0 %v3220
  %3230 = vmatprep.subr.mxu0 0.0
  %3231 = vmatpush1.msra.mxu0 %v3221
  %3232 = vmatprep.subr.mxu0 0.0
  %3233 = vmatpush1.msra.mxu0 %v3222
  %3234 = vmatprep.subr.mxu0 0.0
  %3235 = vmatpush1.msra.mxu0 0.0
  %3236 = vmatprep.subr.mxu0 0.0
  %3237 = vmatpush1.msra.mxu0 0.0
  %3238 = vmatprep.subr.mxu0 0.0
  %3239 = vmatpush1.msra.mxu0 0.0
  %3240 = vmatprep.subr.mxu0 0.0
  %3241 = vmatpush1.msra.mxu0 0.0
  %3242 = vmatprep.subr.mxu0 0.0
  %3243 = vmatpush1.msra.mxu0 0.0
  %3244 = vmatprep.subr.mxu0 0.0
  %3245 = vmatpush1.msra.mxu0 0.0
  %3246 = vmatprep.subr.mxu0 0.0
  %3247 = vmatpush1.msra.mxu0 0.0
  %3248 = vmatprep.subr.mxu0 0.0
  %3249 = vmatpush1.msra.mxu0 0.0
  %3250 = vmatprep.subr.mxu0 0.0
  %3251 = vmatpush1.msra.mxu0 0.0
  %3252 = vmatprep.subr.mxu0 0.0
  %3253 = vmatpush1.msra.mxu0 0.0
  %3254 = vmatprep.subr.mxu0 0.0
  %3255 = vmatpush1.msra.mxu0 0.0
  %3256 = vmatprep.subr.mxu0 0.0
  %3257 = vmatpush1.msra.mxu0 0.0
  %3258 = vmatprep.subr.mxu0 0.0
  %3259 = vmatpush1.msra.mxu0 0.0
  %3260 = vmatprep.subr.mxu0 0.0
  %3261 = vmatpush1.msra.mxu0 0.0
  %3262 = vmatprep.subr.mxu0 0.0
  %3263 = vmatpush1.msra.mxu0 0.0
  %3264 = vmatprep.subr.mxu0 0.0
  %3265 = vmatpush1.msra.mxu0 0.0
  %3266 = vmatprep.subr.mxu0 0.0
  %3267 = vmatpush1.msra.mxu0 0.0
  %3268 = vmatprep.subr.mxu0 0.0
  %3269 = vmatpush1.msra.mxu0 0.0
  %3270 = vmatprep.subr.mxu0 0.0
  %3271 = vmatpush1.msra.mxu0 0.0
  %3272 = vmatprep.subr.mxu0 0.0
  %3273 = vmatpush1.msra.mxu0 0.0
  %3274 = vmatprep.subr.mxu0 0.0
  %3275 = vmatpush1.msra.mxu0 0.0
  %3276 = vmatprep.subr.mxu0 0.0
  %3277 = vmatpush1.msra.mxu0 0.0
  %3278 = vmatprep.subr.mxu0 0.0
  %3279 = vmatpush1.msra.mxu0 0.0
  %3280 = vmatprep.subr.mxu0 0.0
  %3281 = vmatpush1.msra.mxu0 0.0
  %3282 = vmatprep.subr.mxu0 0.0
  %3283 = vmatpush1.msra.mxu0 0.0
  %3284 = vmatprep.subr.mxu0 0.0
  %3285 = vmatpush1.msra.mxu0 0.0
  %3286 = vmatprep.subr.mxu0 0.0
  %3287 = vmatpush1.msra.mxu0 0.0
  %3288 = vmatprep.subr.mxu0 0.0
  %3289 = vmatpush1.msra.mxu0 0.0
  %3290 = vmatprep.mubr.f32.mxu0 0.0
  %3291 = vmatmul.mubr.f32.gmra.mrb[0].mxu0 %v3224
  %v3292 = vpop.f32.mrb[0].mxu0
  %v3293 = vadd.f32 0.0, %v3292
  %v3294 = vpop.f32.mrb[0].mxu0
  %3295 = vdwg.mxu0
  %v3296 = vadd.f32 %v3142, %v3293
  %s3297 = scalar_lea.vmem %s10, 16
  %v3298 = vld [vmem:[%s3297] sm:$0x3]
  %v3300 = vsel %vm2063, %v3298, 0
  %3302 = vmatprep.subr.mxu0 0.0
  %3303 = vmatpush1.msra.mxu0 %v1972
  %3304 = vmatprep.subr.mxu0 0.0
  %3305 = vmatpush1.msra.mxu0 %v1973
  %3306 = vmatprep.subr.mxu0 0.0
  %3307 = vmatpush1.msra.mxu0 %v2068
  %3308 = vmatprep.subr.mxu0 0.0
  %3309 = vmatpush1.msra.mxu0 0.0
  %3310 = vmatprep.subr.mxu0 0.0
  %3311 = vmatpush1.msra.mxu0 0.0
  %3312 = vmatprep.subr.mxu0 0.0
  %3313 = vmatpush1.msra.mxu0 0.0
  %3314 = vmatprep.subr.mxu0 0.0
  %3315 = vmatpush1.msra.mxu0 0.0
  %3316 = vmatprep.subr.mxu0 0.0
  %3317 = vmatpush1.msra.mxu0 0.0
  %3318 = vmatprep.subr.mxu0 0.0
  %3319 = vmatpush1.msra.mxu0 0.0
  %3320 = vmatprep.subr.mxu0 0.0
  %3321 = vmatpush1.msra.mxu0 0.0
  %3322 = vmatprep.subr.mxu0 0.0
  %3323 = vmatpush1.msra.mxu0 0.0
  %3324 = vmatprep.subr.mxu0 0.0
  %3325 = vmatpush1.msra.mxu0 0.0
  %3326 = vmatprep.subr.mxu0 0.0
  %3327 = vmatpush1.msra.mxu0 0.0
  %3328 = vmatprep.subr.mxu0 0.0
  %3329 = vmatpush1.msra.mxu0 0.0
  %3330 = vmatprep.subr.mxu0 0.0
  %3331 = vmatpush1.msra.mxu0 0.0
  %3332 = vmatprep.subr.mxu0 0.0
  %3333 = vmatpush1.msra.mxu0 0.0
  %3334 = vmatprep.subr.mxu0 0.0
  %3335 = vmatpush1.msra.mxu0 0.0
  %3336 = vmatprep.subr.mxu0 0.0
  %3337 = vmatpush1.msra.mxu0 0.0
  %3338 = vmatprep.subr.mxu0 0.0
  %3339 = vmatpush1.msra.mxu0 0.0
  %3340 = vmatprep.subr.mxu0 0.0
  %3341 = vmatpush1.msra.mxu0 0.0
  %3342 = vmatprep.subr.mxu0 0.0
  %3343 = vmatpush1.msra.mxu0 0.0
  %3344 = vmatprep.subr.mxu0 0.0
  %3345 = vmatpush1.msra.mxu0 0.0
  %3346 = vmatprep.subr.mxu0 0.0
  %3347 = vmatpush1.msra.mxu0 0.0
  %3348 = vmatprep.subr.mxu0 0.0
  %3349 = vmatpush1.msra.mxu0 0.0
  %3350 = vmatprep.subr.mxu0 0.0
  %3351 = vmatpush1.msra.mxu0 0.0
  %3352 = vmatprep.subr.mxu0 0.0
  %3353 = vmatpush1.msra.mxu0 0.0
  %3354 = vmatprep.subr.mxu0 0.0
  %3355 = vmatpush1.msra.mxu0 0.0
  %3356 = vmatprep.subr.mxu0 0.0
  %3357 = vmatpush1.msra.mxu0 0.0
  %3358 = vmatprep.subr.mxu0 0.0
  %3359 = vmatpush1.msra.mxu0 0.0
  %3360 = vmatprep.subr.mxu0 0.0
  %3361 = vmatpush1.msra.mxu0 0.0
  %3362 = vmatprep.subr.mxu0 0.0
  %3363 = vmatpush1.msra.mxu0 0.0
  %3364 = vmatprep.subr.mxu0 0.0
  %3365 = vmatpush1.msra.mxu0 0.0
  %3366 = vmatprep.mubr.f32.mxu0 0.0
  %3367 = vmatmul.mubr.f32.gmra.mrb[0].mxu0 %v3300
  %v3368 = vpop.f32.mrb[0].mxu0
  %v3369 = vadd.f32 0.0, %v3368
  %v3370 = vpop.f32.mrb[0].mxu0
  %3371 = vdwg.mxu0
  %s3372 = scalar_lea.vmem %s7, 256
  %v3373 = vld [vmem:[%s3372] sm:$0xff]
  %v3374 = vld [vmem:[%s3372 + $0x8] sm:$0xff]
  %v3375 = vld [vmem:[%s3372 + $0x10] sm:$0xff]
  %v3376 = vld [vmem:[%s3372 + $0x18] sm:$0xff]
  %v3378 = vsel %vm2144, %v3369, 0
  %3380 = vmatprep.subr.mxu0 0.0
  %3381 = vmatpush1.msra.mxu0 %v3373
  %3382 = vmatprep.subr.mxu0 0.0
  %3383 = vmatpush1.msra.mxu0 %v3374
  %3384 = vmatprep.subr.mxu0 0.0
  %3385 = vmatpush1.msra.mxu0 %v3375
  %3386 = vmatprep.subr.mxu0 0.0
  %3387 = vmatpush1.msra.mxu0 %v3376
  %3388 = vmatprep.subr.mxu0 0.0
  %3389 = vmatpush1.msra.mxu0 0.0
  %3390 = vmatprep.subr.mxu0 0.0
  %3391 = vmatpush1.msra.mxu0 0.0
  %3392 = vmatprep.subr.mxu0 0.0
  %3393 = vmatpush1.msra.mxu0 0.0
  %3394 = vmatprep.subr.mxu0 0.0
  %3395 = vmatpush1.msra.mxu0 0.0
  %3396 = vmatprep.subr.mxu0 0.0
  %3397 = vmatpush1.msra.mxu0 0.0
  %3398 = vmatprep.subr.mxu0 0.0
  %3399 = vmatpush1.msra.mxu0 0.0
  %3400 = vmatprep.subr.mxu0 0.0
  %3401 = vmatpush1.msra.mxu0 0.0
  %3402 = vmatprep.subr.mxu0 0.0
  %3403 = vmatpush1.msra.mxu0 0.0
  %3404 = vmatprep.subr.mxu0 0.0
  %3405 = vmatpush1.msra.mxu0 0.0
  %3406 = vmatprep.subr.mxu0 0.0
  %3407 = vmatpush1.msra.mxu0 0.0
  %3408 = vmatprep.subr.mxu0 0.0
  %3409 = vmatpush1.msra.mxu0 0.0
  %3410 = vmatprep.subr.mxu0 0.0
  %3411 = vmatpush1.msra.mxu0 0.0
  %3412 = vmatprep.subr.mxu0 0.0
  %3413 = vmatpush1.msra.mxu0 0.0
  %3414 = vmatprep.subr.mxu0 0.0
  %3415 = vmatpush1.msra.mxu0 0.0
  %3416 = vmatprep.subr.mxu0 0.0
  %3417 = vmatpush1.msra.mxu0 0.0
  %3418 = vmatprep.subr.mxu0 0.0
  %3419 = vmatpush1.msra.mxu0 0.0
  %3420 = vmatprep.subr.mxu0 0.0
  %3421 = vmatpush1.msra.mxu0 0.0
  %3422 = vmatprep.subr.mxu0 0.0
  %3423 = vmatpush1.msra.mxu0 0.0
  %3424 = vmatprep.subr.mxu0 0.0
  %3425 = vmatpush1.msra.mxu0 0.0
  %3426 = vmatprep.subr.mxu0 0.0
  %3427 = vmatpush1.msra.mxu0 0.0
  %3428 = vmatprep.subr.mxu0 0.0
  %3429 = vmatpush1.msra.mxu0 0.0
  %3430 = vmatprep.subr.mxu0 0.0
  %3431 = vmatpush1.msra.mxu0 0.0
  %3432 = vmatprep.subr.mxu0 0.0
  %3433 = vmatpush1.msra.mxu0 0.0
  %3434 = vmatprep.subr.mxu0 0.0
  %3435 = vmatpush1.msra.mxu0 0.0
  %3436 = vmatprep.subr.mxu0 0.0
  %3437 = vmatpush1.msra.mxu0 0.0
  %3438 = vmatprep.subr.mxu0 0.0
  %3439 = vmatpush1.msra.mxu0 0.0
  %3440 = vmatprep.subr.mxu0 0.0
  %3441 = vmatpush1.msra.mxu0 0.0
  %3442 = vmatprep.subr.mxu0 0.0
  %3443 = vmatpush1.msra.mxu0 0.0
  %3444 = vmatprep.mubr.f32.mxu0 0.0
  %3445 = vmatmul.mubr.f32.gmra.mrb[0].mxu0 %v3378
  %v3446 = vpop.f32.mrb[0].mxu0
  %v3447 = vadd.f32 0.0, %v3446
  %v3448 = vpop.f32.mrb[0].mxu0
  %3449 = vdwg.mxu0
  %v3450 = vadd.f32 %v3296, %v3447
  %v3451 = vmax.f32 %v3450, 0.0
  %v3452 = vld [vmem:[%s11] sm:$0xff]
  %v3453 = vld [vmem:[%s11 + $0x8] sm:$0xff]
  %v3454 = vld [vmem:[%s11 + $0x10] sm:$0xff]
  %v3455 = vld [vmem:[%s11 + $0x18] sm:$0xff]
  %v3456 = vld [vmem:[%s12] sm:$0x1]
  %v3458 = vlaneseq
  %v3459 = vshrl.u32 %v3458, 7
  %v3460 = vsub.s32 0, %v3459
  %v3461 = vrot.slane %v3456, %v3460
  %v3464 = vsel %vm2144, %v3451, 0
  %3466 = vmatprep.subr.mxu0 0.0
  %3467 = vmatpush1.msra.mxu0 %v3452
  %3468 = vmatprep.subr.mxu0 0.0
  %3469 = vmatpush1.msra.mxu0 %v3453
  %3470 = vmatprep.subr.mxu0 0.0
  %3471 = vmatpush1.msra.mxu0 %v3454
  %3472 = vmatprep.subr.mxu0 0.0
  %3473 = vmatpush1.msra.mxu0 %v3455
  %3474 = vmatprep.subr.mxu0 0.0
  %3475 = vmatpush1.msra.mxu0 0.0
  %3476 = vmatprep.subr.mxu0 0.0
  %3477 = vmatpush1.msra.mxu0 0.0
  %3478 = vmatprep.subr.mxu0 0.0
  %3479 = vmatpush1.msra.mxu0 0.0
  %3480 = vmatprep.subr.mxu0 0.0
  %3481 = vmatpush1.msra.mxu0 0.0
  %3482 = vmatprep.subr.mxu0 0.0
  %3483 = vmatpush1.msra.mxu0 0.0
  %3484 = vmatprep.subr.mxu0 0.0
  %3485 = vmatpush1.msra.mxu0 0.0
  %3486 = vmatprep.subr.mxu0 0.0
  %3487 = vmatpush1.msra.mxu0 0.0
  %3488 = vmatprep.subr.mxu0 0.0
  %3489 = vmatpush1.msra.mxu0 0.0
  %3490 = vmatprep.subr.mxu0 0.0
  %3491 = vmatpush1.msra.mxu0 0.0
  %3492 = vmatprep.subr.mxu0 0.0
  %3493 = vmatpush1.msra.mxu0 0.0
  %3494 = vmatprep.subr.mxu0 0.0
  %3495 = vmatpush1.msra.mxu0 0.0
  %3496 = vmatprep.subr.mxu0 0.0
  %3497 = vmatpush1.msra.mxu0 0.0
  %3498 = vmatprep.subr.mxu0 0.0
  %3499 = vmatpush1.msra.mxu0 0.0
  %3500 = vmatprep.subr.mxu0 0.0
  %3501 = vmatpush1.msra.mxu0 0.0
  %3502 = vmatprep.subr.mxu0 0.0
  %3503 = vmatpush1.msra.mxu0 0.0
  %3504 = vmatprep.subr.mxu0 0.0
  %3505 = vmatpush1.msra.mxu0 0.0
  %3506 = vmatprep.subr.mxu0 0.0
  %3507 = vmatpush1.msra.mxu0 0.0
  %3508 = vmatprep.subr.mxu0 0.0
  %3509 = vmatpush1.msra.mxu0 0.0
  %3510 = vmatprep.subr.mxu0 0.0
  %3511 = vmatpush1.msra.mxu0 0.0
  %3512 = vmatprep.subr.mxu0 0.0
  %3513 = vmatpush1.msra.mxu0 0.0
  %3514 = vmatprep.subr.mxu0 0.0
  %3515 = vmatpush1.msra.mxu0 0.0
  %3516 = vmatprep.subr.mxu0 0.0
  %3517 = vmatpush1.msra.mxu0 0.0
  %3518 = vmatprep.subr.mxu0 0.0
  %3519 = vmatpush1.msra.mxu0 0.0
  %3520 = vmatprep.subr.mxu0 0.0
  %3521 = vmatpush1.msra.mxu0 0.0
  %3522 = vmatprep.subr.mxu0 0.0
  %3523 = vmatpush1.msra.mxu0 0.0
  %3524 = vmatprep.subr.mxu0 0.0
  %3525 = vmatpush1.msra.mxu0 0.0
  %3526 = vmatprep.subr.mxu0 0.0
  %3527 = vmatpush1.msra.mxu0 0.0
  %3528 = vmatprep.subr.mxu0 0.0
  %3529 = vmatpush1.msra.mxu0 0.0
  %3530 = vmatprep.mubr.f32.mxu0 0.0
  %3531 = vmatmul.mubr.f32.gmra.mrb[0].mxu0 %v3464
  %v3532 = vpop.f32.mrb[0].mxu0
  %v3533 = vadd.f32 %v3461, %v3532
  %v3534 = vpop.f32.mrb[0].mxu0
  %3535 = vdwg.mxu0
  %v3536 = vmax.f32 %v3533, 0.0
  %v3537 = vld [vmem:[%s13] sm:$0xff]
  %v3538 = vld [vmem:[%s13 + $0x8] sm:$0xff]
  %v3539 = vld [vmem:[%s13 + $0x10] sm:$0xff]
  %v3540 = vld [vmem:[%s13 + $0x18] sm:$0xff]
  %v3541 = vld [vmem:[%s14] sm:$0x1]
  %v3543 = vlaneseq
  %v3544 = vshrl.u32 %v3543, 7
  %v3545 = vsub.s32 0, %v3544
  %v3546 = vrot.slane %v3541, %v3545
  %v3549 = vsel %vm2144, %v3536, 0
  %3551 = vmatprep.subr.mxu0 0.0
  %3552 = vmatpush1.msra.mxu0 %v3537
  %3553 = vmatprep.subr.mxu0 0.0
  %3554 = vmatpush1.msra.mxu0 %v3538
  %3555 = vmatprep.subr.mxu0 0.0
  %3556 = vmatpush1.msra.mxu0 %v3539
  %3557 = vmatprep.subr.mxu0 0.0
  %3558 = vmatpush1.msra.mxu0 %v3540
  %3559 = vmatprep.subr.mxu0 0.0
  %3560 = vmatpush1.msra.mxu0 0.0
  %3561 = vmatprep.subr.mxu0 0.0
  %3562 = vmatpush1.msra.mxu0 0.0
  %3563 = vmatprep.subr.mxu0 0.0
  %3564 = vmatpush1.msra.mxu0 0.0
  %3565 = vmatprep.subr.mxu0 0.0
  %3566 = vmatpush1.msra.mxu0 0.0
  %3567 = vmatprep.subr.mxu0 0.0
  %3568 = vmatpush1.msra.mxu0 0.0
  %3569 = vmatprep.subr.mxu0 0.0
  %3570 = vmatpush1.msra.mxu0 0.0
  %3571 = vmatprep.subr.mxu0 0.0
  %3572 = vmatpush1.msra.mxu0 0.0
  %3573 = vmatprep.subr.mxu0 0.0
  %3574 = vmatpush1.msra.mxu0 0.0
  %3575 = vmatprep.subr.mxu0 0.0
  %3576 = vmatpush1.msra.mxu0 0.0
  %3577 = vmatprep.subr.mxu0 0.0
  %3578 = vmatpush1.msra.mxu0 0.0
  %3579 = vmatprep.subr.mxu0 0.0
  %3580 = vmatpush1.msra.mxu0 0.0
  %3581 = vmatprep.subr.mxu0 0.0
  %3582 = vmatpush1.msra.mxu0 0.0
  %3583 = vmatprep.subr.mxu0 0.0
  %3584 = vmatpush1.msra.mxu0 0.0
  %3585 = vmatprep.subr.mxu0 0.0
  %3586 = vmatpush1.msra.mxu0 0.0
  %3587 = vmatprep.subr.mxu0 0.0
  %3588 = vmatpush1.msra.mxu0 0.0
  %3589 = vmatprep.subr.mxu0 0.0
  %3590 = vmatpush1.msra.mxu0 0.0
  %3591 = vmatprep.subr.mxu0 0.0
  %3592 = vmatpush1.msra.mxu0 0.0
  %3593 = vmatprep.subr.mxu0 0.0
  %3594 = vmatpush1.msra.mxu0 0.0
  %3595 = vmatprep.subr.mxu0 0.0
  %3596 = vmatpush1.msra.mxu0 0.0
  %3597 = vmatprep.subr.mxu0 0.0
  %3598 = vmatpush1.msra.mxu0 0.0
  %3599 = vmatprep.subr.mxu0 0.0
  %3600 = vmatpush1.msra.mxu0 0.0
  %3601 = vmatprep.subr.mxu0 0.0
  %3602 = vmatpush1.msra.mxu0 0.0
  %3603 = vmatprep.subr.mxu0 0.0
  %3604 = vmatpush1.msra.mxu0 0.0
  %3605 = vmatprep.subr.mxu0 0.0
  %3606 = vmatpush1.msra.mxu0 0.0
  %3607 = vmatprep.subr.mxu0 0.0
  %3608 = vmatpush1.msra.mxu0 0.0
  %3609 = vmatprep.subr.mxu0 0.0
  %3610 = vmatpush1.msra.mxu0 0.0
  %3611 = vmatprep.subr.mxu0 0.0
  %3612 = vmatpush1.msra.mxu0 0.0
  %3613 = vmatprep.subr.mxu0 0.0
  %3614 = vmatpush1.msra.mxu0 0.0
  %3615 = vmatprep.mubr.f32.mxu0 0.0
  %3616 = vmatmul.mubr.f32.gmra.mrb[0].mxu0 %v3549
  %v3617 = vpop.f32.mrb[0].mxu0
  %v3618 = vadd.f32 %v3546, %v3617
  %v3619 = vpop.f32.mrb[0].mxu0
  %3620 = vdwg.mxu0
  %v3621 = vmax.f32 %v3618, 0.0
  %v3622 = vld [vmem:[%s15] sm:$0xff]
  %v3623 = vld [vmem:[%s15 + $0x8] sm:$0xff]
  %v3624 = vld [vmem:[%s15 + $0x10] sm:$0xff]
  %v3625 = vld [vmem:[%s15 + $0x18] sm:$0xff]
  %v3626 = vld [vmem:[%s16] sm:$0x1]
  %v3628 = vlaneseq
  %v3629 = vshrl.u32 %v3628, 7
  %v3630 = vsub.s32 0, %v3629
  %v3631 = vrot.slane %v3626, %v3630
  %v3634 = vsel %vm2144, %v3621, 0
  %3636 = vmatprep.subr.mxu0 0.0
  %3637 = vmatpush1.msra.mxu0 %v3622
  %3638 = vmatprep.subr.mxu0 0.0
  %3639 = vmatpush1.msra.mxu0 %v3623
  %3640 = vmatprep.subr.mxu0 0.0
  %3641 = vmatpush1.msra.mxu0 %v3624
  %3642 = vmatprep.subr.mxu0 0.0
  %3643 = vmatpush1.msra.mxu0 %v3625
  %3644 = vmatprep.subr.mxu0 0.0
  %3645 = vmatpush1.msra.mxu0 0.0
  %3646 = vmatprep.subr.mxu0 0.0
  %3647 = vmatpush1.msra.mxu0 0.0
  %3648 = vmatprep.subr.mxu0 0.0
  %3649 = vmatpush1.msra.mxu0 0.0
  %3650 = vmatprep.subr.mxu0 0.0
  %3651 = vmatpush1.msra.mxu0 0.0
  %3652 = vmatprep.subr.mxu0 0.0
  %3653 = vmatpush1.msra.mxu0 0.0
  %3654 = vmatprep.subr.mxu0 0.0
  %3655 = vmatpush1.msra.mxu0 0.0
  %3656 = vmatprep.subr.mxu0 0.0
  %3657 = vmatpush1.msra.mxu0 0.0
  %3658 = vmatprep.subr.mxu0 0.0
  %3659 = vmatpush1.msra.mxu0 0.0
  %3660 = vmatprep.subr.mxu0 0.0
  %3661 = vmatpush1.msra.mxu0 0.0
  %3662 = vmatprep.subr.mxu0 0.0
  %3663 = vmatpush1.msra.mxu0 0.0
  %3664 = vmatprep.subr.mxu0 0.0
  %3665 = vmatpush1.msra.mxu0 0.0
  %3666 = vmatprep.subr.mxu0 0.0
  %3667 = vmatpush1.msra.mxu0 0.0
  %3668 = vmatprep.subr.mxu0 0.0
  %3669 = vmatpush1.msra.mxu0 0.0
  %3670 = vmatprep.subr.mxu0 0.0
  %3671 = vmatpush1.msra.mxu0 0.0
  %3672 = vmatprep.subr.mxu0 0.0
  %3673 = vmatpush1.msra.mxu0 0.0
  %3674 = vmatprep.subr.mxu0 0.0
  %3675 = vmatpush1.msra.mxu0 0.0
  %3676 = vmatprep.subr.mxu0 0.0
  %3677 = vmatpush1.msra.mxu0 0.0
  %3678 = vmatprep.subr.mxu0 0.0
  %3679 = vmatpush1.msra.mxu0 0.0
  %3680 = vmatprep.subr.mxu0 0.0
  %3681 = vmatpush1.msra.mxu0 0.0
  %3682 = vmatprep.subr.mxu0 0.0
  %3683 = vmatpush1.msra.mxu0 0.0
  %3684 = vmatprep.subr.mxu0 0.0
  %3685 = vmatpush1.msra.mxu0 0.0
  %3686 = vmatprep.subr.mxu0 0.0
  %3687 = vmatpush1.msra.mxu0 0.0
  %3688 = vmatprep.subr.mxu0 0.0
  %3689 = vmatpush1.msra.mxu0 0.0
  %3690 = vmatprep.subr.mxu0 0.0
  %3691 = vmatpush1.msra.mxu0 0.0
  %3692 = vmatprep.subr.mxu0 0.0
  %3693 = vmatpush1.msra.mxu0 0.0
  %3694 = vmatprep.subr.mxu0 0.0
  %3695 = vmatpush1.msra.mxu0 0.0
  %3696 = vmatprep.subr.mxu0 0.0
  %3697 = vmatpush1.msra.mxu0 0.0
  %3698 = vmatprep.subr.mxu0 0.0
  %3699 = vmatpush1.msra.mxu0 0.0
  %3700 = vmatprep.mubr.f32.mxu0 0.0
  %3701 = vmatmul.mubr.f32.gmra.mrb[0].mxu0 %v3634
  %v3702 = vpop.f32.mrb[0].mxu0
  %v3703 = vadd.f32 %v3631, %v3702
  %v3704 = vpop.f32.mrb[0].mxu0
  %3705 = vdwg.mxu0
  %3706 = vst [vmem:[%s17] sm:$0x3] %v3703
  // Predicated region
  $region70: #{forward.1} parent=0 // pred_check
    _
  $region71: #{forward.1} parent=0 // pred_check_branch
    %3708 = sbr.rel (0) target = $region73
  $region72: #{forward.1} parent=0 // pred_region
    _
  $region73: #{forward.1} parent=0 // pred_fallthru
    _
  // Predicated region
  $region74: #{forward.1} parent=0 // pred_check
    _
  $region75: #{forward.1} parent=0 // pred_check_branch
    %3710 = sbr.rel (0) target = $region77
  $region76: #{forward.1} parent=0 // pred_region
    _
  $region77: #{forward.1} parent=0 // pred_fallthru
    _

</llo_original>
